<compile_context>
chip_gen: v6e
topology: v6e:2x2x1
jax: 0.10.0
libtpu: 0.0.40
codegen_flags: <defaults>
</compile_context>

<pallas_src>
import jax
import jax.numpy as jnp
from jax.experimental import pallas as pl
from jax.experimental.pallas import tpu as pltpu

ACTION_DIM = 2
ENVIRONMENT_DIM = 20
ROBOT_DIM = 4
STATE_DIM = ENVIRONMENT_DIM + ROBOT_DIM  # 24
H1 = 800
H2 = 600

# Lane/MXU-aligned padded sizes (zero padding keeps the math exact).
H1_PAD = 896    # 800 -> 896  (7 x 128)
H2_PAD = 640    # 600 -> 640  (5 x 128)
OUT_PAD = 128   # 2   -> 128  (lane-dense, unmasked output store)

MAX_BATCH_TILE = 256  # <= 256 so v7x megacore gets >= 2 grid steps for mid/large batches


def _round_up(x, m):
    return ((x + m - 1) // m) * m


def _actor_kernel(s_ref, w1_ref, b1_ref, w2_ref, b2_ref, w3_ref, b3_ref, a_ref):
    # layer_1: (TB, 24) @ (24, 896) + (1, 896) -> relu   (f32 activations, bf16 weights)
    h1 = jnp.dot(s_ref[...], w1_ref[...].astype(jnp.float32),
                 preferred_element_type=jnp.float32)
    h1 = jnp.maximum(h1 + b1_ref[...], 0.0)
    # layer_2: (TB, 896) @ (896, 640) + (1, 640) -> relu
    h2 = jnp.dot(h1, w2_ref[...].astype(jnp.float32),
                 preferred_element_type=jnp.float32)
    h2 = jnp.maximum(h2 + b2_ref[...], 0.0)
    # layer_3: (TB, 640) @ (640, 128) + (1, 128) -> tanh  (lane-dense, unmasked store)
    h3 = jnp.dot(h2, w3_ref[...].astype(jnp.float32),
                 preferred_element_type=jnp.float32)
    a_ref[...] = jnp.tanh(h3 + b3_ref[...]).astype(a_ref.dtype)


@jax.jit
def actor_forward(s, w1, b1, w2, b2, w3, b3):
    """s: (B, STATE_DIM) f32. w*: bf16 padded (in_pad, out_pad); b*: f32 (1, out_pad)."""
    B = s.shape[0]
    # Round the batch to a 128 multiple; pick the largest tile (<=256) dividing it so
    # padding waste stays <128 rows and B > 256 always yields >= 2 parallel grid steps.
    Bp = _round_up(B, 128)
    tile = MAX_BATCH_TILE if Bp % MAX_BATCH_TILE == 0 else 128

    s_pad = s.astype(jnp.float32)
    if Bp != B:
        s_pad = jnp.pad(s_pad, ((0, Bp - B), (0, 0)))

    out = pl.pallas_call(
        _actor_kernel,
        out_shape=jax.ShapeDtypeStruct((Bp, OUT_PAD), jnp.float32),
        grid=(Bp // tile,),
        in_specs=[
            pl.BlockSpec((tile, STATE_DIM), lambda i: (i, 0)),
            pl.BlockSpec((STATE_DIM, H1_PAD), lambda i: (0, 0)),
            pl.BlockSpec((1, H1_PAD), lambda i: (0, 0)),
            pl.BlockSpec((H1_PAD, H2_PAD), lambda i: (0, 0)),
            pl.BlockSpec((1, H2_PAD), lambda i: (0, 0)),
            pl.BlockSpec((H2_PAD, OUT_PAD), lambda i: (0, 0)),
            pl.BlockSpec((1, OUT_PAD), lambda i: (0, 0)),
        ],
        out_specs=pl.BlockSpec((tile, OUT_PAD), lambda i: (i, 0)),
        compiler_params=pltpu.CompilerParams(
            dimension_semantics=("parallel",),
            vmem_limit_bytes=32 * 1024 * 1024,
        ),
    )(s_pad, w1, b1, w2, b2, w3, b3)

    return out[:B, :ACTION_DIM]


def init_actor_params(key):
    """Torch-like nn.Linear init (U[-1/sqrt(fan_in), 1/sqrt(fan_in)]).

    Logical shapes: weights (in, out) f32, biases (1, out) f32.
    """
    ks = jax.random.split(key, 6)

    def linear(kw, kb, fan_in, fan_out):
        bound = 1.0 / jnp.sqrt(jnp.float32(fan_in))
        w = jax.random.uniform(kw, (fan_in, fan_out), jnp.float32, -bound, bound)
        b = jax.random.uniform(kb, (1, fan_out), jnp.float32, -bound, bound)
        return w, b

    w1, b1 = linear(ks[0], ks[1], STATE_DIM, H1)
    w2, b2 = linear(ks[2], ks[3], H1, H2)
    w3, b3 = linear(ks[4], ks[5], H2, ACTION_DIM)
    return w1, b1, w2, b2, w3, b3


def prepare_actor_params(w1, b1, w2, b2, w3, b3):
    """Zero-pad params to lane-aligned shapes; weights -> bf16, biases stay f32."""
    def pad_w(w, rin, cout):
        return jnp.pad(w, ((0, rin - w.shape[0]), (0, cout - w.shape[1]))).astype(jnp.bfloat16)

    def pad_b(b, cout):
        return jnp.pad(b, ((0, 0), (0, cout - b.shape[1]))).astype(jnp.float32)

    return (pad_w(w1, STATE_DIM, H1_PAD), pad_b(b1, H1_PAD),
            pad_w(w2, H1_PAD, H2_PAD), pad_b(b2, H2_PAD),
            pad_w(w3, H2_PAD, OUT_PAD), pad_b(b3, OUT_PAD))


def actor_forward_ref_f32(s, w1, b1, w2, b2, w3, b3):
    """Pure-JAX f32 reference identical to the original PyTorch module."""
    h1 = jnp.maximum(s @ w1 + b1, 0.0)
    h2 = jnp.maximum(h1 @ w2 + b2, 0.0)
    return jnp.tanh(h2 @ w3 + b3)


def actor_forward_ref_mirror(s, pw1, pb1, pw2, pb2, pw3, pb3):
    """Pure-JAX reference mirroring the kernel numerics (bf16-rounded weights, f32 math)."""
    h1 = jnp.maximum(jnp.dot(s.astype(jnp.float32), pw1.astype(jnp.float32)) + pb1, 0.0)
    h2 = jnp.maximum(jnp.dot(h1, pw2.astype(jnp.float32)) + pb2, 0.0)
    h3 = jnp.dot(h2, pw3.astype(jnp.float32)) + pb3
    return jnp.tanh(h3)[:, :ACTION_DIM]


if __name__ == "__main__":
    key = jax.random.PRNGKey(0)
    k_params, k_state = jax.random.split(key)

    raw_params = init_actor_params(k_params)      # logical f32 params (as in PyTorch)
    params = prepare_actor_params(*raw_params)    # padded bf16/f32 params for the kernel

    batch = 2
    s = jax.random.normal(k_state, (batch, STATE_DIM), jnp.float32)

    a = actor_forward(s, *params)
    a = jax.block_until_ready(a)
    assert a.shape == (batch, ACTION_DIM)

    # Tight check against a pure-JAX reference using the exact same bf16-rounded weights.
    a_mirror = actor_forward_ref_mirror(s, *params)
    assert jnp.allclose(a, a_mirror, atol=1e-3, rtol=1e-3), "mismatch vs bf16-mirrored reference"

    # Semantic check against the original f32 module (tolerance covers bf16 weight rounding).
    a_f32 = actor_forward_ref_f32(s, *raw_params)
    assert jnp.allclose(a, a_f32, atol=2e-2, rtol=2e-2), "mismatch vs f32 module reference"

    print("KERNEL_OK")
</pallas_src>

<mosaic_0001>
module attributes {stable_mosaic.version = 11 : i64} {
  func.func @_actor_kernel(%arg0: i32, %arg1: memref<128x24xf32, #tpu.memory_space<vmem>>, %arg2: memref<24x896xbf16, #tpu.memory_space<vmem>>, %arg3: memref<1x896xf32, #tpu.memory_space<vmem>>, %arg4: memref<896x640xbf16, #tpu.memory_space<vmem>>, %arg5: memref<1x640xf32, #tpu.memory_space<vmem>>, %arg6: memref<640x128xbf16, #tpu.memory_space<vmem>>, %arg7: memref<1x128xf32, #tpu.memory_space<vmem>>, %arg8: memref<128x128xf32, #tpu.memory_space<vmem>>) attributes {dimension_semantics = [#tpu.dimension_semantics<parallel>], iteration_bounds = array<i64: 1>, scalar_prefetch = 0 : i64, scratch_operands = 0 : i64, tpu.core_type = #tpu.core_type<tc>, window_params = [{transform_indices = @transform_0, window_bounds = array<i64: 128, 24>}, {pipeline_mode = #tpu.pipeline_mode<synchronous>, transform_indices = @transform_1, window_bounds = array<i64: 24, 896>}, {pipeline_mode = #tpu.pipeline_mode<synchronous>, transform_indices = @transform_2, window_bounds = array<i64: 1, 896>}, {pipeline_mode = #tpu.pipeline_mode<synchronous>, transform_indices = @transform_3, window_bounds = array<i64: 896, 640>}, {pipeline_mode = #tpu.pipeline_mode<synchronous>, transform_indices = @transform_4, window_bounds = array<i64: 1, 640>}, {pipeline_mode = #tpu.pipeline_mode<synchronous>, transform_indices = @transform_5, window_bounds = array<i64: 640, 128>}, {pipeline_mode = #tpu.pipeline_mode<synchronous>, transform_indices = @transform_6, window_bounds = array<i64: 1, 128>}, {transform_indices = @transform_7, window_bounds = array<i64: 128, 128>}]} {
    %c0 = arith.constant 0 : index
    %c0_0 = arith.constant 0 : index
    %0 = vector.load %arg1[%c0, %c0_0] : memref<128x24xf32, #tpu.memory_space<vmem>>, vector<128x24xf32>
    %c0_1 = arith.constant 0 : index
    %c0_2 = arith.constant 0 : index
    %1 = vector.load %arg2[%c0_1, %c0_2] : memref<24x896xbf16, #tpu.memory_space<vmem>>, vector<24x896xbf16>
    %2 = arith.extf %1 : vector<24x896xbf16> to vector<24x896xf32>
    %cst = arith.constant dense<0.000000e+00> : vector<128x896xf32>
    %3 = tpu.matmul %0, %2, %cst {dimension_numbers = #tpu.dot_dimension_numbers<[1], [0], [0], [1], [0, 0, 1, 1], [], []>} : vector<128x24xf32>, vector<24x896xf32>, vector<128x896xf32> -> vector<128x896xf32>
    %c0_3 = arith.constant 0 : index
    %c0_4 = arith.constant 0 : index
    %4 = vector.load %arg3[%c0_3, %c0_4] : memref<1x896xf32, #tpu.memory_space<vmem>>, vector<1x896xf32>
    %5 = vector.broadcast %4 : vector<1x896xf32> to vector<128x896xf32>
    %6 = arith.addf %3, %5 : vector<128x896xf32>
    %cst_5 = arith.constant 0.000000e+00 : f32
    %7 = vector.broadcast %cst_5 : f32 to vector<128x896xf32>
    %8 = arith.maximumf %6, %7 : vector<128x896xf32>
    %c0_6 = arith.constant 0 : index
    %c0_7 = arith.constant 0 : index
    %9 = vector.load %arg4[%c0_6, %c0_7] : memref<896x640xbf16, #tpu.memory_space<vmem>>, vector<896x640xbf16>
    %10 = arith.extf %9 : vector<896x640xbf16> to vector<896x640xf32>
    %cst_8 = arith.constant dense<0.000000e+00> : vector<128x640xf32>
    %11 = tpu.matmul %8, %10, %cst_8 {dimension_numbers = #tpu.dot_dimension_numbers<[1], [0], [0], [1], [0, 0, 1, 1], [], []>} : vector<128x896xf32>, vector<896x640xf32>, vector<128x640xf32> -> vector<128x640xf32>
    %c0_9 = arith.constant 0 : index
    %c0_10 = arith.constant 0 : index
    %12 = vector.load %arg5[%c0_9, %c0_10] : memref<1x640xf32, #tpu.memory_space<vmem>>, vector<1x640xf32>
    %13 = vector.broadcast %12 : vector<1x640xf32> to vector<128x640xf32>
    %14 = arith.addf %11, %13 : vector<128x640xf32>
    %cst_11 = arith.constant 0.000000e+00 : f32
    %15 = vector.broadcast %cst_11 : f32 to vector<128x640xf32>
    %16 = arith.maximumf %14, %15 : vector<128x640xf32>
    %c0_12 = arith.constant 0 : index
    %c0_13 = arith.constant 0 : index
    %17 = vector.load %arg6[%c0_12, %c0_13] : memref<640x128xbf16, #tpu.memory_space<vmem>>, vector<640x128xbf16>
    %18 = arith.extf %17 : vector<640x128xbf16> to vector<640x128xf32>
    %cst_14 = arith.constant dense<0.000000e+00> : vector<128x128xf32>
    %19 = tpu.matmul %16, %18, %cst_14 {dimension_numbers = #tpu.dot_dimension_numbers<[1], [0], [0], [1], [0, 0, 1, 1], [], []>} : vector<128x640xf32>, vector<640x128xf32>, vector<128x128xf32> -> vector<128x128xf32>
    %c0_15 = arith.constant 0 : index
    %c0_16 = arith.constant 0 : index
    %20 = vector.load %arg7[%c0_15, %c0_16] : memref<1x128xf32, #tpu.memory_space<vmem>>, vector<1x128xf32>
    %21 = vector.broadcast %20 : vector<1x128xf32> to vector<128x128xf32>
    %22 = arith.addf %19, %21 : vector<128x128xf32>
    %23 = math.tanh %22 : vector<128x128xf32>
    %c0_17 = arith.constant 0 : index
    %c0_18 = arith.constant 0 : index
    %24 = vector.load %arg8[%c0_17, %c0_18] : memref<128x128xf32, #tpu.memory_space<vmem>>, vector<128x128xf32>
    tpu.vector_store %arg8[%c0_17, %c0_18], %23 {strides = array<i32>} : memref<128x128xf32, #tpu.memory_space<vmem>>, vector<128x128xf32>,
    return
  }
  func.func @transform_0(%arg0: i32) -> (i32, i32) {
    %c0_i32 = arith.constant 0 : i32
    %c0_i32_0 = arith.constant 0 : i32
    return %arg0, %c0_i32 : i32, i32
  }
  func.func @transform_1(%arg0: i32) -> (i32, i32) {
    %c0_i32 = arith.constant 0 : i32
    %c0_i32_0 = arith.constant 0 : i32
    %c0_i32_1 = arith.constant 0 : i32
    return %c0_i32, %c0_i32_0 : i32, i32
  }
  func.func @transform_2(%arg0: i32) -> (i32, i32) {
    %c0_i32 = arith.constant 0 : i32
    %c0_i32_0 = arith.constant 0 : i32
    %c0_i32_1 = arith.constant 0 : i32
    return %c0_i32, %c0_i32_0 : i32, i32
  }
  func.func @transform_3(%arg0: i32) -> (i32, i32) {
    %c0_i32 = arith.constant 0 : i32
    %c0_i32_0 = arith.constant 0 : i32
    %c0_i32_1 = arith.constant 0 : i32
    return %c0_i32, %c0_i32_0 : i32, i32
  }
  func.func @transform_4(%arg0: i32) -> (i32, i32) {
    %c0_i32 = arith.constant 0 : i32
    %c0_i32_0 = arith.constant 0 : i32
    %c0_i32_1 = arith.constant 0 : i32
    return %c0_i32, %c0_i32_0 : i32, i32
  }
  func.func @transform_5(%arg0: i32) -> (i32, i32) {
    %c0_i32 = arith.constant 0 : i32
    %c0_i32_0 = arith.constant 0 : i32
    %c0_i32_1 = arith.constant 0 : i32
    return %c0_i32, %c0_i32_0 : i32, i32
  }
  func.func @transform_6(%arg0: i32) -> (i32, i32) {
    %c0_i32 = arith.constant 0 : i32
    %c0_i32_0 = arith.constant 0 : i32
    %c0_i32_1 = arith.constant 0 : i32
    return %c0_i32, %c0_i32_0 : i32, i32
  }
  func.func @transform_7(%arg0: i32) -> (i32, i32) {
    %c0_i32 = arith.constant 0 : i32
    %c0_i32_0 = arith.constant 0 : i32
    return %arg0, %c0_i32 : i32, i32
  }
}

</mosaic_0001>

<llo_original>
// kernel: actor_forward.1
$region0: #{actor_forward.1}
  #allocation0 [shape = 'u32[]', space=smem, size = 0x4, offset = 0x4, fixed_abs, tag = 'smem constant byte address 0x4 - core index']
  #allocation1 [shape = 'u32[144,128]{1,0:T(1,128)}', space=vmem, size = 0x12000, scoped, tag = 'internal scratch']
  %s0 = inlined_call_operand.vmem [shape: f32[128,24], index: 0, kind: input, shape index: {}]
  %s1 = inlined_call_operand.hbm [shape: bf16[24,896], index: 1, kind: input, shape index: {}]
  %s2 = inlined_call_operand.hbm [shape: f32[1,896], index: 2, kind: input, shape index: {}]
  %s3 = inlined_call_operand.hbm [shape: bf16[896,640], index: 3, kind: input, shape index: {}]
  %s4 = inlined_call_operand.hbm [shape: f32[1,640], index: 4, kind: input, shape index: {}]
  %s5 = inlined_call_operand.hbm [shape: bf16[640,128], index: 5, kind: input, shape index: {}]
  %s6 = inlined_call_operand.hbm [shape: f32[1,128], index: 6, kind: input, shape index: {}]
  %s7 = inlined_call_operand.vmem [shape: f32[128,128], index: 7, kind: output, shape index: {}]
  %s8 = sld [smem:[#allocation0]]
  $region62: #{actor_forward.1} parent=0
    _
  %s10 = ssub.s32 1, %s8
  %s11 = scalar_select 0, %s10, %s8
  $region1: #{actor_forward.1} parent=0
    #allocation2 [shape = 'u8[43008]{0}', space=vmem, size = 0xa800, scoped, tag = 'input window, operand 1, single buffered']
    #allocation3 [shape = 's32[1]{0}', space=sflag, size = 0x4, scoped, tag = 'scoped memory for actor_forward.1']
    #allocation4 [shape = 'u8[3584]{0}', space=vmem, size = 0x1000, scoped, tag = 'input window, operand 2, single buffered']
    #allocation5 [shape = 's32[1]{0}', space=sflag, size = 0x4, scoped, tag = 'scoped memory for actor_forward.1']
    #allocation6 [shape = 'u8[1146880]{0}', space=vmem, size = 0x118000, scoped, tag = 'input window, operand 3, single buffered']
    #allocation7 [shape = 'u8[2560]{0}', space=vmem, size = 0xc00, scoped, tag = 'input window, operand 4, single buffered']
    #allocation8 [shape = 's32[1]{0}', space=sflag, size = 0x4, scoped, tag = 'scoped memory for actor_forward.1']
    #allocation9 [shape = 'u8[163840]{0}', space=vmem, size = 0x28000, scoped, tag = 'input window, operand 5, single buffered']
    #allocation10 [shape = 'u8[512]{0}', space=vmem, size = 0x400, scoped, tag = 'input window, operand 6, single buffered']
    #allocation11 [shape = 's32[1]{0}', space=sflag, size = 0x4, scoped, tag = 'scoped memory for actor_forward.1']
    %12 = vsyncpa [#allocation3], 0
    %13 = vsyncpa [#allocation5], 0
    %14 = vsyncpa [#allocation8], 0
    %15 = vsyncpa [#allocation11], 0
    // Predicated region
    $region2: #{actor_forward.1} parent=1 // pred_check
      _
    $region3: #{actor_forward.1} parent=1 // pred_check_branch
      %17 = sbr.rel (0) target = $region5
    $region4: #{actor_forward.1} parent=1 // pred_region
      _
    $region5: #{actor_forward.1} parent=1 // pred_fallthru
      _
    // Predicated region
    $region6: #{actor_forward.1} parent=1 // pred_check
      _
    $region7: #{actor_forward.1} parent=1 // pred_check_branch
      %19 = sbr.rel (0) target = $region9
    $region8: #{actor_forward.1} parent=1 // pred_region
      %s21 = ssub.s32 1344, 1344
      %22 = vsyncadd [#allocation3], %s21
      %s23 = sshll.u32 [#allocation2], 4
      %s24 = int_to_ptr.vmem [resolvable:$true] %s23
      %29 = dma.hbm_to_vmem [thread:$0]  %s1, 1344, %s24, [#allocation3], 448, 448, 28
    $region9: #{actor_forward.1} parent=1 // pred_fallthru
      _
    // Predicated region
    $region10: #{actor_forward.1} parent=1 // pred_check
      _
    $region11: #{actor_forward.1} parent=1 // pred_check_branch
      %31 = sbr.rel (0) target = $region13
    $region12: #{actor_forward.1} parent=1 // pred_region
      %s33 = ssub.s32 112, 112
      %34 = vsyncadd [#allocation5], %s33
      %s36 = sshll.u32 [#allocation4], 4
      %s37 = int_to_ptr.vmem [resolvable:$true] %s36
      %39 = dma.hbm_to_vmem [thread:$0]  %s2, 112, %s37, [#allocation5]
    $region13: #{actor_forward.1} parent=1 // pred_fallthru
      _
    // Predicated region
    $region14: #{actor_forward.1} parent=1 // pred_check
      _
    $region15: #{actor_forward.1} parent=1 // pred_check_branch
      %41 = sbr.rel (0) target = $region17
    $region16: #{actor_forward.1} parent=1 // pred_region
      %s43 = ssub.s32 35840, 35840
      %44 = vsyncadd [#allocation5], %s43
      %s45 = sshll.u32 [#allocation6], 4
      %s46 = int_to_ptr.vmem [resolvable:$true] %s45
      %51 = dma.hbm_to_vmem [thread:$0]  %s3, 35840, %s46, [#allocation5], 320, 320, 20
    $region17: #{actor_forward.1} parent=1 // pred_fallthru
      _
    // Predicated region
    $region18: #{actor_forward.1} parent=1 // pred_check
      _
    $region19: #{actor_forward.1} parent=1 // pred_check_branch
      %53 = sbr.rel (0) target = $region21
    $region20: #{actor_forward.1} parent=1 // pred_region
      %s55 = ssub.s32 80, 80
      %56 = vsyncadd [#allocation8], %s55
      %s58 = sshll.u32 [#allocation7], 4
      %s59 = int_to_ptr.vmem [resolvable:$true] %s58
      %61 = dma.hbm_to_vmem [thread:$0]  %s4, 80, %s59, [#allocation8]
    $region21: #{actor_forward.1} parent=1 // pred_fallthru
      _
    // Predicated region
    $region22: #{actor_forward.1} parent=1 // pred_check
      _
    $region23: #{actor_forward.1} parent=1 // pred_check_branch
      %63 = sbr.rel (0) target = $region25
    $region24: #{actor_forward.1} parent=1 // pred_region
      %s65 = ssub.s32 5120, 5120
      %66 = vsyncadd [#allocation8], %s65
      %s67 = sshll.u32 [#allocation9], 4
      %s68 = int_to_ptr.vmem [resolvable:$true] %s67
      %73 = dma.hbm_to_vmem [thread:$0]  %s5, 5120, %s68, [#allocation8], 64, 64, 4
    $region25: #{actor_forward.1} parent=1 // pred_fallthru
      _
    // Predicated region
    $region26: #{actor_forward.1} parent=1 // pred_check
      _
    $region27: #{actor_forward.1} parent=1 // pred_check_branch
      %75 = sbr.rel (0) target = $region29
    $region28: #{actor_forward.1} parent=1 // pred_region
      %s77 = ssub.s32 16, 16
      %78 = vsyncadd [#allocation11], %s77
      %s80 = sshll.u32 [#allocation10], 4
      %s81 = int_to_ptr.vmem [resolvable:$true] %s80
      %83 = dma.hbm_to_vmem [thread:$0]  %s6, 16, %s81, [#allocation11]
    $region29: #{actor_forward.1} parent=1 // pred_fallthru
      _
    // Predicated region
    $region30: #{actor_forward.1} parent=1 // pred_check
      _
    $region31: #{actor_forward.1} parent=1 // pred_check_branch
      %85 = sbr.rel (0) target = $region33
    $region32: #{actor_forward.1} parent=1 // pred_region
      %86 = dma.done [#allocation3], 1344
    $region33: #{actor_forward.1} parent=1 // pred_fallthru
      _
    // Predicated region
    $region34: #{actor_forward.1} parent=1 // pred_check
      _
    $region35: #{actor_forward.1} parent=1 // pred_check_branch
      %88 = sbr.rel (0) target = $region37
    $region36: #{actor_forward.1} parent=1 // pred_region
      %89 = dma.done [#allocation5], 112
    $region37: #{actor_forward.1} parent=1 // pred_fallthru
      _
    // Predicated region
    $region38: #{actor_forward.1} parent=1 // pred_check
      _
    $region39: #{actor_forward.1} parent=1 // pred_check_branch
      %91 = sbr.rel (0) target = $region41
    $region40: #{actor_forward.1} parent=1 // pred_region
      %92 = dma.done [#allocation5], 35840
    $region41: #{actor_forward.1} parent=1 // pred_fallthru
      _
    // Predicated region
    $region42: #{actor_forward.1} parent=1 // pred_check
      _
    $region43: #{actor_forward.1} parent=1 // pred_check_branch
      %94 = sbr.rel (0) target = $region45
    $region44: #{actor_forward.1} parent=1 // pred_region
      %95 = dma.done [#allocation8], 80
    $region45: #{actor_forward.1} parent=1 // pred_fallthru
      _
    // Predicated region
    $region46: #{actor_forward.1} parent=1 // pred_check
      _
    $region47: #{actor_forward.1} parent=1 // pred_check_branch
      %97 = sbr.rel (0) target = $region49
    $region48: #{actor_forward.1} parent=1 // pred_region
      %98 = dma.done [#allocation8], 5120
    $region49: #{actor_forward.1} parent=1 // pred_fallthru
      _
    // Predicated region
    $region50: #{actor_forward.1} parent=1 // pred_check
      _
    $region51: #{actor_forward.1} parent=1 // pred_check_branch
      %100 = sbr.rel (0) target = $region53
    $region52: #{actor_forward.1} parent=1 // pred_region
      %101 = dma.done [#allocation11], 16
    $region53: #{actor_forward.1} parent=1 // pred_fallthru
      _
    %v102 = vld [vmem:[%s0] sm:$0xff]
    %v103 = vld [vmem:[%s0 + $0x8] sm:$0xff]
    %v104 = vld [vmem:[%s0 + $0x10] sm:$0xff]
    %v105 = vld [vmem:[%s0 + $0x18] sm:$0xff]
    %v106 = vld [vmem:[%s0 + $0x20] sm:$0xff]
    %v107 = vld [vmem:[%s0 + $0x28] sm:$0xff]
    %v108 = vld [vmem:[%s0 + $0x30] sm:$0xff]
    %v109 = vld [vmem:[%s0 + $0x38] sm:$0xff]
    %v110 = vld [vmem:[%s0 + $0x40] sm:$0xff]
    %v111 = vld [vmem:[%s0 + $0x48] sm:$0xff]
    %v112 = vld [vmem:[%s0 + $0x50] sm:$0xff]
    %v113 = vld [vmem:[%s0 + $0x58] sm:$0xff]
    %v114 = vld [vmem:[%s0 + $0x60] sm:$0xff]
    %v115 = vld [vmem:[%s0 + $0x68] sm:$0xff]
    %v116 = vld [vmem:[%s0 + $0x70] sm:$0xff]
    %v117 = vld [vmem:[%s0 + $0x78] sm:$0xff]
    %v118 = vld [vmem:[#allocation2] sm:$0xff]
    %v119 = vld [vmem:[#allocation2 + $0x8] sm:$0xff]
    %v120 = vld [vmem:[#allocation2 + $0x10] sm:$0xff]
    %v121 = vld [vmem:[#allocation2 + $0x18] sm:$0xf]
    %v122 = vld [vmem:[#allocation2 + $0x1c] sm:$0xff]
    %v123 = vld [vmem:[#allocation2 + $0x24] sm:$0xff]
    %v124 = vld [vmem:[#allocation2 + $0x2c] sm:$0xff]
    %v125 = vld [vmem:[#allocation2 + $0x34] sm:$0xf]
    %v126 = vld [vmem:[#allocation2 + $0x38] sm:$0xff]
    %v127 = vld [vmem:[#allocation2 + $0x40] sm:$0xff]
    %v128 = vld [vmem:[#allocation2 + $0x48] sm:$0xff]
    %v129 = vld [vmem:[#allocation2 + $0x50] sm:$0xf]
    %v130 = vunpack.c.l.bf16 %v118
    %v131 = vunpack.c.h.bf16 %v118
    %v132 = vunpack.c.l.bf16 %v119
    %v133 = vunpack.c.h.bf16 %v119
    %v134 = vunpack.c.l.bf16 %v120
    %v135 = vunpack.c.h.bf16 %v120
    %v136 = vunpack.c.l.bf16 %v121
    %v137 = vunpack.c.l.bf16 %v122
    %v138 = vunpack.c.h.bf16 %v122
    %v139 = vunpack.c.l.bf16 %v123
    %v140 = vunpack.c.h.bf16 %v123
    %v141 = vunpack.c.l.bf16 %v124
    %v142 = vunpack.c.h.bf16 %v124
    %v143 = vunpack.c.l.bf16 %v125
    %v144 = vunpack.c.l.bf16 %v126
    %v145 = vunpack.c.h.bf16 %v126
    %v146 = vunpack.c.l.bf16 %v127
    %v147 = vunpack.c.h.bf16 %v127
    %v148 = vunpack.c.l.bf16 %v128
    %v149 = vunpack.c.h.bf16 %v128
    %v150 = vunpack.c.l.bf16 %v129
    %v151 = vld [vmem:[#allocation4] sm:$0xff]
    %v153 = vlaneseq
    %v154 = vshrl.u32 %v153, 7
    %v155 = vsub.s32 0, %v154
    %v156 = vrot.slane %v151, %v155
    %v157 = vlaneseq
    %v158 = vshrl.u32 %v157, 7
    %v159 = vsub.s32 1, %v158
    %v160 = vrot.slane %v151, %v159
    %v161 = vlaneseq
    %v162 = vshrl.u32 %v161, 7
    %v163 = vsub.s32 2, %v162
    %v164 = vrot.slane %v151, %v163
    %v165 = vlaneseq
    %v166 = vshrl.u32 %v165, 7
    %v167 = vsub.s32 3, %v166
    %v168 = vrot.slane %v151, %v167
    %v169 = vlaneseq
    %v170 = vshrl.u32 %v169, 7
    %v171 = vsub.s32 4, %v170
    %v172 = vrot.slane %v151, %v171
    %v173 = vlaneseq
    %v174 = vshrl.u32 %v173, 7
    %v175 = vsub.s32 5, %v174
    %v176 = vrot.slane %v151, %v175
    %v177 = vlaneseq
    %v178 = vshrl.u32 %v177, 7
    %v179 = vsub.s32 6, %v178
    %v180 = vrot.slane %v151, %v179
    %vm188 = vcmask 195584
    %v190 = vsel %vm188, %v102, 0
    %v193 = vsel %vm188, %v103, 0
    %v196 = vsel %vm188, %v104, 0
    %v199 = vsel %vm188, %v105, 0
    %v202 = vsel %vm188, %v106, 0
    %v205 = vsel %vm188, %v107, 0
    %v208 = vsel %vm188, %v108, 0
    %v211 = vsel %vm188, %v109, 0
    %v214 = vsel %vm188, %v110, 0
    %v217 = vsel %vm188, %v111, 0
    %v220 = vsel %vm188, %v112, 0
    %v223 = vsel %vm188, %v113, 0
    %v226 = vsel %vm188, %v114, 0
    %v229 = vsel %vm188, %v115, 0
    %v232 = vsel %vm188, %v116, 0
    %v235 = vsel %vm188, %v117, 0
    %237 = vmatprep.subr.mxu0 0.0
    %238 = vmatpush1.msra.mxu0 0.0
    %239 = vmatprep.subr.mxu0 0.0
    %240 = vmatpush1.msra.mxu0 0.0
    %241 = vmatprep.subr.mxu0 0.0
    %242 = vmatpush1.msra.mxu0 0.0
    %243 = vmatprep.subr.mxu0 0.0
    %244 = vmatpush1.msra.mxu0 0.0
    %245 = vmatprep.subr.mxu0 0.0
    %246 = vmatpush1.msra.mxu0 0.0
    %247 = vmatprep.subr.mxu0 0.0
    %248 = vmatpush1.msra.mxu0 0.0
    %249 = vmatprep.subr.mxu0 0.0
    %250 = vmatpush1.msra.mxu0 0.0
    %251 = vmatprep.subr.mxu0 0.0
    %252 = vmatpush1.msra.mxu0 0.0
    %253 = vmatprep.subr.mxu0 0.0
    %254 = vmatpush1.msra.mxu0 0.0
    %255 = vmatprep.subr.mxu0 0.0
    %256 = vmatpush1.msra.mxu0 0.0
    %257 = vmatprep.subr.mxu0 0.0
    %258 = vmatpush1.msra.mxu0 0.0
    %259 = vmatprep.subr.mxu0 0.0
    %260 = vmatpush1.msra.mxu0 0.0
    %261 = vmatprep.subr.mxu0 0.0
    %262 = vmatpush1.msra.mxu0 0.0
    %263 = vmatprep.subr.mxu0 %v145
    %264 = vmatpush1.msra.mxu0 %v144
    %265 = vmatprep.subr.mxu0 %v138
    %266 = vmatpush1.msra.mxu0 %v137
    %267 = vmatprep.subr.mxu0 %v131
    %268 = vmatpush1.msra.mxu0 %v130
    %269 = vmatprep.subr.mxu0 0.0
    %270 = vmatpush2.msra.mxu0 0.0
    %271 = vmatprep.subr.mxu0 0.0
    %272 = vmatpush2.msra.mxu0 0.0
    %273 = vmatprep.subr.mxu0 0.0
    %274 = vmatpush2.msra.mxu0 0.0
    %275 = vmatprep.subr.mxu0 0.0
    %276 = vmatpush2.msra.mxu0 0.0
    %277 = vmatprep.subr.mxu0 0.0
    %278 = vmatpush2.msra.mxu0 0.0
    %279 = vmatprep.subr.mxu0 0.0
    %280 = vmatpush2.msra.mxu0 0.0
    %281 = vmatprep.subr.mxu0 0.0
    %282 = vmatpush2.msra.mxu0 0.0
    %283 = vmatprep.subr.mxu0 0.0
    %284 = vmatpush2.msra.mxu0 0.0
    %285 = vmatprep.subr.mxu0 0.0
    %286 = vmatpush2.msra.mxu0 0.0
    %287 = vmatprep.subr.mxu0 0.0
    %288 = vmatpush2.msra.mxu0 0.0
    %289 = vmatprep.subr.mxu0 0.0
    %290 = vmatpush2.msra.mxu0 0.0
    %291 = vmatprep.subr.mxu0 0.0
    %292 = vmatpush2.msra.mxu0 0.0
    %293 = vmatprep.subr.mxu0 0.0
    %294 = vmatpush2.msra.mxu0 0.0
    %295 = vmatprep.subr.mxu0 0.0
    %296 = vmatpush2.msra.mxu0 0.0
    %297 = vmatprep.subr.mxu0 0.0
    %298 = vmatpush2.msra.mxu0 0.0
    %299 = vmatprep.subr.mxu0 0.0
    %300 = vmatpush2.msra.mxu0 0.0
    %301 = vmatprep.mubr.f32.mxu0 0.0
    %302 = vmatmul.mubr.f32.gmra.mxu0 %v190
    %v303 = vpop.f32.mrf.mxu0
    %v304 = vadd.f32 %v156, %v303
    %v305 = vpop.f32.mrf.mxu0
    %v306 = vadd.f32 %v160, %v305
    %307 = vmatprep.mubr.f32.mxu0 0.0
    %308 = vmatmul.mubr.f32.gmra.mxu0 %v193
    %v309 = vpop.f32.mrf.mxu0
    %v310 = vadd.f32 %v156, %v309
    %v311 = vpop.f32.mrf.mxu0
    %v312 = vadd.f32 %v160, %v311
    %313 = vmatprep.mubr.f32.mxu0 0.0
    %314 = vmatmul.mubr.f32.gmra.mxu0 %v196
    %v315 = vpop.f32.mrf.mxu0
    %v316 = vadd.f32 %v156, %v315
    %v317 = vpop.f32.mrf.mxu0
    %v318 = vadd.f32 %v160, %v317
    %319 = vmatprep.mubr.f32.mxu0 0.0
    %320 = vmatmul.mubr.f32.gmra.mxu0 %v199
    %v321 = vpop.f32.mrf.mxu0
    %v322 = vadd.f32 %v156, %v321
    %v323 = vpop.f32.mrf.mxu0
    %v324 = vadd.f32 %v160, %v323
    %325 = vmatprep.mubr.f32.mxu0 0.0
    %326 = vmatmul.mubr.f32.gmra.mxu0 %v202
    %v327 = vpop.f32.mrf.mxu0
    %v328 = vadd.f32 %v156, %v327
    %v329 = vpop.f32.mrf.mxu0
    %v330 = vadd.f32 %v160, %v329
    %331 = vmatprep.mubr.f32.mxu0 0.0
    %332 = vmatmul.mubr.f32.gmra.mxu0 %v205
    %v333 = vpop.f32.mrf.mxu0
    %v334 = vadd.f32 %v156, %v333
    %v335 = vpop.f32.mrf.mxu0
    %v336 = vadd.f32 %v160, %v335
    %337 = vmatprep.mubr.f32.mxu0 0.0
    %338 = vmatmul.mubr.f32.gmra.mxu0 %v208
    %v339 = vpop.f32.mrf.mxu0
    %v340 = vadd.f32 %v156, %v339
    %v341 = vpop.f32.mrf.mxu0
    %v342 = vadd.f32 %v160, %v341
    %343 = vmatprep.mubr.f32.mxu0 0.0
    %344 = vmatmul.mubr.f32.gmra.mxu0 %v211
    %v345 = vpop.f32.mrf.mxu0
    %v346 = vadd.f32 %v156, %v345
    %v347 = vpop.f32.mrf.mxu0
    %v348 = vadd.f32 %v160, %v347
    %349 = vmatprep.mubr.f32.mxu0 0.0
    %350 = vmatmul.mubr.f32.gmra.mxu0 %v214
    %v351 = vpop.f32.mrf.mxu0
    %v352 = vadd.f32 %v156, %v351
    %v353 = vpop.f32.mrf.mxu0
    %v354 = vadd.f32 %v160, %v353
    %355 = vmatprep.mubr.f32.mxu0 0.0
    %356 = vmatmul.mubr.f32.gmra.mxu0 %v217
    %v357 = vpop.f32.mrf.mxu0
    %v358 = vadd.f32 %v156, %v357
    %v359 = vpop.f32.mrf.mxu0
    %v360 = vadd.f32 %v160, %v359
    %361 = vmatprep.mubr.f32.mxu0 0.0
    %362 = vmatmul.mubr.f32.gmra.mxu0 %v220
    %v363 = vpop.f32.mrf.mxu0
    %v364 = vadd.f32 %v156, %v363
    %v365 = vpop.f32.mrf.mxu0
    %v366 = vadd.f32 %v160, %v365
    %367 = vmatprep.mubr.f32.mxu0 0.0
    %368 = vmatmul.mubr.f32.gmra.mxu0 %v223
    %v369 = vpop.f32.mrf.mxu0
    %v370 = vadd.f32 %v156, %v369
    %v371 = vpop.f32.mrf.mxu0
    %v372 = vadd.f32 %v160, %v371
    %373 = vmatprep.mubr.f32.mxu0 0.0
    %374 = vmatmul.mubr.f32.gmra.mxu0 %v226
    %v375 = vpop.f32.mrf.mxu0
    %v376 = vadd.f32 %v156, %v375
    %v377 = vpop.f32.mrf.mxu0
    %v378 = vadd.f32 %v160, %v377
    %379 = vmatprep.mubr.f32.mxu0 0.0
    %380 = vmatmul.mubr.f32.gmra.mxu0 %v229
    %v381 = vpop.f32.mrf.mxu0
    %v382 = vadd.f32 %v156, %v381
    %v383 = vpop.f32.mrf.mxu0
    %v384 = vadd.f32 %v160, %v383
    %385 = vmatprep.mubr.f32.mxu0 0.0
    %386 = vmatmul.mubr.f32.gmra.mxu0 %v232
    %v387 = vpop.f32.mrf.mxu0
    %v388 = vadd.f32 %v156, %v387
    %v389 = vpop.f32.mrf.mxu0
    %v390 = vadd.f32 %v160, %v389
    %391 = vmatprep.mubr.f32.mxu0 0.0
    %392 = vmatmul.mubr.f32.gmra.mxu0 %v235
    %v393 = vpop.f32.mrf.mxu0
    %v394 = vadd.f32 %v156, %v393
    %v395 = vpop.f32.mrf.mxu0
    %v396 = vadd.f32 %v160, %v395
    %397 = vdwg.mxu0
    %398 = vmatprep.subr.mxu0 0.0
    %399 = vmatpush1.msra.mxu0 0.0
    %400 = vmatprep.subr.mxu0 0.0
    %401 = vmatpush1.msra.mxu0 0.0
    %402 = vmatprep.subr.mxu0 0.0
    %403 = vmatpush1.msra.mxu0 0.0
    %404 = vmatprep.subr.mxu0 0.0
    %405 = vmatpush1.msra.mxu0 0.0
    %406 = vmatprep.subr.mxu0 0.0
    %407 = vmatpush1.msra.mxu0 0.0
    %408 = vmatprep.subr.mxu0 0.0
    %409 = vmatpush1.msra.mxu0 0.0
    %410 = vmatprep.subr.mxu0 0.0
    %411 = vmatpush1.msra.mxu0 0.0
    %412 = vmatprep.subr.mxu0 0.0
    %413 = vmatpush1.msra.mxu0 0.0
    %414 = vmatprep.subr.mxu0 0.0
    %415 = vmatpush1.msra.mxu0 0.0
    %416 = vmatprep.subr.mxu0 0.0
    %417 = vmatpush1.msra.mxu0 0.0
    %418 = vmatprep.subr.mxu0 0.0
    %419 = vmatpush1.msra.mxu0 0.0
    %420 = vmatprep.subr.mxu0 0.0
    %421 = vmatpush1.msra.mxu0 0.0
    %422 = vmatprep.subr.mxu0 0.0
    %423 = vmatpush1.msra.mxu0 0.0
    %424 = vmatprep.subr.mxu0 %v147
    %425 = vmatpush1.msra.mxu0 %v146
    %426 = vmatprep.subr.mxu0 %v140
    %427 = vmatpush1.msra.mxu0 %v139
    %428 = vmatprep.subr.mxu0 %v133
    %429 = vmatpush1.msra.mxu0 %v132
    %430 = vmatprep.subr.mxu0 0.0
    %431 = vmatpush2.msra.mxu0 0.0
    %432 = vmatprep.subr.mxu0 0.0
    %433 = vmatpush2.msra.mxu0 0.0
    %434 = vmatprep.subr.mxu0 0.0
    %435 = vmatpush2.msra.mxu0 0.0
    %436 = vmatprep.subr.mxu0 0.0
    %437 = vmatpush2.msra.mxu0 0.0
    %438 = vmatprep.subr.mxu0 0.0
    %439 = vmatpush2.msra.mxu0 0.0
    %440 = vmatprep.subr.mxu0 0.0
    %441 = vmatpush2.msra.mxu0 0.0
    %442 = vmatprep.subr.mxu0 0.0
    %443 = vmatpush2.msra.mxu0 0.0
    %444 = vmatprep.subr.mxu0 0.0
    %445 = vmatpush2.msra.mxu0 0.0
    %446 = vmatprep.subr.mxu0 0.0
    %447 = vmatpush2.msra.mxu0 0.0
    %448 = vmatprep.subr.mxu0 0.0
    %449 = vmatpush2.msra.mxu0 0.0
    %450 = vmatprep.subr.mxu0 0.0
    %451 = vmatpush2.msra.mxu0 0.0
    %452 = vmatprep.subr.mxu0 0.0
    %453 = vmatpush2.msra.mxu0 0.0
    %454 = vmatprep.subr.mxu0 0.0
    %455 = vmatpush2.msra.mxu0 0.0
    %456 = vmatprep.subr.mxu0 0.0
    %457 = vmatpush2.msra.mxu0 0.0
    %458 = vmatprep.subr.mxu0 0.0
    %459 = vmatpush2.msra.mxu0 0.0
    %460 = vmatprep.subr.mxu0 0.0
    %461 = vmatpush2.msra.mxu0 0.0
    %462 = vmatprep.mubr.f32.mxu0 0.0
    %463 = vmatmul.mubr.f32.gmra.mxu0 %v190
    %v464 = vpop.f32.mrf.mxu0
    %v465 = vadd.f32 %v164, %v464
    %v466 = vpop.f32.mrf.mxu0
    %v467 = vadd.f32 %v168, %v466
    %468 = vmatprep.mubr.f32.mxu0 0.0
    %469 = vmatmul.mubr.f32.gmra.mxu0 %v193
    %v470 = vpop.f32.mrf.mxu0
    %v471 = vadd.f32 %v164, %v470
    %v472 = vpop.f32.mrf.mxu0
    %v473 = vadd.f32 %v168, %v472
    %474 = vmatprep.mubr.f32.mxu0 0.0
    %475 = vmatmul.mubr.f32.gmra.mxu0 %v196
    %v476 = vpop.f32.mrf.mxu0
    %v477 = vadd.f32 %v164, %v476
    %v478 = vpop.f32.mrf.mxu0
    %v479 = vadd.f32 %v168, %v478
    %480 = vmatprep.mubr.f32.mxu0 0.0
    %481 = vmatmul.mubr.f32.gmra.mxu0 %v199
    %v482 = vpop.f32.mrf.mxu0
    %v483 = vadd.f32 %v164, %v482
    %v484 = vpop.f32.mrf.mxu0
    %v485 = vadd.f32 %v168, %v484
    %486 = vmatprep.mubr.f32.mxu0 0.0
    %487 = vmatmul.mubr.f32.gmra.mxu0 %v202
    %v488 = vpop.f32.mrf.mxu0
    %v489 = vadd.f32 %v164, %v488
    %v490 = vpop.f32.mrf.mxu0
    %v491 = vadd.f32 %v168, %v490
    %492 = vmatprep.mubr.f32.mxu0 0.0
    %493 = vmatmul.mubr.f32.gmra.mxu0 %v205
    %v494 = vpop.f32.mrf.mxu0
    %v495 = vadd.f32 %v164, %v494
    %v496 = vpop.f32.mrf.mxu0
    %v497 = vadd.f32 %v168, %v496
    %498 = vmatprep.mubr.f32.mxu0 0.0
    %499 = vmatmul.mubr.f32.gmra.mxu0 %v208
    %v500 = vpop.f32.mrf.mxu0
    %v501 = vadd.f32 %v164, %v500
    %v502 = vpop.f32.mrf.mxu0
    %v503 = vadd.f32 %v168, %v502
    %504 = vmatprep.mubr.f32.mxu0 0.0
    %505 = vmatmul.mubr.f32.gmra.mxu0 %v211
    %v506 = vpop.f32.mrf.mxu0
    %v507 = vadd.f32 %v164, %v506
    %v508 = vpop.f32.mrf.mxu0
    %v509 = vadd.f32 %v168, %v508
    %510 = vmatprep.mubr.f32.mxu0 0.0
    %511 = vmatmul.mubr.f32.gmra.mxu0 %v214
    %v512 = vpop.f32.mrf.mxu0
    %v513 = vadd.f32 %v164, %v512
    %v514 = vpop.f32.mrf.mxu0
    %v515 = vadd.f32 %v168, %v514
    %516 = vmatprep.mubr.f32.mxu0 0.0
    %517 = vmatmul.mubr.f32.gmra.mxu0 %v217
    %v518 = vpop.f32.mrf.mxu0
    %v519 = vadd.f32 %v164, %v518
    %v520 = vpop.f32.mrf.mxu0
    %v521 = vadd.f32 %v168, %v520
    %522 = vmatprep.mubr.f32.mxu0 0.0
    %523 = vmatmul.mubr.f32.gmra.mxu0 %v220
    %v524 = vpop.f32.mrf.mxu0
    %v525 = vadd.f32 %v164, %v524
    %v526 = vpop.f32.mrf.mxu0
    %v527 = vadd.f32 %v168, %v526
    %528 = vmatprep.mubr.f32.mxu0 0.0
    %529 = vmatmul.mubr.f32.gmra.mxu0 %v223
    %v530 = vpop.f32.mrf.mxu0
    %v531 = vadd.f32 %v164, %v530
    %v532 = vpop.f32.mrf.mxu0
    %v533 = vadd.f32 %v168, %v532
    %534 = vmatprep.mubr.f32.mxu0 0.0
    %535 = vmatmul.mubr.f32.gmra.mxu0 %v226
    %v536 = vpop.f32.mrf.mxu0
    %v537 = vadd.f32 %v164, %v536
    %v538 = vpop.f32.mrf.mxu0
    %v539 = vadd.f32 %v168, %v538
    %540 = vmatprep.mubr.f32.mxu0 0.0
    %541 = vmatmul.mubr.f32.gmra.mxu0 %v229
    %v542 = vpop.f32.mrf.mxu0
    %v543 = vadd.f32 %v164, %v542
    %v544 = vpop.f32.mrf.mxu0
    %v545 = vadd.f32 %v168, %v544
    %546 = vmatprep.mubr.f32.mxu0 0.0
    %547 = vmatmul.mubr.f32.gmra.mxu0 %v232
    %v548 = vpop.f32.mrf.mxu0
    %v549 = vadd.f32 %v164, %v548
    %v550 = vpop.f32.mrf.mxu0
    %v551 = vadd.f32 %v168, %v550
    %552 = vmatprep.mubr.f32.mxu0 0.0
    %553 = vmatmul.mubr.f32.gmra.mxu0 %v235
    %v554 = vpop.f32.mrf.mxu0
    %v555 = vadd.f32 %v164, %v554
    %v556 = vpop.f32.mrf.mxu0
    %v557 = vadd.f32 %v168, %v556
    %558 = vdwg.mxu0
    %559 = vmatprep.subr.mxu0 0.0
    %560 = vmatpush1.msra.mxu0 0.0
    %561 = vmatprep.subr.mxu0 0.0
    %562 = vmatpush1.msra.mxu0 0.0
    %563 = vmatprep.subr.mxu0 0.0
    %564 = vmatpush1.msra.mxu0 0.0
    %565 = vmatprep.subr.mxu0 0.0
    %566 = vmatpush1.msra.mxu0 0.0
    %567 = vmatprep.subr.mxu0 0.0
    %568 = vmatpush1.msra.mxu0 0.0
    %569 = vmatprep.subr.mxu0 0.0
    %570 = vmatpush1.msra.mxu0 0.0
    %571 = vmatprep.subr.mxu0 0.0
    %572 = vmatpush1.msra.mxu0 0.0
    %573 = vmatprep.subr.mxu0 0.0
    %574 = vmatpush1.msra.mxu0 0.0
    %575 = vmatprep.subr.mxu0 0.0
    %576 = vmatpush1.msra.mxu0 0.0
    %577 = vmatprep.subr.mxu0 0.0
    %578 = vmatpush1.msra.mxu0 0.0
    %579 = vmatprep.subr.mxu0 0.0
    %580 = vmatpush1.msra.mxu0 0.0
    %581 = vmatprep.subr.mxu0 0.0
    %582 = vmatpush1.msra.mxu0 0.0
    %583 = vmatprep.subr.mxu0 0.0
    %584 = vmatpush1.msra.mxu0 0.0
    %585 = vmatprep.subr.mxu0 %v149
    %586 = vmatpush1.msra.mxu0 %v148
    %587 = vmatprep.subr.mxu0 %v142
    %588 = vmatpush1.msra.mxu0 %v141
    %589 = vmatprep.subr.mxu0 %v135
    %590 = vmatpush1.msra.mxu0 %v134
    %591 = vmatprep.subr.mxu0 0.0
    %592 = vmatpush2.msra.mxu0 0.0
    %593 = vmatprep.subr.mxu0 0.0
    %594 = vmatpush2.msra.mxu0 0.0
    %595 = vmatprep.subr.mxu0 0.0
    %596 = vmatpush2.msra.mxu0 0.0
    %597 = vmatprep.subr.mxu0 0.0
    %598 = vmatpush2.msra.mxu0 0.0
    %599 = vmatprep.subr.mxu0 0.0
    %600 = vmatpush2.msra.mxu0 0.0
    %601 = vmatprep.subr.mxu0 0.0
    %602 = vmatpush2.msra.mxu0 0.0
    %603 = vmatprep.subr.mxu0 0.0
    %604 = vmatpush2.msra.mxu0 0.0
    %605 = vmatprep.subr.mxu0 0.0
    %606 = vmatpush2.msra.mxu0 0.0
    %607 = vmatprep.subr.mxu0 0.0
    %608 = vmatpush2.msra.mxu0 0.0
    %609 = vmatprep.subr.mxu0 0.0
    %610 = vmatpush2.msra.mxu0 0.0
    %611 = vmatprep.subr.mxu0 0.0
    %612 = vmatpush2.msra.mxu0 0.0
    %613 = vmatprep.subr.mxu0 0.0
    %614 = vmatpush2.msra.mxu0 0.0
    %615 = vmatprep.subr.mxu0 0.0
    %616 = vmatpush2.msra.mxu0 0.0
    %617 = vmatprep.subr.mxu0 0.0
    %618 = vmatpush2.msra.mxu0 0.0
    %619 = vmatprep.subr.mxu0 0.0
    %620 = vmatpush2.msra.mxu0 0.0
    %621 = vmatprep.subr.mxu0 0.0
    %622 = vmatpush2.msra.mxu0 0.0
    %623 = vmatprep.mubr.f32.mxu0 0.0
    %624 = vmatmul.mubr.f32.gmra.mxu0 %v190
    %v625 = vpop.f32.mrf.mxu0
    %v626 = vadd.f32 %v172, %v625
    %v627 = vpop.f32.mrf.mxu0
    %v628 = vadd.f32 %v176, %v627
    %629 = vmatprep.mubr.f32.mxu0 0.0
    %630 = vmatmul.mubr.f32.gmra.mxu0 %v193
    %v631 = vpop.f32.mrf.mxu0
    %v632 = vadd.f32 %v172, %v631
    %v633 = vpop.f32.mrf.mxu0
    %v634 = vadd.f32 %v176, %v633
    %635 = vmatprep.mubr.f32.mxu0 0.0
    %636 = vmatmul.mubr.f32.gmra.mxu0 %v196
    %v637 = vpop.f32.mrf.mxu0
    %v638 = vadd.f32 %v172, %v637
    %v639 = vpop.f32.mrf.mxu0
    %v640 = vadd.f32 %v176, %v639
    %641 = vmatprep.mubr.f32.mxu0 0.0
    %642 = vmatmul.mubr.f32.gmra.mxu0 %v199
    %v643 = vpop.f32.mrf.mxu0
    %v644 = vadd.f32 %v172, %v643
    %v645 = vpop.f32.mrf.mxu0
    %v646 = vadd.f32 %v176, %v645
    %647 = vmatprep.mubr.f32.mxu0 0.0
    %648 = vmatmul.mubr.f32.gmra.mxu0 %v202
    %v649 = vpop.f32.mrf.mxu0
    %v650 = vadd.f32 %v172, %v649
    %v651 = vpop.f32.mrf.mxu0
    %v652 = vadd.f32 %v176, %v651
    %653 = vmatprep.mubr.f32.mxu0 0.0
    %654 = vmatmul.mubr.f32.gmra.mxu0 %v205
    %v655 = vpop.f32.mrf.mxu0
    %v656 = vadd.f32 %v172, %v655
    %v657 = vpop.f32.mrf.mxu0
    %v658 = vadd.f32 %v176, %v657
    %659 = vmatprep.mubr.f32.mxu0 0.0
    %660 = vmatmul.mubr.f32.gmra.mxu0 %v208
    %v661 = vpop.f32.mrf.mxu0
    %v662 = vadd.f32 %v172, %v661
    %v663 = vpop.f32.mrf.mxu0
    %v664 = vadd.f32 %v176, %v663
    %665 = vmatprep.mubr.f32.mxu0 0.0
    %666 = vmatmul.mubr.f32.gmra.mxu0 %v211
    %v667 = vpop.f32.mrf.mxu0
    %v668 = vadd.f32 %v172, %v667
    %v669 = vpop.f32.mrf.mxu0
    %v670 = vadd.f32 %v176, %v669
    %671 = vmatprep.mubr.f32.mxu0 0.0
    %672 = vmatmul.mubr.f32.gmra.mxu0 %v214
    %v673 = vpop.f32.mrf.mxu0
    %v674 = vadd.f32 %v172, %v673
    %v675 = vpop.f32.mrf.mxu0
    %v676 = vadd.f32 %v176, %v675
    %677 = vmatprep.mubr.f32.mxu0 0.0
    %678 = vmatmul.mubr.f32.gmra.mxu0 %v217
    %v679 = vpop.f32.mrf.mxu0
    %v680 = vadd.f32 %v172, %v679
    %v681 = vpop.f32.mrf.mxu0
    %v682 = vadd.f32 %v176, %v681
    %683 = vmatprep.mubr.f32.mxu0 0.0
    %684 = vmatmul.mubr.f32.gmra.mxu0 %v220
    %v685 = vpop.f32.mrf.mxu0
    %v686 = vadd.f32 %v172, %v685
    %v687 = vpop.f32.mrf.mxu0
    %v688 = vadd.f32 %v176, %v687
    %689 = vmatprep.mubr.f32.mxu0 0.0
    %690 = vmatmul.mubr.f32.gmra.mxu0 %v223
    %v691 = vpop.f32.mrf.mxu0
    %v692 = vadd.f32 %v172, %v691
    %v693 = vpop.f32.mrf.mxu0
    %v694 = vadd.f32 %v176, %v693
    %695 = vmatprep.mubr.f32.mxu0 0.0
    %696 = vmatmul.mubr.f32.gmra.mxu0 %v226
    %v697 = vpop.f32.mrf.mxu0
    %v698 = vadd.f32 %v172, %v697
    %v699 = vpop.f32.mrf.mxu0
    %v700 = vadd.f32 %v176, %v699
    %701 = vmatprep.mubr.f32.mxu0 0.0
    %702 = vmatmul.mubr.f32.gmra.mxu0 %v229
    %v703 = vpop.f32.mrf.mxu0
    %v704 = vadd.f32 %v172, %v703
    %v705 = vpop.f32.mrf.mxu0
    %v706 = vadd.f32 %v176, %v705
    %707 = vmatprep.mubr.f32.mxu0 0.0
    %708 = vmatmul.mubr.f32.gmra.mxu0 %v232
    %v709 = vpop.f32.mrf.mxu0
    %v710 = vadd.f32 %v172, %v709
    %v711 = vpop.f32.mrf.mxu0
    %v712 = vadd.f32 %v176, %v711
    %713 = vmatprep.mubr.f32.mxu0 0.0
    %714 = vmatmul.mubr.f32.gmra.mxu0 %v235
    %v715 = vpop.f32.mrf.mxu0
    %v716 = vadd.f32 %v172, %v715
    %v717 = vpop.f32.mrf.mxu0
    %v718 = vadd.f32 %v176, %v717
    %719 = vdwg.mxu0
    %720 = vmatprep.subr.mxu0 0.0
    %721 = vmatpush1.msra.mxu0 0.0
    %722 = vmatprep.subr.mxu0 0.0
    %723 = vmatpush1.msra.mxu0 0.0
    %724 = vmatprep.subr.mxu0 0.0
    %725 = vmatpush1.msra.mxu0 0.0
    %726 = vmatprep.subr.mxu0 0.0
    %727 = vmatpush1.msra.mxu0 0.0
    %728 = vmatprep.subr.mxu0 0.0
    %729 = vmatpush1.msra.mxu0 0.0
    %730 = vmatprep.subr.mxu0 0.0
    %731 = vmatpush1.msra.mxu0 0.0
    %732 = vmatprep.subr.mxu0 0.0
    %733 = vmatpush1.msra.mxu0 0.0
    %734 = vmatprep.subr.mxu0 0.0
    %735 = vmatpush1.msra.mxu0 0.0
    %736 = vmatprep.subr.mxu0 0.0
    %737 = vmatpush1.msra.mxu0 0.0
    %738 = vmatprep.subr.mxu0 0.0
    %739 = vmatpush1.msra.mxu0 0.0
    %740 = vmatprep.subr.mxu0 0.0
    %741 = vmatpush1.msra.mxu0 0.0
    %742 = vmatprep.subr.mxu0 0.0
    %743 = vmatpush1.msra.mxu0 0.0
    %744 = vmatprep.subr.mxu0 0.0
    %745 = vmatpush1.msra.mxu0 0.0
    %746 = vmatprep.subr.mxu0 0.0
    %747 = vmatpush1.msra.mxu0 %v150
    %748 = vmatprep.subr.mxu0 0.0
    %749 = vmatpush1.msra.mxu0 %v143
    %750 = vmatprep.subr.mxu0 0.0
    %751 = vmatpush1.msra.mxu0 %v136
    %752 = vmatprep.subr.mxu0 0.0
    %753 = vmatpush2.msra.mxu0 0.0
    %754 = vmatprep.subr.mxu0 0.0
    %755 = vmatpush2.msra.mxu0 0.0
    %756 = vmatprep.subr.mxu0 0.0
    %757 = vmatpush2.msra.mxu0 0.0
    %758 = vmatprep.subr.mxu0 0.0
    %759 = vmatpush2.msra.mxu0 0.0
    %760 = vmatprep.subr.mxu0 0.0
    %761 = vmatpush2.msra.mxu0 0.0
    %762 = vmatprep.subr.mxu0 0.0
    %763 = vmatpush2.msra.mxu0 0.0
    %764 = vmatprep.subr.mxu0 0.0
    %765 = vmatpush2.msra.mxu0 0.0
    %766 = vmatprep.subr.mxu0 0.0
    %767 = vmatpush2.msra.mxu0 0.0
    %768 = vmatprep.subr.mxu0 0.0
    %769 = vmatpush2.msra.mxu0 0.0
    %770 = vmatprep.subr.mxu0 0.0
    %771 = vmatpush2.msra.mxu0 0.0
    %772 = vmatprep.subr.mxu0 0.0
    %773 = vmatpush2.msra.mxu0 0.0
    %774 = vmatprep.subr.mxu0 0.0
    %775 = vmatpush2.msra.mxu0 0.0
    %776 = vmatprep.subr.mxu0 0.0
    %777 = vmatpush2.msra.mxu0 0.0
    %778 = vmatprep.subr.mxu0 0.0
    %779 = vmatpush2.msra.mxu0 0.0
    %780 = vmatprep.subr.mxu0 0.0
    %781 = vmatpush2.msra.mxu0 0.0
    %782 = vmatprep.subr.mxu0 0.0
    %783 = vmatpush2.msra.mxu0 0.0
    %784 = vmatprep.mubr.f32.mxu0 0.0
    %785 = vmatmul.mubr.f32.gmra.mxu0 %v190
    %v786 = vpop.f32.mrf.mxu0
    %v787 = vadd.f32 %v180, %v786
    %v788 = vpop.f32.mrf.mxu0
    %789 = vmatprep.mubr.f32.mxu0 0.0
    %790 = vmatmul.mubr.f32.gmra.mxu0 %v193
    %v791 = vpop.f32.mrf.mxu0
    %v792 = vadd.f32 %v180, %v791
    %v793 = vpop.f32.mrf.mxu0
    %794 = vmatprep.mubr.f32.mxu0 0.0
    %795 = vmatmul.mubr.f32.gmra.mxu0 %v196
    %v796 = vpop.f32.mrf.mxu0
    %v797 = vadd.f32 %v180, %v796
    %v798 = vpop.f32.mrf.mxu0
    %799 = vmatprep.mubr.f32.mxu0 0.0
    %800 = vmatmul.mubr.f32.gmra.mxu0 %v199
    %v801 = vpop.f32.mrf.mxu0
    %v802 = vadd.f32 %v180, %v801
    %v803 = vpop.f32.mrf.mxu0
    %804 = vmatprep.mubr.f32.mxu0 0.0
    %805 = vmatmul.mubr.f32.gmra.mxu0 %v202
    %v806 = vpop.f32.mrf.mxu0
    %v807 = vadd.f32 %v180, %v806
    %v808 = vpop.f32.mrf.mxu0
    %809 = vmatprep.mubr.f32.mxu0 0.0
    %810 = vmatmul.mubr.f32.gmra.mxu0 %v205
    %v811 = vpop.f32.mrf.mxu0
    %v812 = vadd.f32 %v180, %v811
    %v813 = vpop.f32.mrf.mxu0
    %814 = vmatprep.mubr.f32.mxu0 0.0
    %815 = vmatmul.mubr.f32.gmra.mxu0 %v208
    %v816 = vpop.f32.mrf.mxu0
    %v817 = vadd.f32 %v180, %v816
    %v818 = vpop.f32.mrf.mxu0
    %819 = vmatprep.mubr.f32.mxu0 0.0
    %820 = vmatmul.mubr.f32.gmra.mxu0 %v211
    %v821 = vpop.f32.mrf.mxu0
    %v822 = vadd.f32 %v180, %v821
    %v823 = vpop.f32.mrf.mxu0
    %824 = vmatprep.mubr.f32.mxu0 0.0
    %825 = vmatmul.mubr.f32.gmra.mxu0 %v214
    %v826 = vpop.f32.mrf.mxu0
    %v827 = vadd.f32 %v180, %v826
    %v828 = vpop.f32.mrf.mxu0
    %829 = vmatprep.mubr.f32.mxu0 0.0
    %830 = vmatmul.mubr.f32.gmra.mxu0 %v217
    %v831 = vpop.f32.mrf.mxu0
    %v832 = vadd.f32 %v180, %v831
    %v833 = vpop.f32.mrf.mxu0
    %834 = vmatprep.mubr.f32.mxu0 0.0
    %835 = vmatmul.mubr.f32.gmra.mxu0 %v220
    %v836 = vpop.f32.mrf.mxu0
    %v837 = vadd.f32 %v180, %v836
    %v838 = vpop.f32.mrf.mxu0
    %839 = vmatprep.mubr.f32.mxu0 0.0
    %840 = vmatmul.mubr.f32.gmra.mxu0 %v223
    %v841 = vpop.f32.mrf.mxu0
    %v842 = vadd.f32 %v180, %v841
    %v843 = vpop.f32.mrf.mxu0
    %844 = vmatprep.mubr.f32.mxu0 0.0
    %845 = vmatmul.mubr.f32.gmra.mxu0 %v226
    %v846 = vpop.f32.mrf.mxu0
    %v847 = vadd.f32 %v180, %v846
    %v848 = vpop.f32.mrf.mxu0
    %849 = vmatprep.mubr.f32.mxu0 0.0
    %850 = vmatmul.mubr.f32.gmra.mxu0 %v229
    %v851 = vpop.f32.mrf.mxu0
    %v852 = vadd.f32 %v180, %v851
    %v853 = vpop.f32.mrf.mxu0
    %854 = vmatprep.mubr.f32.mxu0 0.0
    %855 = vmatmul.mubr.f32.gmra.mxu0 %v232
    %v856 = vpop.f32.mrf.mxu0
    %v857 = vadd.f32 %v180, %v856
    %v858 = vpop.f32.mrf.mxu0
    %859 = vmatprep.mubr.f32.mxu0 0.0
    %860 = vmatmul.mubr.f32.gmra.mxu0 %v235
    %v861 = vpop.f32.mrf.mxu0
    %v862 = vadd.f32 %v180, %v861
    %v863 = vpop.f32.mrf.mxu0
    %864 = vdwg.mxu0
    %v865 = vmax.f32 %v304, 0.0
    %v866 = vmax.f32 %v306, 0.0
    %v867 = vmax.f32 %v465, 0.0
    %v868 = vmax.f32 %v467, 0.0
    %v869 = vmax.f32 %v626, 0.0
    %v870 = vmax.f32 %v628, 0.0
    %v871 = vmax.f32 %v787, 0.0
    %v872 = vmax.f32 %v310, 0.0
    %v873 = vmax.f32 %v312, 0.0
    %v874 = vmax.f32 %v471, 0.0
    %v875 = vmax.f32 %v473, 0.0
    %v876 = vmax.f32 %v632, 0.0
    %v877 = vmax.f32 %v634, 0.0
    %v878 = vmax.f32 %v792, 0.0
    %v879 = vmax.f32 %v316, 0.0
    %v880 = vmax.f32 %v318, 0.0
    %v881 = vmax.f32 %v477, 0.0
    %v882 = vmax.f32 %v479, 0.0
    %v883 = vmax.f32 %v638, 0.0
    %v884 = vmax.f32 %v640, 0.0
    %v885 = vmax.f32 %v797, 0.0
    %v886 = vmax.f32 %v322, 0.0
    %v887 = vmax.f32 %v324, 0.0
    %v888 = vmax.f32 %v483, 0.0
    %v889 = vmax.f32 %v485, 0.0
    %v890 = vmax.f32 %v644, 0.0
    %v891 = vmax.f32 %v646, 0.0
    %v892 = vmax.f32 %v802, 0.0
    %v893 = vmax.f32 %v328, 0.0
    %v894 = vmax.f32 %v330, 0.0
    %v895 = vmax.f32 %v489, 0.0
    %v896 = vmax.f32 %v491, 0.0
    %v897 = vmax.f32 %v650, 0.0
    %v898 = vmax.f32 %v652, 0.0
    %v899 = vmax.f32 %v807, 0.0
    %v900 = vmax.f32 %v334, 0.0
    %v901 = vmax.f32 %v336, 0.0
    %v902 = vmax.f32 %v495, 0.0
    %v903 = vmax.f32 %v497, 0.0
    %v904 = vmax.f32 %v656, 0.0
    %v905 = vmax.f32 %v658, 0.0
    %v906 = vmax.f32 %v812, 0.0
    %v907 = vmax.f32 %v340, 0.0
    %v908 = vmax.f32 %v342, 0.0
    %v909 = vmax.f32 %v501, 0.0
    %v910 = vmax.f32 %v503, 0.0
    %v911 = vmax.f32 %v662, 0.0
    %v912 = vmax.f32 %v664, 0.0
    %v913 = vmax.f32 %v817, 0.0
    %v914 = vmax.f32 %v346, 0.0
    %v915 = vmax.f32 %v348, 0.0
    %v916 = vmax.f32 %v507, 0.0
    %v917 = vmax.f32 %v509, 0.0
    %v918 = vmax.f32 %v668, 0.0
    %v919 = vmax.f32 %v670, 0.0
    %v920 = vmax.f32 %v822, 0.0
    %v921 = vmax.f32 %v352, 0.0
    %v922 = vmax.f32 %v354, 0.0
    %v923 = vmax.f32 %v513, 0.0
    %v924 = vmax.f32 %v515, 0.0
    %v925 = vmax.f32 %v674, 0.0
    %v926 = vmax.f32 %v676, 0.0
    %v927 = vmax.f32 %v827, 0.0
    %v928 = vmax.f32 %v358, 0.0
    %v929 = vmax.f32 %v360, 0.0
    %v930 = vmax.f32 %v519, 0.0
    %v931 = vmax.f32 %v521, 0.0
    %v932 = vmax.f32 %v680, 0.0
    %v933 = vmax.f32 %v682, 0.0
    %v934 = vmax.f32 %v832, 0.0
    %v935 = vmax.f32 %v364, 0.0
    %v936 = vmax.f32 %v366, 0.0
    %v937 = vmax.f32 %v525, 0.0
    %v938 = vmax.f32 %v527, 0.0
    %v939 = vmax.f32 %v686, 0.0
    %v940 = vmax.f32 %v688, 0.0
    %v941 = vmax.f32 %v837, 0.0
    %v942 = vmax.f32 %v370, 0.0
    %v943 = vmax.f32 %v372, 0.0
    %v944 = vmax.f32 %v531, 0.0
    %v945 = vmax.f32 %v533, 0.0
    %v946 = vmax.f32 %v692, 0.0
    %v947 = vmax.f32 %v694, 0.0
    %v948 = vmax.f32 %v842, 0.0
    %v949 = vmax.f32 %v376, 0.0
    %v950 = vmax.f32 %v378, 0.0
    %v951 = vmax.f32 %v537, 0.0
    %v952 = vmax.f32 %v539, 0.0
    %v953 = vmax.f32 %v698, 0.0
    %v954 = vmax.f32 %v700, 0.0
    %v955 = vmax.f32 %v847, 0.0
    %v956 = vmax.f32 %v382, 0.0
    %v957 = vmax.f32 %v384, 0.0
    %v958 = vmax.f32 %v543, 0.0
    %v959 = vmax.f32 %v545, 0.0
    %v960 = vmax.f32 %v704, 0.0
    %v961 = vmax.f32 %v706, 0.0
    %v962 = vmax.f32 %v852, 0.0
    %v963 = vmax.f32 %v388, 0.0
    %v964 = vmax.f32 %v390, 0.0
    %v965 = vmax.f32 %v549, 0.0
    %v966 = vmax.f32 %v551, 0.0
    %v967 = vmax.f32 %v710, 0.0
    %v968 = vmax.f32 %v712, 0.0
    %v969 = vmax.f32 %v857, 0.0
    %v970 = vmax.f32 %v394, 0.0
    %v971 = vmax.f32 %v396, 0.0
    %v972 = vmax.f32 %v555, 0.0
    %v973 = vmax.f32 %v557, 0.0
    %v974 = vmax.f32 %v716, 0.0
    %v975 = vmax.f32 %v718, 0.0
    %v976 = vmax.f32 %v862, 0.0
    %v977 = vld [vmem:[#allocation6] sm:$0xff]
    %v978 = vld [vmem:[#allocation6 + $0x8] sm:$0xff]
    %v979 = vld [vmem:[#allocation6 + $0x10] sm:$0xf]
    %v980 = vld [vmem:[#allocation6 + $0x14] sm:$0xff]
    %v981 = vld [vmem:[#allocation6 + $0x1c] sm:$0xff]
    %v982 = vld [vmem:[#allocation6 + $0x24] sm:$0xf]
    %v983 = vld [vmem:[#allocation6 + $0x28] sm:$0xff]
    %v984 = vld [vmem:[#allocation6 + $0x30] sm:$0xff]
    %v985 = vld [vmem:[#allocation6 + $0x38] sm:$0xf]
    %v986 = vld [vmem:[#allocation6 + $0x3c] sm:$0xff]
    %v987 = vld [vmem:[#allocation6 + $0x44] sm:$0xff]
    %v988 = vld [vmem:[#allocation6 + $0x4c] sm:$0xf]
    %v989 = vld [vmem:[#allocation6 + $0x50] sm:$0xff]
    %v990 = vld [vmem:[#allocation6 + $0x58] sm:$0xff]
    %v991 = vld [vmem:[#allocation6 + $0x60] sm:$0xf]
    %v992 = vld [vmem:[#allocation6 + $0x64] sm:$0xff]
    %v993 = vld [vmem:[#allocation6 + $0x6c] sm:$0xff]
    %v994 = vld [vmem:[#allocation6 + $0x74] sm:$0xf]
    %v995 = vld [vmem:[#allocation6 + $0x78] sm:$0xff]
    %v996 = vld [vmem:[#allocation6 + $0x80] sm:$0xff]
    %v997 = vld [vmem:[#allocation6 + $0x88] sm:$0xf]
    %v998 = vld [vmem:[#allocation6 + $0x8c] sm:$0xff]
    %v999 = vld [vmem:[#allocation6 + $0x94] sm:$0xff]
    %v1000 = vld [vmem:[#allocation6 + $0x9c] sm:$0xf]
    %v1001 = vld [vmem:[#allocation6 + $0xa0] sm:$0xff]
    %v1002 = vld [vmem:[#allocation6 + $0xa8] sm:$0xff]
    %v1003 = vld [vmem:[#allocation6 + $0xb0] sm:$0xf]
    %v1004 = vld [vmem:[#allocation6 + $0xb4] sm:$0xff]
    %v1005 = vld [vmem:[#allocation6 + $0xbc] sm:$0xff]
    %v1006 = vld [vmem:[#allocation6 + $0xc4] sm:$0xf]
    %v1007 = vld [vmem:[#allocation6 + $0xc8] sm:$0xff]
    %v1008 = vld [vmem:[#allocation6 + $0xd0] sm:$0xff]
    %v1009 = vld [vmem:[#allocation6 + $0xd8] sm:$0xf]
    %v1010 = vld [vmem:[#allocation6 + $0xdc] sm:$0xff]
    %v1011 = vld [vmem:[#allocation6 + $0xe4] sm:$0xff]
    %v1012 = vld [vmem:[#allocation6 + $0xec] sm:$0xf]
    %v1013 = vld [vmem:[#allocation6 + $0xf0] sm:$0xff]
    %v1014 = vld [vmem:[#allocation6 + $0xf8] sm:$0xff]
    %v1015 = vld [vmem:[#allocation6 + $0x100] sm:$0xf]
    %v1016 = vld [vmem:[#allocation6 + $0x104] sm:$0xff]
    %v1017 = vld [vmem:[#allocation6 + $0x10c] sm:$0xff]
    %v1018 = vld [vmem:[#allocation6 + $0x114] sm:$0xf]
    %v1019 = vld [vmem:[#allocation6 + $0x118] sm:$0xff]
    %v1020 = vld [vmem:[#allocation6 + $0x120] sm:$0xff]
    %v1021 = vld [vmem:[#allocation6 + $0x128] sm:$0xf]
    %v1022 = vld [vmem:[#allocation6 + $0x12c] sm:$0xff]
    %v1023 = vld [vmem:[#allocation6 + $0x134] sm:$0xff]
    %v1024 = vld [vmem:[#allocation6 + $0x13c] sm:$0xf]
    %v1025 = vld [vmem:[#allocation6 + $0x140] sm:$0xff]
    %v1026 = vld [vmem:[#allocation6 + $0x148] sm:$0xff]
    %v1027 = vld [vmem:[#allocation6 + $0x150] sm:$0xf]
    %v1028 = vld [vmem:[#allocation6 + $0x154] sm:$0xff]
    %v1029 = vld [vmem:[#allocation6 + $0x15c] sm:$0xff]
    %v1030 = vld [vmem:[#allocation6 + $0x164] sm:$0xf]
    %v1031 = vld [vmem:[#allocation6 + $0x168] sm:$0xff]
    %v1032 = vld [vmem:[#allocation6 + $0x170] sm:$0xff]
    %v1033 = vld [vmem:[#allocation6 + $0x178] sm:$0xf]
    %v1034 = vld [vmem:[#allocation6 + $0x17c] sm:$0xff]
    %v1035 = vld [vmem:[#allocation6 + $0x184] sm:$0xff]
    %v1036 = vld [vmem:[#allocation6 + $0x18c] sm:$0xf]
    %v1037 = vld [vmem:[#allocation6 + $0x190] sm:$0xff]
    %v1038 = vld [vmem:[#allocation6 + $0x198] sm:$0xff]
    %v1039 = vld [vmem:[#allocation6 + $0x1a0] sm:$0xf]
    %v1040 = vld [vmem:[#allocation6 + $0x1a4] sm:$0xff]
    %v1041 = vld [vmem:[#allocation6 + $0x1ac] sm:$0xff]
    %v1042 = vld [vmem:[#allocation6 + $0x1b4] sm:$0xf]
    %v1043 = vld [vmem:[#allocation6 + $0x1b8] sm:$0xff]
    %v1044 = vld [vmem:[#allocation6 + $0x1c0] sm:$0xff]
    %v1045 = vld [vmem:[#allocation6 + $0x1c8] sm:$0xf]
    %v1046 = vld [vmem:[#allocation6 + $0x1cc] sm:$0xff]
    %v1047 = vld [vmem:[#allocation6 + $0x1d4] sm:$0xff]
    %v1048 = vld [vmem:[#allocation6 + $0x1dc] sm:$0xf]
    %v1049 = vld [vmem:[#allocation6 + $0x1e0] sm:$0xff]
    %v1050 = vld [vmem:[#allocation6 + $0x1e8] sm:$0xff]
    %v1051 = vld [vmem:[#allocation6 + $0x1f0] sm:$0xf]
    %v1052 = vld [vmem:[#allocation6 + $0x1f4] sm:$0xff]
    %v1053 = vld [vmem:[#allocation6 + $0x1fc] sm:$0xff]
    %v1054 = vld [vmem:[#allocation6 + $0x204] sm:$0xf]
    %v1055 = vld [vmem:[#allocation6 + $0x208] sm:$0xff]
    %v1056 = vld [vmem:[#allocation6 + $0x210] sm:$0xff]
    %v1057 = vld [vmem:[#allocation6 + $0x218] sm:$0xf]
    %v1058 = vld [vmem:[#allocation6 + $0x21c] sm:$0xff]
    %v1059 = vld [vmem:[#allocation6 + $0x224] sm:$0xff]
    %v1060 = vld [vmem:[#allocation6 + $0x22c] sm:$0xf]
    %v1061 = vld [vmem:[#allocation6 + $0x230] sm:$0xff]
    %v1062 = vld [vmem:[#allocation6 + $0x238] sm:$0xff]
    %v1063 = vld [vmem:[#allocation6 + $0x240] sm:$0xf]
    %v1064 = vld [vmem:[#allocation6 + $0x244] sm:$0xff]
    %v1065 = vld [vmem:[#allocation6 + $0x24c] sm:$0xff]
    %v1066 = vld [vmem:[#allocation6 + $0x254] sm:$0xf]
    %v1067 = vld [vmem:[#allocation6 + $0x258] sm:$0xff]
    %v1068 = vld [vmem:[#allocation6 + $0x260] sm:$0xff]
    %v1069 = vld [vmem:[#allocation6 + $0x268] sm:$0xf]
    %v1070 = vld [vmem:[#allocation6 + $0x26c] sm:$0xff]
    %v1071 = vld [vmem:[#allocation6 + $0x274] sm:$0xff]
    %v1072 = vld [vmem:[#allocation6 + $0x27c] sm:$0xf]
    %v1073 = vld [vmem:[#allocation6 + $0x280] sm:$0xff]
    %v1074 = vld [vmem:[#allocation6 + $0x288] sm:$0xff]
    %v1075 = vld [vmem:[#allocation6 + $0x290] sm:$0xf]
    %v1076 = vld [vmem:[#allocation6 + $0x294] sm:$0xff]
    %v1077 = vld [vmem:[#allocation6 + $0x29c] sm:$0xff]
    %v1078 = vld [vmem:[#allocation6 + $0x2a4] sm:$0xf]
    %v1079 = vld [vmem:[#allocation6 + $0x2a8] sm:$0xff]
    %v1080 = vld [vmem:[#allocation6 + $0x2b0] sm:$0xff]
    %v1081 = vld [vmem:[#allocation6 + $0x2b8] sm:$0xf]
    %v1082 = vld [vmem:[#allocation6 + $0x2bc] sm:$0xff]
    %v1083 = vld [vmem:[#allocation6 + $0x2c4] sm:$0xff]
    %v1084 = vld [vmem:[#allocation6 + $0x2cc] sm:$0xf]
    %v1085 = vld [vmem:[#allocation6 + $0x2d0] sm:$0xff]
    %v1086 = vld [vmem:[#allocation6 + $0x2d8] sm:$0xff]
    %v1087 = vld [vmem:[#allocation6 + $0x2e0] sm:$0xf]
    %v1088 = vld [vmem:[#allocation6 + $0x2e4] sm:$0xff]
    %v1089 = vld [vmem:[#allocation6 + $0x2ec] sm:$0xff]
    %v1090 = vld [vmem:[#allocation6 + $0x2f4] sm:$0xf]
    %v1091 = vld [vmem:[#allocation6 + $0x2f8] sm:$0xff]
    %v1092 = vld [vmem:[#allocation6 + $0x300] sm:$0xff]
    %v1093 = vld [vmem:[#allocation6 + $0x308] sm:$0xf]
    %v1094 = vld [vmem:[#allocation6 + $0x30c] sm:$0xff]
    %v1095 = vld [vmem:[#allocation6 + $0x314] sm:$0xff]
    %v1096 = vld [vmem:[#allocation6 + $0x31c] sm:$0xf]
    %v1097 = vld [vmem:[#allocation6 + $0x320] sm:$0xff]
    %v1098 = vld [vmem:[#allocation6 + $0x328] sm:$0xff]
    %v1099 = vld [vmem:[#allocation6 + $0x330] sm:$0xf]
    %v1100 = vld [vmem:[#allocation6 + $0x334] sm:$0xff]
    %v1101 = vld [vmem:[#allocation6 + $0x33c] sm:$0xff]
    %v1102 = vld [vmem:[#allocation6 + $0x344] sm:$0xf]
    %v1103 = vld [vmem:[#allocation6 + $0x348] sm:$0xff]
    %v1104 = vld [vmem:[#allocation6 + $0x350] sm:$0xff]
    %v1105 = vld [vmem:[#allocation6 + $0x358] sm:$0xf]
    %v1106 = vld [vmem:[#allocation6 + $0x35c] sm:$0xff]
    %v1107 = vld [vmem:[#allocation6 + $0x364] sm:$0xff]
    %v1108 = vld [vmem:[#allocation6 + $0x36c] sm:$0xf]
    %v1109 = vld [vmem:[#allocation6 + $0x370] sm:$0xff]
    %v1110 = vld [vmem:[#allocation6 + $0x378] sm:$0xff]
    %v1111 = vld [vmem:[#allocation6 + $0x380] sm:$0xf]
    %v1112 = vld [vmem:[#allocation6 + $0x384] sm:$0xff]
    %v1113 = vld [vmem:[#allocation6 + $0x38c] sm:$0xff]
    %v1114 = vld [vmem:[#allocation6 + $0x394] sm:$0xf]
    %v1115 = vld [vmem:[#allocation6 + $0x398] sm:$0xff]
    %v1116 = vld [vmem:[#allocation6 + $0x3a0] sm:$0xff]
    %v1117 = vld [vmem:[#allocation6 + $0x3a8] sm:$0xf]
    %v1118 = vld [vmem:[#allocation6 + $0x3ac] sm:$0xff]
    %v1119 = vld [vmem:[#allocation6 + $0x3b4] sm:$0xff]
    %v1120 = vld [vmem:[#allocation6 + $0x3bc] sm:$0xf]
    %v1121 = vld [vmem:[#allocation6 + $0x3c0] sm:$0xff]
    %v1122 = vld [vmem:[#allocation6 + $0x3c8] sm:$0xff]
    %v1123 = vld [vmem:[#allocation6 + $0x3d0] sm:$0xf]
    %v1124 = vld [vmem:[#allocation6 + $0x3d4] sm:$0xff]
    %v1125 = vld [vmem:[#allocation6 + $0x3dc] sm:$0xff]
    %v1126 = vld [vmem:[#allocation6 + $0x3e4] sm:$0xf]
    %v1127 = vld [vmem:[#allocation6 + $0x3e8] sm:$0xff]
    %v1128 = vld [vmem:[#allocation6 + $0x3f0] sm:$0xff]
    %v1129 = vld [vmem:[#allocation6 + $0x3f8] sm:$0xf]
    %v1130 = vld [vmem:[#allocation6 + $0x3fc] sm:$0xff]
    %v1131 = vld [vmem:[#allocation6 + $0x404] sm:$0xff]
    %v1132 = vld [vmem:[#allocation6 + $0x40c] sm:$0xf]
    %v1133 = vld [vmem:[#allocation6 + $0x410] sm:$0xff]
    %v1134 = vld [vmem:[#allocation6 + $0x418] sm:$0xff]
    %v1135 = vld [vmem:[#allocation6 + $0x420] sm:$0xf]
    %v1136 = vld [vmem:[#allocation6 + $0x424] sm:$0xff]
    %v1137 = vld [vmem:[#allocation6 + $0x42c] sm:$0xff]
    %v1138 = vld [vmem:[#allocation6 + $0x434] sm:$0xf]
    %v1139 = vld [vmem:[#allocation6 + $0x438] sm:$0xff]
    %v1140 = vld [vmem:[#allocation6 + $0x440] sm:$0xff]
    %v1141 = vld [vmem:[#allocation6 + $0x448] sm:$0xf]
    %v1142 = vld [vmem:[#allocation6 + $0x44c] sm:$0xff]
    %v1143 = vld [vmem:[#allocation6 + $0x454] sm:$0xff]
    %v1144 = vld [vmem:[#allocation6 + $0x45c] sm:$0xf]
    %v1145 = vld [vmem:[#allocation6 + $0x460] sm:$0xff]
    %v1146 = vld [vmem:[#allocation6 + $0x468] sm:$0xff]
    %v1147 = vld [vmem:[#allocation6 + $0x470] sm:$0xf]
    %v1148 = vld [vmem:[#allocation6 + $0x474] sm:$0xff]
    %v1149 = vld [vmem:[#allocation6 + $0x47c] sm:$0xff]
    %v1150 = vld [vmem:[#allocation6 + $0x484] sm:$0xf]
    %v1151 = vld [vmem:[#allocation6 + $0x488] sm:$0xff]
    %v1152 = vld [vmem:[#allocation6 + $0x490] sm:$0xff]
    %v1153 = vld [vmem:[#allocation6 + $0x498] sm:$0xf]
    %v1154 = vld [vmem:[#allocation6 + $0x49c] sm:$0xff]
    %v1155 = vld [vmem:[#allocation6 + $0x4a4] sm:$0xff]
    %v1156 = vld [vmem:[#allocation6 + $0x4ac] sm:$0xf]
    %v1157 = vld [vmem:[#allocation6 + $0x4b0] sm:$0xff]
    %v1158 = vld [vmem:[#allocation6 + $0x4b8] sm:$0xff]
    %v1159 = vld [vmem:[#allocation6 + $0x4c0] sm:$0xf]
    %v1160 = vld [vmem:[#allocation6 + $0x4c4] sm:$0xff]
    %v1161 = vld [vmem:[#allocation6 + $0x4cc] sm:$0xff]
    %v1162 = vld [vmem:[#allocation6 + $0x4d4] sm:$0xf]
    %v1163 = vld [vmem:[#allocation6 + $0x4d8] sm:$0xff]
    %v1164 = vld [vmem:[#allocation6 + $0x4e0] sm:$0xff]
    %v1165 = vld [vmem:[#allocation6 + $0x4e8] sm:$0xf]
    %v1166 = vld [vmem:[#allocation6 + $0x4ec] sm:$0xff]
    %v1167 = vld [vmem:[#allocation6 + $0x4f4] sm:$0xff]
    %v1168 = vld [vmem:[#allocation6 + $0x4fc] sm:$0xf]
    %v1169 = vld [vmem:[#allocation6 + $0x500] sm:$0xff]
    %v1170 = vld [vmem:[#allocation6 + $0x508] sm:$0xff]
    %v1171 = vld [vmem:[#allocation6 + $0x510] sm:$0xf]
    %v1172 = vld [vmem:[#allocation6 + $0x514] sm:$0xff]
    %v1173 = vld [vmem:[#allocation6 + $0x51c] sm:$0xff]
    %v1174 = vld [vmem:[#allocation6 + $0x524] sm:$0xf]
    %v1175 = vld [vmem:[#allocation6 + $0x528] sm:$0xff]
    %v1176 = vld [vmem:[#allocation6 + $0x530] sm:$0xff]
    %v1177 = vld [vmem:[#allocation6 + $0x538] sm:$0xf]
    %v1178 = vld [vmem:[#allocation6 + $0x53c] sm:$0xff]
    %v1179 = vld [vmem:[#allocation6 + $0x544] sm:$0xff]
    %v1180 = vld [vmem:[#allocation6 + $0x54c] sm:$0xf]
    %v1181 = vld [vmem:[#allocation6 + $0x550] sm:$0xff]
    %v1182 = vld [vmem:[#allocation6 + $0x558] sm:$0xff]
    %v1183 = vld [vmem:[#allocation6 + $0x560] sm:$0xf]
    %v1184 = vld [vmem:[#allocation6 + $0x564] sm:$0xff]
    %v1185 = vld [vmem:[#allocation6 + $0x56c] sm:$0xff]
    %v1186 = vld [vmem:[#allocation6 + $0x574] sm:$0xf]
    %v1187 = vld [vmem:[#allocation6 + $0x578] sm:$0xff]
    %v1188 = vld [vmem:[#allocation6 + $0x580] sm:$0xff]
    %v1189 = vld [vmem:[#allocation6 + $0x588] sm:$0xf]
    %v1190 = vld [vmem:[#allocation6 + $0x58c] sm:$0xff]
    %v1191 = vld [vmem:[#allocation6 + $0x594] sm:$0xff]
    %v1192 = vld [vmem:[#allocation6 + $0x59c] sm:$0xf]
    %v1193 = vld [vmem:[#allocation6 + $0x5a0] sm:$0xff]
    %v1194 = vld [vmem:[#allocation6 + $0x5a8] sm:$0xff]
    %v1195 = vld [vmem:[#allocation6 + $0x5b0] sm:$0xf]
    %v1196 = vld [vmem:[#allocation6 + $0x5b4] sm:$0xff]
    %v1197 = vld [vmem:[#allocation6 + $0x5bc] sm:$0xff]
    %v1198 = vld [vmem:[#allocation6 + $0x5c4] sm:$0xf]
    %v1199 = vld [vmem:[#allocation6 + $0x5c8] sm:$0xff]
    %v1200 = vld [vmem:[#allocation6 + $0x5d0] sm:$0xff]
    %v1201 = vld [vmem:[#allocation6 + $0x5d8] sm:$0xf]
    %v1202 = vld [vmem:[#allocation6 + $0x5dc] sm:$0xff]
    %v1203 = vld [vmem:[#allocation6 + $0x5e4] sm:$0xff]
    %v1204 = vld [vmem:[#allocation6 + $0x5ec] sm:$0xf]
    %v1205 = vld [vmem:[#allocation6 + $0x5f0] sm:$0xff]
    %v1206 = vld [vmem:[#allocation6 + $0x5f8] sm:$0xff]
    %v1207 = vld [vmem:[#allocation6 + $0x600] sm:$0xf]
    %v1208 = vld [vmem:[#allocation6 + $0x604] sm:$0xff]
    %v1209 = vld [vmem:[#allocation6 + $0x60c] sm:$0xff]
    %v1210 = vld [vmem:[#allocation6 + $0x614] sm:$0xf]
    %v1211 = vld [vmem:[#allocation6 + $0x618] sm:$0xff]
    %v1212 = vld [vmem:[#allocation6 + $0x620] sm:$0xff]
    %v1213 = vld [vmem:[#allocation6 + $0x628] sm:$0xf]
    %v1214 = vld [vmem:[#allocation6 + $0x62c] sm:$0xff]
    %v1215 = vld [vmem:[#allocation6 + $0x634] sm:$0xff]
    %v1216 = vld [vmem:[#allocation6 + $0x63c] sm:$0xf]
    %v1217 = vld [vmem:[#allocation6 + $0x640] sm:$0xff]
    %v1218 = vld [vmem:[#allocation6 + $0x648] sm:$0xff]
    %v1219 = vld [vmem:[#allocation6 + $0x650] sm:$0xf]
    %v1220 = vld [vmem:[#allocation6 + $0x654] sm:$0xff]
    %v1221 = vld [vmem:[#allocation6 + $0x65c] sm:$0xff]
    %v1222 = vld [vmem:[#allocation6 + $0x664] sm:$0xf]
    %v1223 = vld [vmem:[#allocation6 + $0x668] sm:$0xff]
    %v1224 = vld [vmem:[#allocation6 + $0x670] sm:$0xff]
    %v1225 = vld [vmem:[#allocation6 + $0x678] sm:$0xf]
    %v1226 = vld [vmem:[#allocation6 + $0x67c] sm:$0xff]
    %v1227 = vld [vmem:[#allocation6 + $0x684] sm:$0xff]
    %v1228 = vld [vmem:[#allocation6 + $0x68c] sm:$0xf]
    %v1229 = vld [vmem:[#allocation6 + $0x690] sm:$0xff]
    %v1230 = vld [vmem:[#allocation6 + $0x698] sm:$0xff]
    %v1231 = vld [vmem:[#allocation6 + $0x6a0] sm:$0xf]
    %v1232 = vld [vmem:[#allocation6 + $0x6a4] sm:$0xff]
    %v1233 = vld [vmem:[#allocation6 + $0x6ac] sm:$0xff]
    %v1234 = vld [vmem:[#allocation6 + $0x6b4] sm:$0xf]
    %v1235 = vld [vmem:[#allocation6 + $0x6b8] sm:$0xff]
    %v1236 = vld [vmem:[#allocation6 + $0x6c0] sm:$0xff]
    %v1237 = vld [vmem:[#allocation6 + $0x6c8] sm:$0xf]
    %v1238 = vld [vmem:[#allocation6 + $0x6cc] sm:$0xff]
    %v1239 = vld [vmem:[#allocation6 + $0x6d4] sm:$0xff]
    %v1240 = vld [vmem:[#allocation6 + $0x6dc] sm:$0xf]
    %v1241 = vld [vmem:[#allocation6 + $0x6e0] sm:$0xff]
    %v1242 = vld [vmem:[#allocation6 + $0x6e8] sm:$0xff]
    %v1243 = vld [vmem:[#allocation6 + $0x6f0] sm:$0xf]
    %v1244 = vld [vmem:[#allocation6 + $0x6f4] sm:$0xff]
    %v1245 = vld [vmem:[#allocation6 + $0x6fc] sm:$0xff]
    %v1246 = vld [vmem:[#allocation6 + $0x704] sm:$0xf]
    %v1247 = vld [vmem:[#allocation6 + $0x708] sm:$0xff]
    %v1248 = vld [vmem:[#allocation6 + $0x710] sm:$0xff]
    %v1249 = vld [vmem:[#allocation6 + $0x718] sm:$0xf]
    %v1250 = vld [vmem:[#allocation6 + $0x71c] sm:$0xff]
    %v1251 = vld [vmem:[#allocation6 + $0x724] sm:$0xff]
    %v1252 = vld [vmem:[#allocation6 + $0x72c] sm:$0xf]
    %v1253 = vld [vmem:[#allocation6 + $0x730] sm:$0xff]
    %v1254 = vld [vmem:[#allocation6 + $0x738] sm:$0xff]
    %v1255 = vld [vmem:[#allocation6 + $0x740] sm:$0xf]
    %v1256 = vld [vmem:[#allocation6 + $0x744] sm:$0xff]
    %v1257 = vld [vmem:[#allocation6 + $0x74c] sm:$0xff]
    %v1258 = vld [vmem:[#allocation6 + $0x754] sm:$0xf]
    %v1259 = vld [vmem:[#allocation6 + $0x758] sm:$0xff]
    %v1260 = vld [vmem:[#allocation6 + $0x760] sm:$0xff]
    %v1261 = vld [vmem:[#allocation6 + $0x768] sm:$0xf]
    %v1262 = vld [vmem:[#allocation6 + $0x76c] sm:$0xff]
    %v1263 = vld [vmem:[#allocation6 + $0x774] sm:$0xff]
    %v1264 = vld [vmem:[#allocation6 + $0x77c] sm:$0xf]
    %v1265 = vld [vmem:[#allocation6 + $0x780] sm:$0xff]
    %v1266 = vld [vmem:[#allocation6 + $0x788] sm:$0xff]
    %v1267 = vld [vmem:[#allocation6 + $0x790] sm:$0xf]
    %v1268 = vld [vmem:[#allocation6 + $0x794] sm:$0xff]
    %v1269 = vld [vmem:[#allocation6 + $0x79c] sm:$0xff]
    %v1270 = vld [vmem:[#allocation6 + $0x7a4] sm:$0xf]
    %v1271 = vld [vmem:[#allocation6 + $0x7a8] sm:$0xff]
    %v1272 = vld [vmem:[#allocation6 + $0x7b0] sm:$0xff]
    %v1273 = vld [vmem:[#allocation6 + $0x7b8] sm:$0xf]
    %v1274 = vld [vmem:[#allocation6 + $0x7bc] sm:$0xff]
    %v1275 = vld [vmem:[#allocation6 + $0x7c4] sm:$0xff]
    %v1276 = vld [vmem:[#allocation6 + $0x7cc] sm:$0xf]
    %v1277 = vld [vmem:[#allocation6 + $0x7d0] sm:$0xff]
    %v1278 = vld [vmem:[#allocation6 + $0x7d8] sm:$0xff]
    %v1279 = vld [vmem:[#allocation6 + $0x7e0] sm:$0xf]
    %v1280 = vld [vmem:[#allocation6 + $0x7e4] sm:$0xff]
    %v1281 = vld [vmem:[#allocation6 + $0x7ec] sm:$0xff]
    %v1282 = vld [vmem:[#allocation6 + $0x7f4] sm:$0xf]
    %v1283 = vld [vmem:[#allocation6 + $0x7f8] sm:$0xff]
    %v1284 = vld [vmem:[#allocation6 + $0x800] sm:$0xff]
    %v1285 = vld [vmem:[#allocation6 + $0x808] sm:$0xf]
    %v1286 = vld [vmem:[#allocation6 + $0x80c] sm:$0xff]
    %v1287 = vld [vmem:[#allocation6 + $0x814] sm:$0xff]
    %v1288 = vld [vmem:[#allocation6 + $0x81c] sm:$0xf]
    %v1289 = vld [vmem:[#allocation6 + $0x820] sm:$0xff]
    %v1290 = vld [vmem:[#allocation6 + $0x828] sm:$0xff]
    %v1291 = vld [vmem:[#allocation6 + $0x830] sm:$0xf]
    %v1292 = vld [vmem:[#allocation6 + $0x834] sm:$0xff]
    %v1293 = vld [vmem:[#allocation6 + $0x83c] sm:$0xff]
    %v1294 = vld [vmem:[#allocation6 + $0x844] sm:$0xf]
    %v1295 = vld [vmem:[#allocation6 + $0x848] sm:$0xff]
    %v1296 = vld [vmem:[#allocation6 + $0x850] sm:$0xff]
    %v1297 = vld [vmem:[#allocation6 + $0x858] sm:$0xf]
    %v1298 = vld [vmem:[#allocation6 + $0x85c] sm:$0xff]
    %v1299 = vld [vmem:[#allocation6 + $0x864] sm:$0xff]
    %v1300 = vld [vmem:[#allocation6 + $0x86c] sm:$0xf]
    %v1301 = vld [vmem:[#allocation6 + $0x870] sm:$0xff]
    %v1302 = vld [vmem:[#allocation6 + $0x878] sm:$0xff]
    %v1303 = vld [vmem:[#allocation6 + $0x880] sm:$0xf]
    %v1304 = vld [vmem:[#allocation6 + $0x884] sm:$0xff]
    %v1305 = vld [vmem:[#allocation6 + $0x88c] sm:$0xff]
    %v1306 = vld [vmem:[#allocation6 + $0x894] sm:$0xf]
    %v1307 = vld [vmem:[#allocation6 + $0x898] sm:$0xff]
    %v1308 = vld [vmem:[#allocation6 + $0x8a0] sm:$0xff]
    %v1309 = vld [vmem:[#allocation6 + $0x8a8] sm:$0xf]
    %v1310 = vld [vmem:[#allocation6 + $0x8ac] sm:$0xff]
    %v1311 = vld [vmem:[#allocation6 + $0x8b4] sm:$0xff]
    %v1312 = vld [vmem:[#allocation6 + $0x8bc] sm:$0xf]
    %v1313 = vunpack.c.l.bf16 %v977
    %v1314 = vunpack.c.h.bf16 %v977
    %v1315 = vunpack.c.l.bf16 %v978
    %v1316 = vunpack.c.h.bf16 %v978
    %v1317 = vunpack.c.l.bf16 %v979
    %v1318 = vunpack.c.l.bf16 %v980
    %v1319 = vunpack.c.h.bf16 %v980
    %v1320 = vunpack.c.l.bf16 %v981
    %v1321 = vunpack.c.h.bf16 %v981
    %v1322 = vunpack.c.l.bf16 %v982
    %v1323 = vunpack.c.l.bf16 %v983
    %v1324 = vunpack.c.h.bf16 %v983
    %v1325 = vunpack.c.l.bf16 %v984
    %v1326 = vunpack.c.h.bf16 %v984
    %v1327 = vunpack.c.l.bf16 %v985
    %v1328 = vunpack.c.l.bf16 %v986
    %v1329 = vunpack.c.h.bf16 %v986
    %v1330 = vunpack.c.l.bf16 %v987
    %v1331 = vunpack.c.h.bf16 %v987
    %v1332 = vunpack.c.l.bf16 %v988
    %v1333 = vunpack.c.l.bf16 %v989
    %v1334 = vunpack.c.h.bf16 %v989
    %v1335 = vunpack.c.l.bf16 %v990
    %v1336 = vunpack.c.h.bf16 %v990
    %v1337 = vunpack.c.l.bf16 %v991
    %v1338 = vunpack.c.l.bf16 %v992
    %v1339 = vunpack.c.h.bf16 %v992
    %v1340 = vunpack.c.l.bf16 %v993
    %v1341 = vunpack.c.h.bf16 %v993
    %v1342 = vunpack.c.l.bf16 %v994
    %v1343 = vunpack.c.l.bf16 %v995
    %v1344 = vunpack.c.h.bf16 %v995
    %v1345 = vunpack.c.l.bf16 %v996
    %v1346 = vunpack.c.h.bf16 %v996
    %v1347 = vunpack.c.l.bf16 %v997
    %v1348 = vunpack.c.l.bf16 %v998
    %v1349 = vunpack.c.h.bf16 %v998
    %v1350 = vunpack.c.l.bf16 %v999
    %v1351 = vunpack.c.h.bf16 %v999
    %v1352 = vunpack.c.l.bf16 %v1000
    %v1353 = vunpack.c.l.bf16 %v1001
    %v1354 = vunpack.c.h.bf16 %v1001
    %v1355 = vunpack.c.l.bf16 %v1002
    %v1356 = vunpack.c.h.bf16 %v1002
    %v1357 = vunpack.c.l.bf16 %v1003
    %v1358 = vunpack.c.l.bf16 %v1004
    %v1359 = vunpack.c.h.bf16 %v1004
    %v1360 = vunpack.c.l.bf16 %v1005
    %v1361 = vunpack.c.h.bf16 %v1005
    %v1362 = vunpack.c.l.bf16 %v1006
    %v1363 = vunpack.c.l.bf16 %v1007
    %v1364 = vunpack.c.h.bf16 %v1007
    %v1365 = vunpack.c.l.bf16 %v1008
    %v1366 = vunpack.c.h.bf16 %v1008
    %v1367 = vunpack.c.l.bf16 %v1009
    %v1368 = vunpack.c.l.bf16 %v1010
    %v1369 = vunpack.c.h.bf16 %v1010
    %v1370 = vunpack.c.l.bf16 %v1011
    %v1371 = vunpack.c.h.bf16 %v1011
    %v1372 = vunpack.c.l.bf16 %v1012
    %v1373 = vunpack.c.l.bf16 %v1013
    %v1374 = vunpack.c.h.bf16 %v1013
    %v1375 = vunpack.c.l.bf16 %v1014
    %v1376 = vunpack.c.h.bf16 %v1014
    %v1377 = vunpack.c.l.bf16 %v1015
    %v1378 = vunpack.c.l.bf16 %v1016
    %v1379 = vunpack.c.h.bf16 %v1016
    %v1380 = vunpack.c.l.bf16 %v1017
    %v1381 = vunpack.c.h.bf16 %v1017
    %v1382 = vunpack.c.l.bf16 %v1018
    %v1383 = vunpack.c.l.bf16 %v1019
    %v1384 = vunpack.c.h.bf16 %v1019
    %v1385 = vunpack.c.l.bf16 %v1020
    %v1386 = vunpack.c.h.bf16 %v1020
    %v1387 = vunpack.c.l.bf16 %v1021
    %v1388 = vunpack.c.l.bf16 %v1022
    %v1389 = vunpack.c.h.bf16 %v1022
    %v1390 = vunpack.c.l.bf16 %v1023
    %v1391 = vunpack.c.h.bf16 %v1023
    %v1392 = vunpack.c.l.bf16 %v1024
    %v1393 = vunpack.c.l.bf16 %v1025
    %v1394 = vunpack.c.h.bf16 %v1025
    %v1395 = vunpack.c.l.bf16 %v1026
    %v1396 = vunpack.c.h.bf16 %v1026
    %v1397 = vunpack.c.l.bf16 %v1027
    %v1398 = vunpack.c.l.bf16 %v1028
    %v1399 = vunpack.c.h.bf16 %v1028
    %v1400 = vunpack.c.l.bf16 %v1029
    %v1401 = vunpack.c.h.bf16 %v1029
    %v1402 = vunpack.c.l.bf16 %v1030
    %v1403 = vunpack.c.l.bf16 %v1031
    %v1404 = vunpack.c.h.bf16 %v1031
    %v1405 = vunpack.c.l.bf16 %v1032
    %v1406 = vunpack.c.h.bf16 %v1032
    %v1407 = vunpack.c.l.bf16 %v1033
    %v1408 = vunpack.c.l.bf16 %v1034
    %v1409 = vunpack.c.h.bf16 %v1034
    %v1410 = vunpack.c.l.bf16 %v1035
    %v1411 = vunpack.c.h.bf16 %v1035
    %v1412 = vunpack.c.l.bf16 %v1036
    %v1413 = vunpack.c.l.bf16 %v1037
    %v1414 = vunpack.c.h.bf16 %v1037
    %v1415 = vunpack.c.l.bf16 %v1038
    %v1416 = vunpack.c.h.bf16 %v1038
    %v1417 = vunpack.c.l.bf16 %v1039
    %v1418 = vunpack.c.l.bf16 %v1040
    %v1419 = vunpack.c.h.bf16 %v1040
    %v1420 = vunpack.c.l.bf16 %v1041
    %v1421 = vunpack.c.h.bf16 %v1041
    %v1422 = vunpack.c.l.bf16 %v1042
    %v1423 = vunpack.c.l.bf16 %v1043
    %v1424 = vunpack.c.h.bf16 %v1043
    %v1425 = vunpack.c.l.bf16 %v1044
    %v1426 = vunpack.c.h.bf16 %v1044
    %v1427 = vunpack.c.l.bf16 %v1045
    %v1428 = vunpack.c.l.bf16 %v1046
    %v1429 = vunpack.c.h.bf16 %v1046
    %v1430 = vunpack.c.l.bf16 %v1047
    %v1431 = vunpack.c.h.bf16 %v1047
    %v1432 = vunpack.c.l.bf16 %v1048
    %v1433 = vunpack.c.l.bf16 %v1049
    %v1434 = vunpack.c.h.bf16 %v1049
    %v1435 = vunpack.c.l.bf16 %v1050
    %v1436 = vunpack.c.h.bf16 %v1050
    %v1437 = vunpack.c.l.bf16 %v1051
    %v1438 = vunpack.c.l.bf16 %v1052
    %v1439 = vunpack.c.h.bf16 %v1052
    %v1440 = vunpack.c.l.bf16 %v1053
    %v1441 = vunpack.c.h.bf16 %v1053
    %v1442 = vunpack.c.l.bf16 %v1054
    %v1443 = vunpack.c.l.bf16 %v1055
    %v1444 = vunpack.c.h.bf16 %v1055
    %v1445 = vunpack.c.l.bf16 %v1056
    %v1446 = vunpack.c.h.bf16 %v1056
    %v1447 = vunpack.c.l.bf16 %v1057
    %v1448 = vunpack.c.l.bf16 %v1058
    %v1449 = vunpack.c.h.bf16 %v1058
    %v1450 = vunpack.c.l.bf16 %v1059
    %v1451 = vunpack.c.h.bf16 %v1059
    %v1452 = vunpack.c.l.bf16 %v1060
    %v1453 = vunpack.c.l.bf16 %v1061
    %v1454 = vunpack.c.h.bf16 %v1061
    %v1455 = vunpack.c.l.bf16 %v1062
    %v1456 = vunpack.c.h.bf16 %v1062
    %v1457 = vunpack.c.l.bf16 %v1063
    %v1458 = vunpack.c.l.bf16 %v1064
    %v1459 = vunpack.c.h.bf16 %v1064
    %v1460 = vunpack.c.l.bf16 %v1065
    %v1461 = vunpack.c.h.bf16 %v1065
    %v1462 = vunpack.c.l.bf16 %v1066
    %v1463 = vunpack.c.l.bf16 %v1067
    %v1464 = vunpack.c.h.bf16 %v1067
    %v1465 = vunpack.c.l.bf16 %v1068
    %v1466 = vunpack.c.h.bf16 %v1068
    %v1467 = vunpack.c.l.bf16 %v1069
    %v1468 = vunpack.c.l.bf16 %v1070
    %v1469 = vunpack.c.h.bf16 %v1070
    %v1470 = vunpack.c.l.bf16 %v1071
    %v1471 = vunpack.c.h.bf16 %v1071
    %v1472 = vunpack.c.l.bf16 %v1072
    %v1473 = vunpack.c.l.bf16 %v1073
    %v1474 = vunpack.c.h.bf16 %v1073
    %v1475 = vunpack.c.l.bf16 %v1074
    %v1476 = vunpack.c.h.bf16 %v1074
    %v1477 = vunpack.c.l.bf16 %v1075
    %v1478 = vunpack.c.l.bf16 %v1076
    %v1479 = vunpack.c.h.bf16 %v1076
    %v1480 = vunpack.c.l.bf16 %v1077
    %v1481 = vunpack.c.h.bf16 %v1077
    %v1482 = vunpack.c.l.bf16 %v1078
    %v1483 = vunpack.c.l.bf16 %v1079
    %v1484 = vunpack.c.h.bf16 %v1079
    %v1485 = vunpack.c.l.bf16 %v1080
    %v1486 = vunpack.c.h.bf16 %v1080
    %v1487 = vunpack.c.l.bf16 %v1081
    %v1488 = vunpack.c.l.bf16 %v1082
    %v1489 = vunpack.c.h.bf16 %v1082
    %v1490 = vunpack.c.l.bf16 %v1083
    %v1491 = vunpack.c.h.bf16 %v1083
    %v1492 = vunpack.c.l.bf16 %v1084
    %v1493 = vunpack.c.l.bf16 %v1085
    %v1494 = vunpack.c.h.bf16 %v1085
    %v1495 = vunpack.c.l.bf16 %v1086
    %v1496 = vunpack.c.h.bf16 %v1086
    %v1497 = vunpack.c.l.bf16 %v1087
    %v1498 = vunpack.c.l.bf16 %v1088
    %v1499 = vunpack.c.h.bf16 %v1088
    %v1500 = vunpack.c.l.bf16 %v1089
    %v1501 = vunpack.c.h.bf16 %v1089
    %v1502 = vunpack.c.l.bf16 %v1090
    %v1503 = vunpack.c.l.bf16 %v1091
    %v1504 = vunpack.c.h.bf16 %v1091
    %v1505 = vunpack.c.l.bf16 %v1092
    %v1506 = vunpack.c.h.bf16 %v1092
    %v1507 = vunpack.c.l.bf16 %v1093
    %v1508 = vunpack.c.l.bf16 %v1094
    %v1509 = vunpack.c.h.bf16 %v1094
    %v1510 = vunpack.c.l.bf16 %v1095
    %v1511 = vunpack.c.h.bf16 %v1095
    %v1512 = vunpack.c.l.bf16 %v1096
    %v1513 = vunpack.c.l.bf16 %v1097
    %v1514 = vunpack.c.h.bf16 %v1097
    %v1515 = vunpack.c.l.bf16 %v1098
    %v1516 = vunpack.c.h.bf16 %v1098
    %v1517 = vunpack.c.l.bf16 %v1099
    %v1518 = vunpack.c.l.bf16 %v1100
    %v1519 = vunpack.c.h.bf16 %v1100
    %v1520 = vunpack.c.l.bf16 %v1101
    %v1521 = vunpack.c.h.bf16 %v1101
    %v1522 = vunpack.c.l.bf16 %v1102
    %v1523 = vunpack.c.l.bf16 %v1103
    %v1524 = vunpack.c.h.bf16 %v1103
    %v1525 = vunpack.c.l.bf16 %v1104
    %v1526 = vunpack.c.h.bf16 %v1104
    %v1527 = vunpack.c.l.bf16 %v1105
    %v1528 = vunpack.c.l.bf16 %v1106
    %v1529 = vunpack.c.h.bf16 %v1106
    %v1530 = vunpack.c.l.bf16 %v1107
    %v1531 = vunpack.c.h.bf16 %v1107
    %v1532 = vunpack.c.l.bf16 %v1108
    %v1533 = vunpack.c.l.bf16 %v1109
    %v1534 = vunpack.c.h.bf16 %v1109
    %v1535 = vunpack.c.l.bf16 %v1110
    %v1536 = vunpack.c.h.bf16 %v1110
    %v1537 = vunpack.c.l.bf16 %v1111
    %v1538 = vunpack.c.l.bf16 %v1112
    %v1539 = vunpack.c.h.bf16 %v1112
    %v1540 = vunpack.c.l.bf16 %v1113
    %v1541 = vunpack.c.h.bf16 %v1113
    %v1542 = vunpack.c.l.bf16 %v1114
    %v1543 = vunpack.c.l.bf16 %v1115
    %v1544 = vunpack.c.h.bf16 %v1115
    %v1545 = vunpack.c.l.bf16 %v1116
    %v1546 = vunpack.c.h.bf16 %v1116
    %v1547 = vunpack.c.l.bf16 %v1117
    %v1548 = vunpack.c.l.bf16 %v1118
    %v1549 = vunpack.c.h.bf16 %v1118
    %v1550 = vunpack.c.l.bf16 %v1119
    %v1551 = vunpack.c.h.bf16 %v1119
    %v1552 = vunpack.c.l.bf16 %v1120
    %v1553 = vunpack.c.l.bf16 %v1121
    %v1554 = vunpack.c.h.bf16 %v1121
    %v1555 = vunpack.c.l.bf16 %v1122
    %v1556 = vunpack.c.h.bf16 %v1122
    %v1557 = vunpack.c.l.bf16 %v1123
    %v1558 = vunpack.c.l.bf16 %v1124
    %v1559 = vunpack.c.h.bf16 %v1124
    %v1560 = vunpack.c.l.bf16 %v1125
    %v1561 = vunpack.c.h.bf16 %v1125
    %v1562 = vunpack.c.l.bf16 %v1126
    %v1563 = vunpack.c.l.bf16 %v1127
    %v1564 = vunpack.c.h.bf16 %v1127
    %v1565 = vunpack.c.l.bf16 %v1128
    %v1566 = vunpack.c.h.bf16 %v1128
    %v1567 = vunpack.c.l.bf16 %v1129
    %v1568 = vunpack.c.l.bf16 %v1130
    %v1569 = vunpack.c.h.bf16 %v1130
    %v1570 = vunpack.c.l.bf16 %v1131
    %v1571 = vunpack.c.h.bf16 %v1131
    %v1572 = vunpack.c.l.bf16 %v1132
    %v1573 = vunpack.c.l.bf16 %v1133
    %v1574 = vunpack.c.h.bf16 %v1133
    %v1575 = vunpack.c.l.bf16 %v1134
    %v1576 = vunpack.c.h.bf16 %v1134
    %v1577 = vunpack.c.l.bf16 %v1135
    %v1578 = vunpack.c.l.bf16 %v1136
    %v1579 = vunpack.c.h.bf16 %v1136
    %v1580 = vunpack.c.l.bf16 %v1137
    %v1581 = vunpack.c.h.bf16 %v1137
    %v1582 = vunpack.c.l.bf16 %v1138
    %v1583 = vunpack.c.l.bf16 %v1139
    %v1584 = vunpack.c.h.bf16 %v1139
    %v1585 = vunpack.c.l.bf16 %v1140
    %v1586 = vunpack.c.h.bf16 %v1140
    %v1587 = vunpack.c.l.bf16 %v1141
    %v1588 = vunpack.c.l.bf16 %v1142
    %v1589 = vunpack.c.h.bf16 %v1142
    %v1590 = vunpack.c.l.bf16 %v1143
    %v1591 = vunpack.c.h.bf16 %v1143
    %v1592 = vunpack.c.l.bf16 %v1144
    %v1593 = vunpack.c.l.bf16 %v1145
    %v1594 = vunpack.c.h.bf16 %v1145
    %v1595 = vunpack.c.l.bf16 %v1146
    %v1596 = vunpack.c.h.bf16 %v1146
    %v1597 = vunpack.c.l.bf16 %v1147
    %v1598 = vunpack.c.l.bf16 %v1148
    %v1599 = vunpack.c.h.bf16 %v1148
    %v1600 = vunpack.c.l.bf16 %v1149
    %v1601 = vunpack.c.h.bf16 %v1149
    %v1602 = vunpack.c.l.bf16 %v1150
    %v1603 = vunpack.c.l.bf16 %v1151
    %v1604 = vunpack.c.h.bf16 %v1151
    %v1605 = vunpack.c.l.bf16 %v1152
    %v1606 = vunpack.c.h.bf16 %v1152
    %v1607 = vunpack.c.l.bf16 %v1153
    %v1608 = vunpack.c.l.bf16 %v1154
    %v1609 = vunpack.c.h.bf16 %v1154
    %v1610 = vunpack.c.l.bf16 %v1155
    %v1611 = vunpack.c.h.bf16 %v1155
    %v1612 = vunpack.c.l.bf16 %v1156
    %v1613 = vunpack.c.l.bf16 %v1157
    %v1614 = vunpack.c.h.bf16 %v1157
    %v1615 = vunpack.c.l.bf16 %v1158
    %v1616 = vunpack.c.h.bf16 %v1158
    %v1617 = vunpack.c.l.bf16 %v1159
    %v1618 = vunpack.c.l.bf16 %v1160
    %v1619 = vunpack.c.h.bf16 %v1160
    %v1620 = vunpack.c.l.bf16 %v1161
    %v1621 = vunpack.c.h.bf16 %v1161
    %v1622 = vunpack.c.l.bf16 %v1162
    %v1623 = vunpack.c.l.bf16 %v1163
    %v1624 = vunpack.c.h.bf16 %v1163
    %v1625 = vunpack.c.l.bf16 %v1164
    %v1626 = vunpack.c.h.bf16 %v1164
    %v1627 = vunpack.c.l.bf16 %v1165
    %v1628 = vunpack.c.l.bf16 %v1166
    %v1629 = vunpack.c.h.bf16 %v1166
    %v1630 = vunpack.c.l.bf16 %v1167
    %v1631 = vunpack.c.h.bf16 %v1167
    %v1632 = vunpack.c.l.bf16 %v1168
    %v1633 = vunpack.c.l.bf16 %v1169
    %v1634 = vunpack.c.h.bf16 %v1169
    %v1635 = vunpack.c.l.bf16 %v1170
    %v1636 = vunpack.c.h.bf16 %v1170
    %v1637 = vunpack.c.l.bf16 %v1171
    %v1638 = vunpack.c.l.bf16 %v1172
    %v1639 = vunpack.c.h.bf16 %v1172
    %v1640 = vunpack.c.l.bf16 %v1173
    %v1641 = vunpack.c.h.bf16 %v1173
    %v1642 = vunpack.c.l.bf16 %v1174
    %v1643 = vunpack.c.l.bf16 %v1175
    %v1644 = vunpack.c.h.bf16 %v1175
    %v1645 = vunpack.c.l.bf16 %v1176
    %v1646 = vunpack.c.h.bf16 %v1176
    %v1647 = vunpack.c.l.bf16 %v1177
    %v1648 = vunpack.c.l.bf16 %v1178
    %v1649 = vunpack.c.h.bf16 %v1178
    %v1650 = vunpack.c.l.bf16 %v1179
    %v1651 = vunpack.c.h.bf16 %v1179
    %v1652 = vunpack.c.l.bf16 %v1180
    %v1653 = vunpack.c.l.bf16 %v1181
    %v1654 = vunpack.c.h.bf16 %v1181
    %v1655 = vunpack.c.l.bf16 %v1182
    %v1656 = vunpack.c.h.bf16 %v1182
    %v1657 = vunpack.c.l.bf16 %v1183
    %v1658 = vunpack.c.l.bf16 %v1184
    %v1659 = vunpack.c.h.bf16 %v1184
    %v1660 = vunpack.c.l.bf16 %v1185
    %v1661 = vunpack.c.h.bf16 %v1185
    %v1662 = vunpack.c.l.bf16 %v1186
    %v1663 = vunpack.c.l.bf16 %v1187
    %v1664 = vunpack.c.h.bf16 %v1187
    %v1665 = vunpack.c.l.bf16 %v1188
    %v1666 = vunpack.c.h.bf16 %v1188
    %v1667 = vunpack.c.l.bf16 %v1189
    %v1668 = vunpack.c.l.bf16 %v1190
    %v1669 = vunpack.c.h.bf16 %v1190
    %v1670 = vunpack.c.l.bf16 %v1191
    %v1671 = vunpack.c.h.bf16 %v1191
    %v1672 = vunpack.c.l.bf16 %v1192
    %v1673 = vunpack.c.l.bf16 %v1193
    %v1674 = vunpack.c.h.bf16 %v1193
    %v1675 = vunpack.c.l.bf16 %v1194
    %v1676 = vunpack.c.h.bf16 %v1194
    %v1677 = vunpack.c.l.bf16 %v1195
    %v1678 = vunpack.c.l.bf16 %v1196
    %v1679 = vunpack.c.h.bf16 %v1196
    %v1680 = vunpack.c.l.bf16 %v1197
    %v1681 = vunpack.c.h.bf16 %v1197
    %v1682 = vunpack.c.l.bf16 %v1198
    %v1683 = vunpack.c.l.bf16 %v1199
    %v1684 = vunpack.c.h.bf16 %v1199
    %v1685 = vunpack.c.l.bf16 %v1200
    %v1686 = vunpack.c.h.bf16 %v1200
    %v1687 = vunpack.c.l.bf16 %v1201
    %v1688 = vunpack.c.l.bf16 %v1202
    %v1689 = vunpack.c.h.bf16 %v1202
    %v1690 = vunpack.c.l.bf16 %v1203
    %v1691 = vunpack.c.h.bf16 %v1203
    %v1692 = vunpack.c.l.bf16 %v1204
    %v1693 = vunpack.c.l.bf16 %v1205
    %v1694 = vunpack.c.h.bf16 %v1205
    %v1695 = vunpack.c.l.bf16 %v1206
    %v1696 = vunpack.c.h.bf16 %v1206
    %v1697 = vunpack.c.l.bf16 %v1207
    %v1698 = vunpack.c.l.bf16 %v1208
    %v1699 = vunpack.c.h.bf16 %v1208
    %v1700 = vunpack.c.l.bf16 %v1209
    %v1701 = vunpack.c.h.bf16 %v1209
    %v1702 = vunpack.c.l.bf16 %v1210
    %v1703 = vunpack.c.l.bf16 %v1211
    %v1704 = vunpack.c.h.bf16 %v1211
    %v1705 = vunpack.c.l.bf16 %v1212
    %v1706 = vunpack.c.h.bf16 %v1212
    %v1707 = vunpack.c.l.bf16 %v1213
    %v1708 = vunpack.c.l.bf16 %v1214
    %v1709 = vunpack.c.h.bf16 %v1214
    %v1710 = vunpack.c.l.bf16 %v1215
    %v1711 = vunpack.c.h.bf16 %v1215
    %v1712 = vunpack.c.l.bf16 %v1216
    %v1713 = vunpack.c.l.bf16 %v1217
    %v1714 = vunpack.c.h.bf16 %v1217
    %v1715 = vunpack.c.l.bf16 %v1218
    %v1716 = vunpack.c.h.bf16 %v1218
    %v1717 = vunpack.c.l.bf16 %v1219
    %v1718 = vunpack.c.l.bf16 %v1220
    %v1719 = vunpack.c.h.bf16 %v1220
    %v1720 = vunpack.c.l.bf16 %v1221
    %v1721 = vunpack.c.h.bf16 %v1221
    %v1722 = vunpack.c.l.bf16 %v1222
    %v1723 = vunpack.c.l.bf16 %v1223
    %v1724 = vunpack.c.h.bf16 %v1223
    %v1725 = vunpack.c.l.bf16 %v1224
    %v1726 = vunpack.c.h.bf16 %v1224
    %v1727 = vunpack.c.l.bf16 %v1225
    %v1728 = vunpack.c.l.bf16 %v1226
    %v1729 = vunpack.c.h.bf16 %v1226
    %v1730 = vunpack.c.l.bf16 %v1227
    %v1731 = vunpack.c.h.bf16 %v1227
    %v1732 = vunpack.c.l.bf16 %v1228
    %v1733 = vunpack.c.l.bf16 %v1229
    %v1734 = vunpack.c.h.bf16 %v1229
    %v1735 = vunpack.c.l.bf16 %v1230
    %v1736 = vunpack.c.h.bf16 %v1230
    %v1737 = vunpack.c.l.bf16 %v1231
    %v1738 = vunpack.c.l.bf16 %v1232
    %v1739 = vunpack.c.h.bf16 %v1232
    %v1740 = vunpack.c.l.bf16 %v1233
    %v1741 = vunpack.c.h.bf16 %v1233
    %v1742 = vunpack.c.l.bf16 %v1234
    %v1743 = vunpack.c.l.bf16 %v1235
    %v1744 = vunpack.c.h.bf16 %v1235
    %v1745 = vunpack.c.l.bf16 %v1236
    %v1746 = vunpack.c.h.bf16 %v1236
    %v1747 = vunpack.c.l.bf16 %v1237
    %v1748 = vunpack.c.l.bf16 %v1238
    %v1749 = vunpack.c.h.bf16 %v1238
    %v1750 = vunpack.c.l.bf16 %v1239
    %v1751 = vunpack.c.h.bf16 %v1239
    %v1752 = vunpack.c.l.bf16 %v1240
    %v1753 = vunpack.c.l.bf16 %v1241
    %v1754 = vunpack.c.h.bf16 %v1241
    %v1755 = vunpack.c.l.bf16 %v1242
    %v1756 = vunpack.c.h.bf16 %v1242
    %v1757 = vunpack.c.l.bf16 %v1243
    %v1758 = vunpack.c.l.bf16 %v1244
    %v1759 = vunpack.c.h.bf16 %v1244
    %v1760 = vunpack.c.l.bf16 %v1245
    %v1761 = vunpack.c.h.bf16 %v1245
    %v1762 = vunpack.c.l.bf16 %v1246
    %v1763 = vunpack.c.l.bf16 %v1247
    %v1764 = vunpack.c.h.bf16 %v1247
    %v1765 = vunpack.c.l.bf16 %v1248
    %v1766 = vunpack.c.h.bf16 %v1248
    %v1767 = vunpack.c.l.bf16 %v1249
    %v1768 = vunpack.c.l.bf16 %v1250
    %v1769 = vunpack.c.h.bf16 %v1250
    %v1770 = vunpack.c.l.bf16 %v1251
    %v1771 = vunpack.c.h.bf16 %v1251
    %v1772 = vunpack.c.l.bf16 %v1252
    %v1773 = vunpack.c.l.bf16 %v1253
    %v1774 = vunpack.c.h.bf16 %v1253
    %v1775 = vunpack.c.l.bf16 %v1254
    %v1776 = vunpack.c.h.bf16 %v1254
    %v1777 = vunpack.c.l.bf16 %v1255
    %v1778 = vunpack.c.l.bf16 %v1256
    %v1779 = vunpack.c.h.bf16 %v1256
    %v1780 = vunpack.c.l.bf16 %v1257
    %v1781 = vunpack.c.h.bf16 %v1257
    %v1782 = vunpack.c.l.bf16 %v1258
    %v1783 = vunpack.c.l.bf16 %v1259
    %v1784 = vunpack.c.h.bf16 %v1259
    %v1785 = vunpack.c.l.bf16 %v1260
    %v1786 = vunpack.c.h.bf16 %v1260
    %v1787 = vunpack.c.l.bf16 %v1261
    %v1788 = vunpack.c.l.bf16 %v1262
    %v1789 = vunpack.c.h.bf16 %v1262
    %v1790 = vunpack.c.l.bf16 %v1263
    %v1791 = vunpack.c.h.bf16 %v1263
    %v1792 = vunpack.c.l.bf16 %v1264
    %v1793 = vunpack.c.l.bf16 %v1265
    %v1794 = vunpack.c.h.bf16 %v1265
    %v1795 = vunpack.c.l.bf16 %v1266
    %v1796 = vunpack.c.h.bf16 %v1266
    %v1797 = vunpack.c.l.bf16 %v1267
    %v1798 = vunpack.c.l.bf16 %v1268
    %v1799 = vunpack.c.h.bf16 %v1268
    %v1800 = vunpack.c.l.bf16 %v1269
    %v1801 = vunpack.c.h.bf16 %v1269
    %v1802 = vunpack.c.l.bf16 %v1270
    %v1803 = vunpack.c.l.bf16 %v1271
    %v1804 = vunpack.c.h.bf16 %v1271
    %v1805 = vunpack.c.l.bf16 %v1272
    %v1806 = vunpack.c.h.bf16 %v1272
    %v1807 = vunpack.c.l.bf16 %v1273
    %v1808 = vunpack.c.l.bf16 %v1274
    %v1809 = vunpack.c.h.bf16 %v1274
    %v1810 = vunpack.c.l.bf16 %v1275
    %v1811 = vunpack.c.h.bf16 %v1275
    %v1812 = vunpack.c.l.bf16 %v1276
    %v1813 = vunpack.c.l.bf16 %v1277
    %v1814 = vunpack.c.h.bf16 %v1277
    %v1815 = vunpack.c.l.bf16 %v1278
    %v1816 = vunpack.c.h.bf16 %v1278
    %v1817 = vunpack.c.l.bf16 %v1279
    %v1818 = vunpack.c.l.bf16 %v1280
    %v1819 = vunpack.c.h.bf16 %v1280
    %v1820 = vunpack.c.l.bf16 %v1281
    %v1821 = vunpack.c.h.bf16 %v1281
    %v1822 = vunpack.c.l.bf16 %v1282
    %v1823 = vunpack.c.l.bf16 %v1283
    %v1824 = vunpack.c.h.bf16 %v1283
    %v1825 = vunpack.c.l.bf16 %v1284
    %v1826 = vunpack.c.h.bf16 %v1284
    %v1827 = vunpack.c.l.bf16 %v1285
    %v1828 = vunpack.c.l.bf16 %v1286
    %v1829 = vunpack.c.h.bf16 %v1286
    %v1830 = vunpack.c.l.bf16 %v1287
    %v1831 = vunpack.c.h.bf16 %v1287
    %v1832 = vunpack.c.l.bf16 %v1288
    %v1833 = vunpack.c.l.bf16 %v1289
    %v1834 = vunpack.c.h.bf16 %v1289
    %v1835 = vunpack.c.l.bf16 %v1290
    %v1836 = vunpack.c.h.bf16 %v1290
    %v1837 = vunpack.c.l.bf16 %v1291
    %v1838 = vunpack.c.l.bf16 %v1292
    %v1839 = vunpack.c.h.bf16 %v1292
    %v1840 = vunpack.c.l.bf16 %v1293
    %v1841 = vunpack.c.h.bf16 %v1293
    %v1842 = vunpack.c.l.bf16 %v1294
    %v1843 = vunpack.c.l.bf16 %v1295
    %v1844 = vunpack.c.h.bf16 %v1295
    %v1845 = vunpack.c.l.bf16 %v1296
    %v1846 = vunpack.c.h.bf16 %v1296
    %v1847 = vunpack.c.l.bf16 %v1297
    %v1848 = vunpack.c.l.bf16 %v1298
    %v1849 = vunpack.c.h.bf16 %v1298
    %v1850 = vunpack.c.l.bf16 %v1299
    %v1851 = vunpack.c.h.bf16 %v1299
    %v1852 = vunpack.c.l.bf16 %v1300
    %v1853 = vunpack.c.l.bf16 %v1301
    %v1854 = vunpack.c.h.bf16 %v1301
    %v1855 = vunpack.c.l.bf16 %v1302
    %v1856 = vunpack.c.h.bf16 %v1302
    %v1857 = vunpack.c.l.bf16 %v1303
    %v1858 = vunpack.c.l.bf16 %v1304
    %v1859 = vunpack.c.h.bf16 %v1304
    %v1860 = vunpack.c.l.bf16 %v1305
    %v1861 = vunpack.c.h.bf16 %v1305
    %v1862 = vunpack.c.l.bf16 %v1306
    %v1863 = vunpack.c.l.bf16 %v1307
    %v1864 = vunpack.c.h.bf16 %v1307
    %v1865 = vunpack.c.l.bf16 %v1308
    %v1866 = vunpack.c.h.bf16 %v1308
    %v1867 = vunpack.c.l.bf16 %v1309
    %v1868 = vunpack.c.l.bf16 %v1310
    %v1869 = vunpack.c.h.bf16 %v1310
    %v1870 = vunpack.c.l.bf16 %v1311
    %v1871 = vunpack.c.h.bf16 %v1311
    %v1872 = vunpack.c.l.bf16 %v1312
    %v1873 = vld [vmem:[#allocation7] sm:$0x1f]
    %v1875 = vlaneseq
    %v1876 = vshrl.u32 %v1875, 7
    %v1877 = vsub.s32 0, %v1876
    %v1878 = vrot.slane %v1873, %v1877
    %v1879 = vlaneseq
    %v1880 = vshrl.u32 %v1879, 7
    %v1881 = vsub.s32 1, %v1880
    %v1882 = vrot.slane %v1873, %v1881
    %v1883 = vlaneseq
    %v1884 = vshrl.u32 %v1883, 7
    %v1885 = vsub.s32 2, %v1884
    %v1886 = vrot.slane %v1873, %v1885
    %v1887 = vlaneseq
    %v1888 = vshrl.u32 %v1887, 7
    %v1889 = vsub.s32 3, %v1888
    %v1890 = vrot.slane %v1873, %v1889
    %v1891 = vlaneseq
    %v1892 = vshrl.u32 %v1891, 7
    %v1893 = vsub.s32 4, %v1892
    %v1894 = vrot.slane %v1873, %v1893
    %1900 = vmatprep.subr.mxu0 %v1389
    %1901 = vmatpush1.msra.mxu0 %v1388
    %1902 = vmatprep.subr.mxu0 %v1384
    %1903 = vmatpush1.msra.mxu0 %v1383
    %1904 = vmatprep.subr.mxu0 %v1379
    %1905 = vmatpush1.msra.mxu0 %v1378
    %1906 = vmatprep.subr.mxu0 %v1374
    %1907 = vmatpush1.msra.mxu0 %v1373
    %1908 = vmatprep.subr.mxu0 %v1369
    %1909 = vmatpush1.msra.mxu0 %v1368
    %1910 = vmatprep.subr.mxu0 %v1364
    %1911 = vmatpush1.msra.mxu0 %v1363
    %1912 = vmatprep.subr.mxu0 %v1359
    %1913 = vmatpush1.msra.mxu0 %v1358
    %1914 = vmatprep.subr.mxu0 %v1354
    %1915 = vmatpush1.msra.mxu0 %v1353
    %1916 = vmatprep.subr.mxu0 %v1349
    %1917 = vmatpush1.msra.mxu0 %v1348
    %1918 = vmatprep.subr.mxu0 %v1344
    %1919 = vmatpush1.msra.mxu0 %v1343
    %1920 = vmatprep.subr.mxu0 %v1339
    %1921 = vmatpush1.msra.mxu0 %v1338
    %1922 = vmatprep.subr.mxu0 %v1334
    %1923 = vmatpush1.msra.mxu0 %v1333
    %1924 = vmatprep.subr.mxu0 %v1329
    %1925 = vmatpush1.msra.mxu0 %v1328
    %1926 = vmatprep.subr.mxu0 %v1324
    %1927 = vmatpush1.msra.mxu0 %v1323
    %1928 = vmatprep.subr.mxu0 %v1319
    %1929 = vmatpush1.msra.mxu0 %v1318
    %1930 = vmatprep.subr.mxu0 %v1314
    %1931 = vmatpush1.msra.mxu0 %v1313
    %1932 = vmatprep.subr.mxu0 %v1469
    %1933 = vmatpush2.msra.mxu0 %v1468
    %1934 = vmatprep.subr.mxu0 %v1464
    %1935 = vmatpush2.msra.mxu0 %v1463
    %1936 = vmatprep.subr.mxu0 %v1459
    %1937 = vmatpush2.msra.mxu0 %v1458
    %1938 = vmatprep.subr.mxu0 %v1454
    %1939 = vmatpush2.msra.mxu0 %v1453
    %1940 = vmatprep.subr.mxu0 %v1449
    %1941 = vmatpush2.msra.mxu0 %v1448
    %1942 = vmatprep.subr.mxu0 %v1444
    %1943 = vmatpush2.msra.mxu0 %v1443
    %1944 = vmatprep.subr.mxu0 %v1439
    %1945 = vmatpush2.msra.mxu0 %v1438
    %1946 = vmatprep.subr.mxu0 %v1434
    %1947 = vmatpush2.msra.mxu0 %v1433
    %1948 = vmatprep.subr.mxu0 %v1429
    %1949 = vmatpush2.msra.mxu0 %v1428
    %1950 = vmatprep.subr.mxu0 %v1424
    %1951 = vmatpush2.msra.mxu0 %v1423
    %1952 = vmatprep.subr.mxu0 %v1419
    %1953 = vmatpush2.msra.mxu0 %v1418
    %1954 = vmatprep.subr.mxu0 %v1414
    %1955 = vmatpush2.msra.mxu0 %v1413
    %1956 = vmatprep.subr.mxu0 %v1409
    %1957 = vmatpush2.msra.mxu0 %v1408
    %1958 = vmatprep.subr.mxu0 %v1404
    %1959 = vmatpush2.msra.mxu0 %v1403
    %1960 = vmatprep.subr.mxu0 %v1399
    %1961 = vmatpush2.msra.mxu0 %v1398
    %1962 = vmatprep.subr.mxu0 %v1394
    %1963 = vmatpush2.msra.mxu0 %v1393
    %1964 = vmatprep.mubr.f32.mxu0 %v866
    %1965 = vmatmul.mubr.f32.gmra.mxu0 %v865
    %v1966 = vpop.f32.mrf.mxu0
    %v1967 = vadd.f32 %v1878, %v1966
    %v1968 = vpop.f32.mrf.mxu0
    %v1969 = vadd.f32 %v1882, %v1968
    %1970 = vmatprep.mubr.f32.mxu0 %v873
    %1971 = vmatmul.mubr.f32.gmra.mxu0 %v872
    %v1972 = vpop.f32.mrf.mxu0
    %v1973 = vadd.f32 %v1878, %v1972
    %v1974 = vpop.f32.mrf.mxu0
    %v1975 = vadd.f32 %v1882, %v1974
    %1976 = vmatprep.mubr.f32.mxu0 %v880
    %1977 = vmatmul.mubr.f32.gmra.mxu0 %v879
    %v1978 = vpop.f32.mrf.mxu0
    %v1979 = vadd.f32 %v1878, %v1978
    %v1980 = vpop.f32.mrf.mxu0
    %v1981 = vadd.f32 %v1882, %v1980
    %1982 = vmatprep.mubr.f32.mxu0 %v887
    %1983 = vmatmul.mubr.f32.gmra.mxu0 %v886
    %v1984 = vpop.f32.mrf.mxu0
    %v1985 = vadd.f32 %v1878, %v1984
    %v1986 = vpop.f32.mrf.mxu0
    %v1987 = vadd.f32 %v1882, %v1986
    %1988 = vmatprep.mubr.f32.mxu0 %v894
    %1989 = vmatmul.mubr.f32.gmra.mxu0 %v893
    %v1990 = vpop.f32.mrf.mxu0
    %v1991 = vadd.f32 %v1878, %v1990
    %v1992 = vpop.f32.mrf.mxu0
    %v1993 = vadd.f32 %v1882, %v1992
    %1994 = vmatprep.mubr.f32.mxu0 %v901
    %1995 = vmatmul.mubr.f32.gmra.mxu0 %v900
    %v1996 = vpop.f32.mrf.mxu0
    %v1997 = vadd.f32 %v1878, %v1996
    %v1998 = vpop.f32.mrf.mxu0
    %v1999 = vadd.f32 %v1882, %v1998
    %2000 = vmatprep.mubr.f32.mxu0 %v908
    %2001 = vmatmul.mubr.f32.gmra.mxu0 %v907
    %v2002 = vpop.f32.mrf.mxu0
    %v2003 = vadd.f32 %v1878, %v2002
    %v2004 = vpop.f32.mrf.mxu0
    %v2005 = vadd.f32 %v1882, %v2004
    %2006 = vmatprep.mubr.f32.mxu0 %v915
    %2007 = vmatmul.mubr.f32.gmra.mxu0 %v914
    %v2008 = vpop.f32.mrf.mxu0
    %v2009 = vadd.f32 %v1878, %v2008
    %v2010 = vpop.f32.mrf.mxu0
    %v2011 = vadd.f32 %v1882, %v2010
    %2012 = vmatprep.mubr.f32.mxu0 %v922
    %2013 = vmatmul.mubr.f32.gmra.mxu0 %v921
    %v2014 = vpop.f32.mrf.mxu0
    %v2015 = vadd.f32 %v1878, %v2014
    %v2016 = vpop.f32.mrf.mxu0
    %v2017 = vadd.f32 %v1882, %v2016
    %2018 = vmatprep.mubr.f32.mxu0 %v929
    %2019 = vmatmul.mubr.f32.gmra.mxu0 %v928
    %v2020 = vpop.f32.mrf.mxu0
    %v2021 = vadd.f32 %v1878, %v2020
    %v2022 = vpop.f32.mrf.mxu0
    %v2023 = vadd.f32 %v1882, %v2022
    %2024 = vmatprep.mubr.f32.mxu0 %v936
    %2025 = vmatmul.mubr.f32.gmra.mxu0 %v935
    %v2026 = vpop.f32.mrf.mxu0
    %v2027 = vadd.f32 %v1878, %v2026
    %v2028 = vpop.f32.mrf.mxu0
    %v2029 = vadd.f32 %v1882, %v2028
    %2030 = vmatprep.mubr.f32.mxu0 %v943
    %2031 = vmatmul.mubr.f32.gmra.mxu0 %v942
    %v2032 = vpop.f32.mrf.mxu0
    %v2033 = vadd.f32 %v1878, %v2032
    %v2034 = vpop.f32.mrf.mxu0
    %v2035 = vadd.f32 %v1882, %v2034
    %2036 = vmatprep.mubr.f32.mxu0 %v950
    %2037 = vmatmul.mubr.f32.gmra.mxu0 %v949
    %v2038 = vpop.f32.mrf.mxu0
    %v2039 = vadd.f32 %v1878, %v2038
    %v2040 = vpop.f32.mrf.mxu0
    %v2041 = vadd.f32 %v1882, %v2040
    %2042 = vmatprep.mubr.f32.mxu0 %v957
    %2043 = vmatmul.mubr.f32.gmra.mxu0 %v956
    %v2044 = vpop.f32.mrf.mxu0
    %v2045 = vadd.f32 %v1878, %v2044
    %v2046 = vpop.f32.mrf.mxu0
    %v2047 = vadd.f32 %v1882, %v2046
    %2048 = vmatprep.mubr.f32.mxu0 %v964
    %2049 = vmatmul.mubr.f32.gmra.mxu0 %v963
    %v2050 = vpop.f32.mrf.mxu0
    %v2051 = vadd.f32 %v1878, %v2050
    %v2052 = vpop.f32.mrf.mxu0
    %v2053 = vadd.f32 %v1882, %v2052
    %2054 = vmatprep.mubr.f32.mxu0 %v971
    %2055 = vmatmul.mubr.f32.gmra.mxu0 %v970
    %v2056 = vpop.f32.mrf.mxu0
    %v2057 = vadd.f32 %v1878, %v2056
    %v2058 = vpop.f32.mrf.mxu0
    %v2059 = vadd.f32 %v1882, %v2058
    %2060 = vdwg.mxu0
    %2061 = vmatprep.subr.mxu0 %v1549
    %2062 = vmatpush1.msra.mxu0 %v1548
    %2063 = vmatprep.subr.mxu0 %v1544
    %2064 = vmatpush1.msra.mxu0 %v1543
    %2065 = vmatprep.subr.mxu0 %v1539
    %2066 = vmatpush1.msra.mxu0 %v1538
    %2067 = vmatprep.subr.mxu0 %v1534
    %2068 = vmatpush1.msra.mxu0 %v1533
    %2069 = vmatprep.subr.mxu0 %v1529
    %2070 = vmatpush1.msra.mxu0 %v1528
    %2071 = vmatprep.subr.mxu0 %v1524
    %2072 = vmatpush1.msra.mxu0 %v1523
    %2073 = vmatprep.subr.mxu0 %v1519
    %2074 = vmatpush1.msra.mxu0 %v1518
    %2075 = vmatprep.subr.mxu0 %v1514
    %2076 = vmatpush1.msra.mxu0 %v1513
    %2077 = vmatprep.subr.mxu0 %v1509
    %2078 = vmatpush1.msra.mxu0 %v1508
    %2079 = vmatprep.subr.mxu0 %v1504
    %2080 = vmatpush1.msra.mxu0 %v1503
    %2081 = vmatprep.subr.mxu0 %v1499
    %2082 = vmatpush1.msra.mxu0 %v1498
    %2083 = vmatprep.subr.mxu0 %v1494
    %2084 = vmatpush1.msra.mxu0 %v1493
    %2085 = vmatprep.subr.mxu0 %v1489
    %2086 = vmatpush1.msra.mxu0 %v1488
    %2087 = vmatprep.subr.mxu0 %v1484
    %2088 = vmatpush1.msra.mxu0 %v1483
    %2089 = vmatprep.subr.mxu0 %v1479
    %2090 = vmatpush1.msra.mxu0 %v1478
    %2091 = vmatprep.subr.mxu0 %v1474
    %2092 = vmatpush1.msra.mxu0 %v1473
    %2093 = vmatprep.subr.mxu0 %v1629
    %2094 = vmatpush2.msra.mxu0 %v1628
    %2095 = vmatprep.subr.mxu0 %v1624
    %2096 = vmatpush2.msra.mxu0 %v1623
    %2097 = vmatprep.subr.mxu0 %v1619
    %2098 = vmatpush2.msra.mxu0 %v1618
    %2099 = vmatprep.subr.mxu0 %v1614
    %2100 = vmatpush2.msra.mxu0 %v1613
    %2101 = vmatprep.subr.mxu0 %v1609
    %2102 = vmatpush2.msra.mxu0 %v1608
    %2103 = vmatprep.subr.mxu0 %v1604
    %2104 = vmatpush2.msra.mxu0 %v1603
    %2105 = vmatprep.subr.mxu0 %v1599
    %2106 = vmatpush2.msra.mxu0 %v1598
    %2107 = vmatprep.subr.mxu0 %v1594
    %2108 = vmatpush2.msra.mxu0 %v1593
    %2109 = vmatprep.subr.mxu0 %v1589
    %2110 = vmatpush2.msra.mxu0 %v1588
    %2111 = vmatprep.subr.mxu0 %v1584
    %2112 = vmatpush2.msra.mxu0 %v1583
    %2113 = vmatprep.subr.mxu0 %v1579
    %2114 = vmatpush2.msra.mxu0 %v1578
    %2115 = vmatprep.subr.mxu0 %v1574
    %2116 = vmatpush2.msra.mxu0 %v1573
    %2117 = vmatprep.subr.mxu0 %v1569
    %2118 = vmatpush2.msra.mxu0 %v1568
    %2119 = vmatprep.subr.mxu0 %v1564
    %2120 = vmatpush2.msra.mxu0 %v1563
    %2121 = vmatprep.subr.mxu0 %v1559
    %2122 = vmatpush2.msra.mxu0 %v1558
    %2123 = vmatprep.subr.mxu0 %v1554
    %2124 = vmatpush2.msra.mxu0 %v1553
    %2125 = vmatprep.mubr.f32.mxu0 %v868
    %2126 = vmatmul.mubr.f32.gmra.mxu0 %v867
    %v2127 = vpop.f32.mrf.mxu0
    %v2128 = vadd.f32 %v1967, %v2127
    %v2129 = vpop.f32.mrf.mxu0
    %v2130 = vadd.f32 %v1969, %v2129
    %2131 = vmatprep.mubr.f32.mxu0 %v875
    %2132 = vmatmul.mubr.f32.gmra.mxu0 %v874
    %v2133 = vpop.f32.mrf.mxu0
    %v2134 = vadd.f32 %v1973, %v2133
    %v2135 = vpop.f32.mrf.mxu0
    %v2136 = vadd.f32 %v1975, %v2135
    %2137 = vmatprep.mubr.f32.mxu0 %v882
    %2138 = vmatmul.mubr.f32.gmra.mxu0 %v881
    %v2139 = vpop.f32.mrf.mxu0
    %v2140 = vadd.f32 %v1979, %v2139
    %v2141 = vpop.f32.mrf.mxu0
    %v2142 = vadd.f32 %v1981, %v2141
    %2143 = vmatprep.mubr.f32.mxu0 %v889
    %2144 = vmatmul.mubr.f32.gmra.mxu0 %v888
    %v2145 = vpop.f32.mrf.mxu0
    %v2146 = vadd.f32 %v1985, %v2145
    %v2147 = vpop.f32.mrf.mxu0
    %v2148 = vadd.f32 %v1987, %v2147
    %2149 = vmatprep.mubr.f32.mxu0 %v896
    %2150 = vmatmul.mubr.f32.gmra.mxu0 %v895
    %v2151 = vpop.f32.mrf.mxu0
    %v2152 = vadd.f32 %v1991, %v2151
    %v2153 = vpop.f32.mrf.mxu0
    %v2154 = vadd.f32 %v1993, %v2153
    %2155 = vmatprep.mubr.f32.mxu0 %v903
    %2156 = vmatmul.mubr.f32.gmra.mxu0 %v902
    %v2157 = vpop.f32.mrf.mxu0
    %v2158 = vadd.f32 %v1997, %v2157
    %v2159 = vpop.f32.mrf.mxu0
    %v2160 = vadd.f32 %v1999, %v2159
    %2161 = vmatprep.mubr.f32.mxu0 %v910
    %2162 = vmatmul.mubr.f32.gmra.mxu0 %v909
    %v2163 = vpop.f32.mrf.mxu0
    %v2164 = vadd.f32 %v2003, %v2163
    %v2165 = vpop.f32.mrf.mxu0
    %v2166 = vadd.f32 %v2005, %v2165
    %2167 = vmatprep.mubr.f32.mxu0 %v917
    %2168 = vmatmul.mubr.f32.gmra.mxu0 %v916
    %v2169 = vpop.f32.mrf.mxu0
    %v2170 = vadd.f32 %v2009, %v2169
    %v2171 = vpop.f32.mrf.mxu0
    %v2172 = vadd.f32 %v2011, %v2171
    %2173 = vmatprep.mubr.f32.mxu0 %v924
    %2174 = vmatmul.mubr.f32.gmra.mxu0 %v923
    %v2175 = vpop.f32.mrf.mxu0
    %v2176 = vadd.f32 %v2015, %v2175
    %v2177 = vpop.f32.mrf.mxu0
    %v2178 = vadd.f32 %v2017, %v2177
    %2179 = vmatprep.mubr.f32.mxu0 %v931
    %2180 = vmatmul.mubr.f32.gmra.mxu0 %v930
    %v2181 = vpop.f32.mrf.mxu0
    %v2182 = vadd.f32 %v2021, %v2181
    %v2183 = vpop.f32.mrf.mxu0
    %v2184 = vadd.f32 %v2023, %v2183
    %2185 = vmatprep.mubr.f32.mxu0 %v938
    %2186 = vmatmul.mubr.f32.gmra.mxu0 %v937
    %v2187 = vpop.f32.mrf.mxu0
    %v2188 = vadd.f32 %v2027, %v2187
    %v2189 = vpop.f32.mrf.mxu0
    %v2190 = vadd.f32 %v2029, %v2189
    %2191 = vmatprep.mubr.f32.mxu0 %v945
    %2192 = vmatmul.mubr.f32.gmra.mxu0 %v944
    %v2193 = vpop.f32.mrf.mxu0
    %v2194 = vadd.f32 %v2033, %v2193
    %v2195 = vpop.f32.mrf.mxu0
    %v2196 = vadd.f32 %v2035, %v2195
    %2197 = vmatprep.mubr.f32.mxu0 %v952
    %2198 = vmatmul.mubr.f32.gmra.mxu0 %v951
    %v2199 = vpop.f32.mrf.mxu0
    %v2200 = vadd.f32 %v2039, %v2199
    %v2201 = vpop.f32.mrf.mxu0
    %v2202 = vadd.f32 %v2041, %v2201
    %2203 = vmatprep.mubr.f32.mxu0 %v959
    %2204 = vmatmul.mubr.f32.gmra.mxu0 %v958
    %v2205 = vpop.f32.mrf.mxu0
    %v2206 = vadd.f32 %v2045, %v2205
    %v2207 = vpop.f32.mrf.mxu0
    %v2208 = vadd.f32 %v2047, %v2207
    %2209 = vmatprep.mubr.f32.mxu0 %v966
    %2210 = vmatmul.mubr.f32.gmra.mxu0 %v965
    %v2211 = vpop.f32.mrf.mxu0
    %v2212 = vadd.f32 %v2051, %v2211
    %v2213 = vpop.f32.mrf.mxu0
    %v2214 = vadd.f32 %v2053, %v2213
    %2215 = vmatprep.mubr.f32.mxu0 %v973
    %2216 = vmatmul.mubr.f32.gmra.mxu0 %v972
    %v2217 = vpop.f32.mrf.mxu0
    %v2218 = vadd.f32 %v2057, %v2217
    %v2219 = vpop.f32.mrf.mxu0
    %v2220 = vadd.f32 %v2059, %v2219
    %2221 = vdwg.mxu0
    %2222 = vmatprep.subr.mxu0 %v1709
    %2223 = vmatpush1.msra.mxu0 %v1708
    %2224 = vmatprep.subr.mxu0 %v1704
    %2225 = vmatpush1.msra.mxu0 %v1703
    %2226 = vmatprep.subr.mxu0 %v1699
    %2227 = vmatpush1.msra.mxu0 %v1698
    %2228 = vmatprep.subr.mxu0 %v1694
    %2229 = vmatpush1.msra.mxu0 %v1693
    %2230 = vmatprep.subr.mxu0 %v1689
    %2231 = vmatpush1.msra.mxu0 %v1688
    %2232 = vmatprep.subr.mxu0 %v1684
    %2233 = vmatpush1.msra.mxu0 %v1683
    %2234 = vmatprep.subr.mxu0 %v1679
    %2235 = vmatpush1.msra.mxu0 %v1678
    %2236 = vmatprep.subr.mxu0 %v1674
    %2237 = vmatpush1.msra.mxu0 %v1673
    %2238 = vmatprep.subr.mxu0 %v1669
    %2239 = vmatpush1.msra.mxu0 %v1668
    %2240 = vmatprep.subr.mxu0 %v1664
    %2241 = vmatpush1.msra.mxu0 %v1663
    %2242 = vmatprep.subr.mxu0 %v1659
    %2243 = vmatpush1.msra.mxu0 %v1658
    %2244 = vmatprep.subr.mxu0 %v1654
    %2245 = vmatpush1.msra.mxu0 %v1653
    %2246 = vmatprep.subr.mxu0 %v1649
    %2247 = vmatpush1.msra.mxu0 %v1648
    %2248 = vmatprep.subr.mxu0 %v1644
    %2249 = vmatpush1.msra.mxu0 %v1643
    %2250 = vmatprep.subr.mxu0 %v1639
    %2251 = vmatpush1.msra.mxu0 %v1638
    %2252 = vmatprep.subr.mxu0 %v1634
    %2253 = vmatpush1.msra.mxu0 %v1633
    %2254 = vmatprep.subr.mxu0 %v1789
    %2255 = vmatpush2.msra.mxu0 %v1788
    %2256 = vmatprep.subr.mxu0 %v1784
    %2257 = vmatpush2.msra.mxu0 %v1783
    %2258 = vmatprep.subr.mxu0 %v1779
    %2259 = vmatpush2.msra.mxu0 %v1778
    %2260 = vmatprep.subr.mxu0 %v1774
    %2261 = vmatpush2.msra.mxu0 %v1773
    %2262 = vmatprep.subr.mxu0 %v1769
    %2263 = vmatpush2.msra.mxu0 %v1768
    %2264 = vmatprep.subr.mxu0 %v1764
    %2265 = vmatpush2.msra.mxu0 %v1763
    %2266 = vmatprep.subr.mxu0 %v1759
    %2267 = vmatpush2.msra.mxu0 %v1758
    %2268 = vmatprep.subr.mxu0 %v1754
    %2269 = vmatpush2.msra.mxu0 %v1753
    %2270 = vmatprep.subr.mxu0 %v1749
    %2271 = vmatpush2.msra.mxu0 %v1748
    %2272 = vmatprep.subr.mxu0 %v1744
    %2273 = vmatpush2.msra.mxu0 %v1743
    %2274 = vmatprep.subr.mxu0 %v1739
    %2275 = vmatpush2.msra.mxu0 %v1738
    %2276 = vmatprep.subr.mxu0 %v1734
    %2277 = vmatpush2.msra.mxu0 %v1733
    %2278 = vmatprep.subr.mxu0 %v1729
    %2279 = vmatpush2.msra.mxu0 %v1728
    %2280 = vmatprep.subr.mxu0 %v1724
    %2281 = vmatpush2.msra.mxu0 %v1723
    %2282 = vmatprep.subr.mxu0 %v1719
    %2283 = vmatpush2.msra.mxu0 %v1718
    %2284 = vmatprep.subr.mxu0 %v1714
    %2285 = vmatpush2.msra.mxu0 %v1713
    %2286 = vmatprep.mubr.f32.mxu0 %v870
    %2287 = vmatmul.mubr.f32.gmra.mxu0 %v869
    %v2288 = vpop.f32.mrf.mxu0
    %v2289 = vadd.f32 %v2128, %v2288
    %v2290 = vpop.f32.mrf.mxu0
    %v2291 = vadd.f32 %v2130, %v2290
    %2292 = vmatprep.mubr.f32.mxu0 %v877
    %2293 = vmatmul.mubr.f32.gmra.mxu0 %v876
    %v2294 = vpop.f32.mrf.mxu0
    %v2295 = vadd.f32 %v2134, %v2294
    %v2296 = vpop.f32.mrf.mxu0
    %v2297 = vadd.f32 %v2136, %v2296
    %2298 = vmatprep.mubr.f32.mxu0 %v884
    %2299 = vmatmul.mubr.f32.gmra.mxu0 %v883
    %v2300 = vpop.f32.mrf.mxu0
    %v2301 = vadd.f32 %v2140, %v2300
    %v2302 = vpop.f32.mrf.mxu0
    %v2303 = vadd.f32 %v2142, %v2302
    %2304 = vmatprep.mubr.f32.mxu0 %v891
    %2305 = vmatmul.mubr.f32.gmra.mxu0 %v890
    %v2306 = vpop.f32.mrf.mxu0
    %v2307 = vadd.f32 %v2146, %v2306
    %v2308 = vpop.f32.mrf.mxu0
    %v2309 = vadd.f32 %v2148, %v2308
    %2310 = vmatprep.mubr.f32.mxu0 %v898
    %2311 = vmatmul.mubr.f32.gmra.mxu0 %v897
    %v2312 = vpop.f32.mrf.mxu0
    %v2313 = vadd.f32 %v2152, %v2312
    %v2314 = vpop.f32.mrf.mxu0
    %v2315 = vadd.f32 %v2154, %v2314
    %2316 = vmatprep.mubr.f32.mxu0 %v905
    %2317 = vmatmul.mubr.f32.gmra.mxu0 %v904
    %v2318 = vpop.f32.mrf.mxu0
    %v2319 = vadd.f32 %v2158, %v2318
    %v2320 = vpop.f32.mrf.mxu0
    %v2321 = vadd.f32 %v2160, %v2320
    %2322 = vmatprep.mubr.f32.mxu0 %v912
    %2323 = vmatmul.mubr.f32.gmra.mxu0 %v911
    %v2324 = vpop.f32.mrf.mxu0
    %v2325 = vadd.f32 %v2164, %v2324
    %v2326 = vpop.f32.mrf.mxu0
    %v2327 = vadd.f32 %v2166, %v2326
    %2328 = vmatprep.mubr.f32.mxu0 %v919
    %2329 = vmatmul.mubr.f32.gmra.mxu0 %v918
    %v2330 = vpop.f32.mrf.mxu0
    %v2331 = vadd.f32 %v2170, %v2330
    %v2332 = vpop.f32.mrf.mxu0
    %v2333 = vadd.f32 %v2172, %v2332
    %2334 = vmatprep.mubr.f32.mxu0 %v926
    %2335 = vmatmul.mubr.f32.gmra.mxu0 %v925
    %v2336 = vpop.f32.mrf.mxu0
    %v2337 = vadd.f32 %v2176, %v2336
    %v2338 = vpop.f32.mrf.mxu0
    %v2339 = vadd.f32 %v2178, %v2338
    %2340 = vmatprep.mubr.f32.mxu0 %v933
    %2341 = vmatmul.mubr.f32.gmra.mxu0 %v932
    %v2342 = vpop.f32.mrf.mxu0
    %v2343 = vadd.f32 %v2182, %v2342
    %v2344 = vpop.f32.mrf.mxu0
    %v2345 = vadd.f32 %v2184, %v2344
    %2346 = vmatprep.mubr.f32.mxu0 %v940
    %2347 = vmatmul.mubr.f32.gmra.mxu0 %v939
    %v2348 = vpop.f32.mrf.mxu0
    %v2349 = vadd.f32 %v2188, %v2348
    %v2350 = vpop.f32.mrf.mxu0
    %v2351 = vadd.f32 %v2190, %v2350
    %2352 = vmatprep.mubr.f32.mxu0 %v947
    %2353 = vmatmul.mubr.f32.gmra.mxu0 %v946
    %v2354 = vpop.f32.mrf.mxu0
    %v2355 = vadd.f32 %v2194, %v2354
    %v2356 = vpop.f32.mrf.mxu0
    %v2357 = vadd.f32 %v2196, %v2356
    %2358 = vmatprep.mubr.f32.mxu0 %v954
    %2359 = vmatmul.mubr.f32.gmra.mxu0 %v953
    %v2360 = vpop.f32.mrf.mxu0
    %v2361 = vadd.f32 %v2200, %v2360
    %v2362 = vpop.f32.mrf.mxu0
    %v2363 = vadd.f32 %v2202, %v2362
    %2364 = vmatprep.mubr.f32.mxu0 %v961
    %2365 = vmatmul.mubr.f32.gmra.mxu0 %v960
    %v2366 = vpop.f32.mrf.mxu0
    %v2367 = vadd.f32 %v2206, %v2366
    %v2368 = vpop.f32.mrf.mxu0
    %v2369 = vadd.f32 %v2208, %v2368
    %2370 = vmatprep.mubr.f32.mxu0 %v968
    %2371 = vmatmul.mubr.f32.gmra.mxu0 %v967
    %v2372 = vpop.f32.mrf.mxu0
    %v2373 = vadd.f32 %v2212, %v2372
    %v2374 = vpop.f32.mrf.mxu0
    %v2375 = vadd.f32 %v2214, %v2374
    %2376 = vmatprep.mubr.f32.mxu0 %v975
    %2377 = vmatmul.mubr.f32.gmra.mxu0 %v974
    %v2378 = vpop.f32.mrf.mxu0
    %v2379 = vadd.f32 %v2218, %v2378
    %v2380 = vpop.f32.mrf.mxu0
    %v2381 = vadd.f32 %v2220, %v2380
    %2382 = vdwg.mxu0
    %2383 = vmatprep.subr.mxu0 %v1869
    %2384 = vmatpush1.msra.mxu0 %v1868
    %2385 = vmatprep.subr.mxu0 %v1864
    %2386 = vmatpush1.msra.mxu0 %v1863
    %2387 = vmatprep.subr.mxu0 %v1859
    %2388 = vmatpush1.msra.mxu0 %v1858
    %2389 = vmatprep.subr.mxu0 %v1854
    %2390 = vmatpush1.msra.mxu0 %v1853
    %2391 = vmatprep.subr.mxu0 %v1849
    %2392 = vmatpush1.msra.mxu0 %v1848
    %2393 = vmatprep.subr.mxu0 %v1844
    %2394 = vmatpush1.msra.mxu0 %v1843
    %2395 = vmatprep.subr.mxu0 %v1839
    %2396 = vmatpush1.msra.mxu0 %v1838
    %2397 = vmatprep.subr.mxu0 %v1834
    %2398 = vmatpush1.msra.mxu0 %v1833
    %2399 = vmatprep.subr.mxu0 %v1829
    %2400 = vmatpush1.msra.mxu0 %v1828
    %2401 = vmatprep.subr.mxu0 %v1824
    %2402 = vmatpush1.msra.mxu0 %v1823
    %2403 = vmatprep.subr.mxu0 %v1819
    %2404 = vmatpush1.msra.mxu0 %v1818
    %2405 = vmatprep.subr.mxu0 %v1814
    %2406 = vmatpush1.msra.mxu0 %v1813
    %2407 = vmatprep.subr.mxu0 %v1809
    %2408 = vmatpush1.msra.mxu0 %v1808
    %2409 = vmatprep.subr.mxu0 %v1804
    %2410 = vmatpush1.msra.mxu0 %v1803
    %2411 = vmatprep.subr.mxu0 %v1799
    %2412 = vmatpush1.msra.mxu0 %v1798
    %2413 = vmatprep.subr.mxu0 %v1794
    %2414 = vmatpush1.msra.mxu0 %v1793
    %2415 = vmatprep.subr.mxu0 0.0
    %2416 = vmatpush2.msra.mxu0 0.0
    %2417 = vmatprep.subr.mxu0 0.0
    %2418 = vmatpush2.msra.mxu0 0.0
    %2419 = vmatprep.subr.mxu0 0.0
    %2420 = vmatpush2.msra.mxu0 0.0
    %2421 = vmatprep.subr.mxu0 0.0
    %2422 = vmatpush2.msra.mxu0 0.0
    %2423 = vmatprep.subr.mxu0 0.0
    %2424 = vmatpush2.msra.mxu0 0.0
    %2425 = vmatprep.subr.mxu0 0.0
    %2426 = vmatpush2.msra.mxu0 0.0
    %2427 = vmatprep.subr.mxu0 0.0
    %2428 = vmatpush2.msra.mxu0 0.0
    %2429 = vmatprep.subr.mxu0 0.0
    %2430 = vmatpush2.msra.mxu0 0.0
    %2431 = vmatprep.subr.mxu0 0.0
    %2432 = vmatpush2.msra.mxu0 0.0
    %2433 = vmatprep.subr.mxu0 0.0
    %2434 = vmatpush2.msra.mxu0 0.0
    %2435 = vmatprep.subr.mxu0 0.0
    %2436 = vmatpush2.msra.mxu0 0.0
    %2437 = vmatprep.subr.mxu0 0.0
    %2438 = vmatpush2.msra.mxu0 0.0
    %2439 = vmatprep.subr.mxu0 0.0
    %2440 = vmatpush2.msra.mxu0 0.0
    %2441 = vmatprep.subr.mxu0 0.0
    %2442 = vmatpush2.msra.mxu0 0.0
    %2443 = vmatprep.subr.mxu0 0.0
    %2444 = vmatpush2.msra.mxu0 0.0
    %2445 = vmatprep.subr.mxu0 0.0
    %2446 = vmatpush2.msra.mxu0 0.0
    %2447 = vmatprep.mubr.f32.mxu0 0.0
    %2448 = vmatmul.mubr.f32.gmra.mxu0 %v871
    %v2449 = vpop.f32.mrf.mxu0
    %v2450 = vadd.f32 %v2289, %v2449
    %v2451 = vpop.f32.mrf.mxu0
    %v2452 = vadd.f32 %v2291, %v2451
    %2453 = vmatprep.mubr.f32.mxu0 0.0
    %2454 = vmatmul.mubr.f32.gmra.mxu0 %v878
    %v2455 = vpop.f32.mrf.mxu0
    %v2456 = vadd.f32 %v2295, %v2455
    %v2457 = vpop.f32.mrf.mxu0
    %v2458 = vadd.f32 %v2297, %v2457
    %2459 = vmatprep.mubr.f32.mxu0 0.0
    %2460 = vmatmul.mubr.f32.gmra.mxu0 %v885
    %v2461 = vpop.f32.mrf.mxu0
    %v2462 = vadd.f32 %v2301, %v2461
    %v2463 = vpop.f32.mrf.mxu0
    %v2464 = vadd.f32 %v2303, %v2463
    %2465 = vmatprep.mubr.f32.mxu0 0.0
    %2466 = vmatmul.mubr.f32.gmra.mxu0 %v892
    %v2467 = vpop.f32.mrf.mxu0
    %v2468 = vadd.f32 %v2307, %v2467
    %v2469 = vpop.f32.mrf.mxu0
    %v2470 = vadd.f32 %v2309, %v2469
    %2471 = vmatprep.mubr.f32.mxu0 0.0
    %2472 = vmatmul.mubr.f32.gmra.mxu0 %v899
    %v2473 = vpop.f32.mrf.mxu0
    %v2474 = vadd.f32 %v2313, %v2473
    %v2475 = vpop.f32.mrf.mxu0
    %v2476 = vadd.f32 %v2315, %v2475
    %2477 = vmatprep.mubr.f32.mxu0 0.0
    %2478 = vmatmul.mubr.f32.gmra.mxu0 %v906
    %v2479 = vpop.f32.mrf.mxu0
    %v2480 = vadd.f32 %v2319, %v2479
    %v2481 = vpop.f32.mrf.mxu0
    %v2482 = vadd.f32 %v2321, %v2481
    %2483 = vmatprep.mubr.f32.mxu0 0.0
    %2484 = vmatmul.mubr.f32.gmra.mxu0 %v913
    %v2485 = vpop.f32.mrf.mxu0
    %v2486 = vadd.f32 %v2325, %v2485
    %v2487 = vpop.f32.mrf.mxu0
    %v2488 = vadd.f32 %v2327, %v2487
    %2489 = vmatprep.mubr.f32.mxu0 0.0
    %2490 = vmatmul.mubr.f32.gmra.mxu0 %v920
    %v2491 = vpop.f32.mrf.mxu0
    %v2492 = vadd.f32 %v2331, %v2491
    %v2493 = vpop.f32.mrf.mxu0
    %v2494 = vadd.f32 %v2333, %v2493
    %2495 = vmatprep.mubr.f32.mxu0 0.0
    %2496 = vmatmul.mubr.f32.gmra.mxu0 %v927
    %v2497 = vpop.f32.mrf.mxu0
    %v2498 = vadd.f32 %v2337, %v2497
    %v2499 = vpop.f32.mrf.mxu0
    %v2500 = vadd.f32 %v2339, %v2499
    %2501 = vmatprep.mubr.f32.mxu0 0.0
    %2502 = vmatmul.mubr.f32.gmra.mxu0 %v934
    %v2503 = vpop.f32.mrf.mxu0
    %v2504 = vadd.f32 %v2343, %v2503
    %v2505 = vpop.f32.mrf.mxu0
    %v2506 = vadd.f32 %v2345, %v2505
    %2507 = vmatprep.mubr.f32.mxu0 0.0
    %2508 = vmatmul.mubr.f32.gmra.mxu0 %v941
    %v2509 = vpop.f32.mrf.mxu0
    %v2510 = vadd.f32 %v2349, %v2509
    %v2511 = vpop.f32.mrf.mxu0
    %v2512 = vadd.f32 %v2351, %v2511
    %2513 = vmatprep.mubr.f32.mxu0 0.0
    %2514 = vmatmul.mubr.f32.gmra.mxu0 %v948
    %v2515 = vpop.f32.mrf.mxu0
    %v2516 = vadd.f32 %v2355, %v2515
    %v2517 = vpop.f32.mrf.mxu0
    %v2518 = vadd.f32 %v2357, %v2517
    %2519 = vmatprep.mubr.f32.mxu0 0.0
    %2520 = vmatmul.mubr.f32.gmra.mxu0 %v955
    %v2521 = vpop.f32.mrf.mxu0
    %v2522 = vadd.f32 %v2361, %v2521
    %v2523 = vpop.f32.mrf.mxu0
    %v2524 = vadd.f32 %v2363, %v2523
    %2525 = vmatprep.mubr.f32.mxu0 0.0
    %2526 = vmatmul.mubr.f32.gmra.mxu0 %v962
    %v2527 = vpop.f32.mrf.mxu0
    %v2528 = vadd.f32 %v2367, %v2527
    %v2529 = vpop.f32.mrf.mxu0
    %v2530 = vadd.f32 %v2369, %v2529
    %2531 = vmatprep.mubr.f32.mxu0 0.0
    %2532 = vmatmul.mubr.f32.gmra.mxu0 %v969
    %v2533 = vpop.f32.mrf.mxu0
    %v2534 = vadd.f32 %v2373, %v2533
    %v2535 = vpop.f32.mrf.mxu0
    %v2536 = vadd.f32 %v2375, %v2535
    %2537 = vmatprep.mubr.f32.mxu0 0.0
    %2538 = vmatmul.mubr.f32.gmra.mxu0 %v976
    %v2539 = vpop.f32.mrf.mxu0
    %v2540 = vadd.f32 %v2379, %v2539
    %v2541 = vpop.f32.mrf.mxu0
    %v2542 = vadd.f32 %v2381, %v2541
    %2543 = vdwg.mxu0
    %2544 = vmatprep.subr.mxu0 %v1391
    %2545 = vmatpush1.msra.mxu0 %v1390
    %2546 = vmatprep.subr.mxu0 %v1386
    %2547 = vmatpush1.msra.mxu0 %v1385
    %2548 = vmatprep.subr.mxu0 %v1381
    %2549 = vmatpush1.msra.mxu0 %v1380
    %2550 = vmatprep.subr.mxu0 %v1376
    %2551 = vmatpush1.msra.mxu0 %v1375
    %2552 = vmatprep.subr.mxu0 %v1371
    %2553 = vmatpush1.msra.mxu0 %v1370
    %2554 = vmatprep.subr.mxu0 %v1366
    %2555 = vmatpush1.msra.mxu0 %v1365
    %2556 = vmatprep.subr.mxu0 %v1361
    %2557 = vmatpush1.msra.mxu0 %v1360
    %2558 = vmatprep.subr.mxu0 %v1356
    %2559 = vmatpush1.msra.mxu0 %v1355
    %2560 = vmatprep.subr.mxu0 %v1351
    %2561 = vmatpush1.msra.mxu0 %v1350
    %2562 = vmatprep.subr.mxu0 %v1346
    %2563 = vmatpush1.msra.mxu0 %v1345
    %2564 = vmatprep.subr.mxu0 %v1341
    %2565 = vmatpush1.msra.mxu0 %v1340
    %2566 = vmatprep.subr.mxu0 %v1336
    %2567 = vmatpush1.msra.mxu0 %v1335
    %2568 = vmatprep.subr.mxu0 %v1331
    %2569 = vmatpush1.msra.mxu0 %v1330
    %2570 = vmatprep.subr.mxu0 %v1326
    %2571 = vmatpush1.msra.mxu0 %v1325
    %2572 = vmatprep.subr.mxu0 %v1321
    %2573 = vmatpush1.msra.mxu0 %v1320
    %2574 = vmatprep.subr.mxu0 %v1316
    %2575 = vmatpush1.msra.mxu0 %v1315
    %2576 = vmatprep.subr.mxu0 %v1471
    %2577 = vmatpush2.msra.mxu0 %v1470
    %2578 = vmatprep.subr.mxu0 %v1466
    %2579 = vmatpush2.msra.mxu0 %v1465
    %2580 = vmatprep.subr.mxu0 %v1461
    %2581 = vmatpush2.msra.mxu0 %v1460
    %2582 = vmatprep.subr.mxu0 %v1456
    %2583 = vmatpush2.msra.mxu0 %v1455
    %2584 = vmatprep.subr.mxu0 %v1451
    %2585 = vmatpush2.msra.mxu0 %v1450
    %2586 = vmatprep.subr.mxu0 %v1446
    %2587 = vmatpush2.msra.mxu0 %v1445
    %2588 = vmatprep.subr.mxu0 %v1441
    %2589 = vmatpush2.msra.mxu0 %v1440
    %2590 = vmatprep.subr.mxu0 %v1436
    %2591 = vmatpush2.msra.mxu0 %v1435
    %2592 = vmatprep.subr.mxu0 %v1431
    %2593 = vmatpush2.msra.mxu0 %v1430
    %2594 = vmatprep.subr.mxu0 %v1426
    %2595 = vmatpush2.msra.mxu0 %v1425
    %2596 = vmatprep.subr.mxu0 %v1421
    %2597 = vmatpush2.msra.mxu0 %v1420
    %2598 = vmatprep.subr.mxu0 %v1416
    %2599 = vmatpush2.msra.mxu0 %v1415
    %2600 = vmatprep.subr.mxu0 %v1411
    %2601 = vmatpush2.msra.mxu0 %v1410
    %2602 = vmatprep.subr.mxu0 %v1406
    %2603 = vmatpush2.msra.mxu0 %v1405
    %2604 = vmatprep.subr.mxu0 %v1401
    %2605 = vmatpush2.msra.mxu0 %v1400
    %2606 = vmatprep.subr.mxu0 %v1396
    %2607 = vmatpush2.msra.mxu0 %v1395
    %2608 = vmatprep.mubr.f32.mxu0 %v866
    %2609 = vmatmul.mubr.f32.gmra.mxu0 %v865
    %v2610 = vpop.f32.mrf.mxu0
    %v2611 = vadd.f32 %v1886, %v2610
    %v2612 = vpop.f32.mrf.mxu0
    %v2613 = vadd.f32 %v1890, %v2612
    %2614 = vmatprep.mubr.f32.mxu0 %v873
    %2615 = vmatmul.mubr.f32.gmra.mxu0 %v872
    %v2616 = vpop.f32.mrf.mxu0
    %v2617 = vadd.f32 %v1886, %v2616
    %v2618 = vpop.f32.mrf.mxu0
    %v2619 = vadd.f32 %v1890, %v2618
    %2620 = vmatprep.mubr.f32.mxu0 %v880
    %2621 = vmatmul.mubr.f32.gmra.mxu0 %v879
    %v2622 = vpop.f32.mrf.mxu0
    %v2623 = vadd.f32 %v1886, %v2622
    %v2624 = vpop.f32.mrf.mxu0
    %v2625 = vadd.f32 %v1890, %v2624
    %2626 = vmatprep.mubr.f32.mxu0 %v887
    %2627 = vmatmul.mubr.f32.gmra.mxu0 %v886
    %v2628 = vpop.f32.mrf.mxu0
    %v2629 = vadd.f32 %v1886, %v2628
    %v2630 = vpop.f32.mrf.mxu0
    %v2631 = vadd.f32 %v1890, %v2630
    %2632 = vmatprep.mubr.f32.mxu0 %v894
    %2633 = vmatmul.mubr.f32.gmra.mxu0 %v893
    %v2634 = vpop.f32.mrf.mxu0
    %v2635 = vadd.f32 %v1886, %v2634
    %v2636 = vpop.f32.mrf.mxu0
    %v2637 = vadd.f32 %v1890, %v2636
    %2638 = vmatprep.mubr.f32.mxu0 %v901
    %2639 = vmatmul.mubr.f32.gmra.mxu0 %v900
    %v2640 = vpop.f32.mrf.mxu0
    %v2641 = vadd.f32 %v1886, %v2640
    %v2642 = vpop.f32.mrf.mxu0
    %v2643 = vadd.f32 %v1890, %v2642
    %2644 = vmatprep.mubr.f32.mxu0 %v908
    %2645 = vmatmul.mubr.f32.gmra.mxu0 %v907
    %v2646 = vpop.f32.mrf.mxu0
    %v2647 = vadd.f32 %v1886, %v2646
    %v2648 = vpop.f32.mrf.mxu0
    %v2649 = vadd.f32 %v1890, %v2648
    %2650 = vmatprep.mubr.f32.mxu0 %v915
    %2651 = vmatmul.mubr.f32.gmra.mxu0 %v914
    %v2652 = vpop.f32.mrf.mxu0
    %v2653 = vadd.f32 %v1886, %v2652
    %v2654 = vpop.f32.mrf.mxu0
    %v2655 = vadd.f32 %v1890, %v2654
    %2656 = vmatprep.mubr.f32.mxu0 %v922
    %2657 = vmatmul.mubr.f32.gmra.mxu0 %v921
    %v2658 = vpop.f32.mrf.mxu0
    %v2659 = vadd.f32 %v1886, %v2658
    %v2660 = vpop.f32.mrf.mxu0
    %v2661 = vadd.f32 %v1890, %v2660
    %2662 = vmatprep.mubr.f32.mxu0 %v929
    %2663 = vmatmul.mubr.f32.gmra.mxu0 %v928
    %v2664 = vpop.f32.mrf.mxu0
    %v2665 = vadd.f32 %v1886, %v2664
    %v2666 = vpop.f32.mrf.mxu0
    %v2667 = vadd.f32 %v1890, %v2666
    %2668 = vmatprep.mubr.f32.mxu0 %v936
    %2669 = vmatmul.mubr.f32.gmra.mxu0 %v935
    %v2670 = vpop.f32.mrf.mxu0
    %v2671 = vadd.f32 %v1886, %v2670
    %v2672 = vpop.f32.mrf.mxu0
    %v2673 = vadd.f32 %v1890, %v2672
    %2674 = vmatprep.mubr.f32.mxu0 %v943
    %2675 = vmatmul.mubr.f32.gmra.mxu0 %v942
    %v2676 = vpop.f32.mrf.mxu0
    %v2677 = vadd.f32 %v1886, %v2676
    %v2678 = vpop.f32.mrf.mxu0
    %v2679 = vadd.f32 %v1890, %v2678
    %2680 = vmatprep.mubr.f32.mxu0 %v950
    %2681 = vmatmul.mubr.f32.gmra.mxu0 %v949
    %v2682 = vpop.f32.mrf.mxu0
    %v2683 = vadd.f32 %v1886, %v2682
    %v2684 = vpop.f32.mrf.mxu0
    %v2685 = vadd.f32 %v1890, %v2684
    %2686 = vmatprep.mubr.f32.mxu0 %v957
    %2687 = vmatmul.mubr.f32.gmra.mxu0 %v956
    %v2688 = vpop.f32.mrf.mxu0
    %v2689 = vadd.f32 %v1886, %v2688
    %v2690 = vpop.f32.mrf.mxu0
    %v2691 = vadd.f32 %v1890, %v2690
    %2692 = vmatprep.mubr.f32.mxu0 %v964
    %2693 = vmatmul.mubr.f32.gmra.mxu0 %v963
    %v2694 = vpop.f32.mrf.mxu0
    %v2695 = vadd.f32 %v1886, %v2694
    %v2696 = vpop.f32.mrf.mxu0
    %v2697 = vadd.f32 %v1890, %v2696
    %2698 = vmatprep.mubr.f32.mxu0 %v971
    %2699 = vmatmul.mubr.f32.gmra.mxu0 %v970
    %v2700 = vpop.f32.mrf.mxu0
    %v2701 = vadd.f32 %v1886, %v2700
    %v2702 = vpop.f32.mrf.mxu0
    %v2703 = vadd.f32 %v1890, %v2702
    %2704 = vdwg.mxu0
    %2705 = vmatprep.subr.mxu0 %v1551
    %2706 = vmatpush1.msra.mxu0 %v1550
    %2707 = vmatprep.subr.mxu0 %v1546
    %2708 = vmatpush1.msra.mxu0 %v1545
    %2709 = vmatprep.subr.mxu0 %v1541
    %2710 = vmatpush1.msra.mxu0 %v1540
    %2711 = vmatprep.subr.mxu0 %v1536
    %2712 = vmatpush1.msra.mxu0 %v1535
    %2713 = vmatprep.subr.mxu0 %v1531
    %2714 = vmatpush1.msra.mxu0 %v1530
    %2715 = vmatprep.subr.mxu0 %v1526
    %2716 = vmatpush1.msra.mxu0 %v1525
    %2717 = vmatprep.subr.mxu0 %v1521
    %2718 = vmatpush1.msra.mxu0 %v1520
    %2719 = vmatprep.subr.mxu0 %v1516
    %2720 = vmatpush1.msra.mxu0 %v1515
    %2721 = vmatprep.subr.mxu0 %v1511
    %2722 = vmatpush1.msra.mxu0 %v1510
    %2723 = vmatprep.subr.mxu0 %v1506
    %2724 = vmatpush1.msra.mxu0 %v1505
    %2725 = vmatprep.subr.mxu0 %v1501
    %2726 = vmatpush1.msra.mxu0 %v1500
    %2727 = vmatprep.subr.mxu0 %v1496
    %2728 = vmatpush1.msra.mxu0 %v1495
    %2729 = vmatprep.subr.mxu0 %v1491
    %2730 = vmatpush1.msra.mxu0 %v1490
    %2731 = vmatprep.subr.mxu0 %v1486
    %2732 = vmatpush1.msra.mxu0 %v1485
    %2733 = vmatprep.subr.mxu0 %v1481
    %2734 = vmatpush1.msra.mxu0 %v1480
    %2735 = vmatprep.subr.mxu0 %v1476
    %2736 = vmatpush1.msra.mxu0 %v1475
    %2737 = vmatprep.subr.mxu0 %v1631
    %2738 = vmatpush2.msra.mxu0 %v1630
    %2739 = vmatprep.subr.mxu0 %v1626
    %2740 = vmatpush2.msra.mxu0 %v1625
    %2741 = vmatprep.subr.mxu0 %v1621
    %2742 = vmatpush2.msra.mxu0 %v1620
    %2743 = vmatprep.subr.mxu0 %v1616
    %2744 = vmatpush2.msra.mxu0 %v1615
    %2745 = vmatprep.subr.mxu0 %v1611
    %2746 = vmatpush2.msra.mxu0 %v1610
    %2747 = vmatprep.subr.mxu0 %v1606
    %2748 = vmatpush2.msra.mxu0 %v1605
    %2749 = vmatprep.subr.mxu0 %v1601
    %2750 = vmatpush2.msra.mxu0 %v1600
    %2751 = vmatprep.subr.mxu0 %v1596
    %2752 = vmatpush2.msra.mxu0 %v1595
    %2753 = vmatprep.subr.mxu0 %v1591
    %2754 = vmatpush2.msra.mxu0 %v1590
    %2755 = vmatprep.subr.mxu0 %v1586
    %2756 = vmatpush2.msra.mxu0 %v1585
    %2757 = vmatprep.subr.mxu0 %v1581
    %2758 = vmatpush2.msra.mxu0 %v1580
    %2759 = vmatprep.subr.mxu0 %v1576
    %2760 = vmatpush2.msra.mxu0 %v1575
    %2761 = vmatprep.subr.mxu0 %v1571
    %2762 = vmatpush2.msra.mxu0 %v1570
    %2763 = vmatprep.subr.mxu0 %v1566
    %2764 = vmatpush2.msra.mxu0 %v1565
    %2765 = vmatprep.subr.mxu0 %v1561
    %2766 = vmatpush2.msra.mxu0 %v1560
    %2767 = vmatprep.subr.mxu0 %v1556
    %2768 = vmatpush2.msra.mxu0 %v1555
    %2769 = vmatprep.mubr.f32.mxu0 %v868
    %2770 = vmatmul.mubr.f32.gmra.mxu0 %v867
    %v2771 = vpop.f32.mrf.mxu0
    %v2772 = vadd.f32 %v2611, %v2771
    %v2773 = vpop.f32.mrf.mxu0
    %v2774 = vadd.f32 %v2613, %v2773
    %2775 = vmatprep.mubr.f32.mxu0 %v875
    %2776 = vmatmul.mubr.f32.gmra.mxu0 %v874
    %v2777 = vpop.f32.mrf.mxu0
    %v2778 = vadd.f32 %v2617, %v2777
    %v2779 = vpop.f32.mrf.mxu0
    %v2780 = vadd.f32 %v2619, %v2779
    %2781 = vmatprep.mubr.f32.mxu0 %v882
    %2782 = vmatmul.mubr.f32.gmra.mxu0 %v881
    %v2783 = vpop.f32.mrf.mxu0
    %v2784 = vadd.f32 %v2623, %v2783
    %v2785 = vpop.f32.mrf.mxu0
    %v2786 = vadd.f32 %v2625, %v2785
    %2787 = vmatprep.mubr.f32.mxu0 %v889
    %2788 = vmatmul.mubr.f32.gmra.mxu0 %v888
    %v2789 = vpop.f32.mrf.mxu0
    %v2790 = vadd.f32 %v2629, %v2789
    %v2791 = vpop.f32.mrf.mxu0
    %v2792 = vadd.f32 %v2631, %v2791
    %2793 = vmatprep.mubr.f32.mxu0 %v896
    %2794 = vmatmul.mubr.f32.gmra.mxu0 %v895
    %v2795 = vpop.f32.mrf.mxu0
    %v2796 = vadd.f32 %v2635, %v2795
    %v2797 = vpop.f32.mrf.mxu0
    %v2798 = vadd.f32 %v2637, %v2797
    %2799 = vmatprep.mubr.f32.mxu0 %v903
    %2800 = vmatmul.mubr.f32.gmra.mxu0 %v902
    %v2801 = vpop.f32.mrf.mxu0
    %v2802 = vadd.f32 %v2641, %v2801
    %v2803 = vpop.f32.mrf.mxu0
    %v2804 = vadd.f32 %v2643, %v2803
    %2805 = vmatprep.mubr.f32.mxu0 %v910
    %2806 = vmatmul.mubr.f32.gmra.mxu0 %v909
    %v2807 = vpop.f32.mrf.mxu0
    %v2808 = vadd.f32 %v2647, %v2807
    %v2809 = vpop.f32.mrf.mxu0
    %v2810 = vadd.f32 %v2649, %v2809
    %2811 = vmatprep.mubr.f32.mxu0 %v917
    %2812 = vmatmul.mubr.f32.gmra.mxu0 %v916
    %v2813 = vpop.f32.mrf.mxu0
    %v2814 = vadd.f32 %v2653, %v2813
    %v2815 = vpop.f32.mrf.mxu0
    %v2816 = vadd.f32 %v2655, %v2815
    %2817 = vmatprep.mubr.f32.mxu0 %v924
    %2818 = vmatmul.mubr.f32.gmra.mxu0 %v923
    %v2819 = vpop.f32.mrf.mxu0
    %v2820 = vadd.f32 %v2659, %v2819
    %v2821 = vpop.f32.mrf.mxu0
    %v2822 = vadd.f32 %v2661, %v2821
    %2823 = vmatprep.mubr.f32.mxu0 %v931
    %2824 = vmatmul.mubr.f32.gmra.mxu0 %v930
    %v2825 = vpop.f32.mrf.mxu0
    %v2826 = vadd.f32 %v2665, %v2825
    %v2827 = vpop.f32.mrf.mxu0
    %v2828 = vadd.f32 %v2667, %v2827
    %2829 = vmatprep.mubr.f32.mxu0 %v938
    %2830 = vmatmul.mubr.f32.gmra.mxu0 %v937
    %v2831 = vpop.f32.mrf.mxu0
    %v2832 = vadd.f32 %v2671, %v2831
    %v2833 = vpop.f32.mrf.mxu0
    %v2834 = vadd.f32 %v2673, %v2833
    %2835 = vmatprep.mubr.f32.mxu0 %v945
    %2836 = vmatmul.mubr.f32.gmra.mxu0 %v944
    %v2837 = vpop.f32.mrf.mxu0
    %v2838 = vadd.f32 %v2677, %v2837
    %v2839 = vpop.f32.mrf.mxu0
    %v2840 = vadd.f32 %v2679, %v2839
    %2841 = vmatprep.mubr.f32.mxu0 %v952
    %2842 = vmatmul.mubr.f32.gmra.mxu0 %v951
    %v2843 = vpop.f32.mrf.mxu0
    %v2844 = vadd.f32 %v2683, %v2843
    %v2845 = vpop.f32.mrf.mxu0
    %v2846 = vadd.f32 %v2685, %v2845
    %2847 = vmatprep.mubr.f32.mxu0 %v959
    %2848 = vmatmul.mubr.f32.gmra.mxu0 %v958
    %v2849 = vpop.f32.mrf.mxu0
    %v2850 = vadd.f32 %v2689, %v2849
    %v2851 = vpop.f32.mrf.mxu0
    %v2852 = vadd.f32 %v2691, %v2851
    %2853 = vmatprep.mubr.f32.mxu0 %v966
    %2854 = vmatmul.mubr.f32.gmra.mxu0 %v965
    %v2855 = vpop.f32.mrf.mxu0
    %v2856 = vadd.f32 %v2695, %v2855
    %v2857 = vpop.f32.mrf.mxu0
    %v2858 = vadd.f32 %v2697, %v2857
    %2859 = vmatprep.mubr.f32.mxu0 %v973
    %2860 = vmatmul.mubr.f32.gmra.mxu0 %v972
    %v2861 = vpop.f32.mrf.mxu0
    %v2862 = vadd.f32 %v2701, %v2861
    %v2863 = vpop.f32.mrf.mxu0
    %v2864 = vadd.f32 %v2703, %v2863
    %2865 = vdwg.mxu0
    %2866 = vmatprep.subr.mxu0 %v1711
    %2867 = vmatpush1.msra.mxu0 %v1710
    %2868 = vmatprep.subr.mxu0 %v1706
    %2869 = vmatpush1.msra.mxu0 %v1705
    %2870 = vmatprep.subr.mxu0 %v1701
    %2871 = vmatpush1.msra.mxu0 %v1700
    %2872 = vmatprep.subr.mxu0 %v1696
    %2873 = vmatpush1.msra.mxu0 %v1695
    %2874 = vmatprep.subr.mxu0 %v1691
    %2875 = vmatpush1.msra.mxu0 %v1690
    %2876 = vmatprep.subr.mxu0 %v1686
    %2877 = vmatpush1.msra.mxu0 %v1685
    %2878 = vmatprep.subr.mxu0 %v1681
    %2879 = vmatpush1.msra.mxu0 %v1680
    %2880 = vmatprep.subr.mxu0 %v1676
    %2881 = vmatpush1.msra.mxu0 %v1675
    %2882 = vmatprep.subr.mxu0 %v1671
    %2883 = vmatpush1.msra.mxu0 %v1670
    %2884 = vmatprep.subr.mxu0 %v1666
    %2885 = vmatpush1.msra.mxu0 %v1665
    %2886 = vmatprep.subr.mxu0 %v1661
    %2887 = vmatpush1.msra.mxu0 %v1660
    %2888 = vmatprep.subr.mxu0 %v1656
    %2889 = vmatpush1.msra.mxu0 %v1655
    %2890 = vmatprep.subr.mxu0 %v1651
    %2891 = vmatpush1.msra.mxu0 %v1650
    %2892 = vmatprep.subr.mxu0 %v1646
    %2893 = vmatpush1.msra.mxu0 %v1645
    %2894 = vmatprep.subr.mxu0 %v1641
    %2895 = vmatpush1.msra.mxu0 %v1640
    %2896 = vmatprep.subr.mxu0 %v1636
    %2897 = vmatpush1.msra.mxu0 %v1635
    %2898 = vmatprep.subr.mxu0 %v1791
    %2899 = vmatpush2.msra.mxu0 %v1790
    %2900 = vmatprep.subr.mxu0 %v1786
    %2901 = vmatpush2.msra.mxu0 %v1785
    %2902 = vmatprep.subr.mxu0 %v1781
    %2903 = vmatpush2.msra.mxu0 %v1780
    %2904 = vmatprep.subr.mxu0 %v1776
    %2905 = vmatpush2.msra.mxu0 %v1775
    %2906 = vmatprep.subr.mxu0 %v1771
    %2907 = vmatpush2.msra.mxu0 %v1770
    %2908 = vmatprep.subr.mxu0 %v1766
    %2909 = vmatpush2.msra.mxu0 %v1765
    %2910 = vmatprep.subr.mxu0 %v1761
    %2911 = vmatpush2.msra.mxu0 %v1760
    %2912 = vmatprep.subr.mxu0 %v1756
    %2913 = vmatpush2.msra.mxu0 %v1755
    %2914 = vmatprep.subr.mxu0 %v1751
    %2915 = vmatpush2.msra.mxu0 %v1750
    %2916 = vmatprep.subr.mxu0 %v1746
    %2917 = vmatpush2.msra.mxu0 %v1745
    %2918 = vmatprep.subr.mxu0 %v1741
    %2919 = vmatpush2.msra.mxu0 %v1740
    %2920 = vmatprep.subr.mxu0 %v1736
    %2921 = vmatpush2.msra.mxu0 %v1735
    %2922 = vmatprep.subr.mxu0 %v1731
    %2923 = vmatpush2.msra.mxu0 %v1730
    %2924 = vmatprep.subr.mxu0 %v1726
    %2925 = vmatpush2.msra.mxu0 %v1725
    %2926 = vmatprep.subr.mxu0 %v1721
    %2927 = vmatpush2.msra.mxu0 %v1720
    %2928 = vmatprep.subr.mxu0 %v1716
    %2929 = vmatpush2.msra.mxu0 %v1715
    %2930 = vmatprep.mubr.f32.mxu0 %v870
    %2931 = vmatmul.mubr.f32.gmra.mxu0 %v869
    %v2932 = vpop.f32.mrf.mxu0
    %v2933 = vadd.f32 %v2772, %v2932
    %v2934 = vpop.f32.mrf.mxu0
    %v2935 = vadd.f32 %v2774, %v2934
    %2936 = vmatprep.mubr.f32.mxu0 %v877
    %2937 = vmatmul.mubr.f32.gmra.mxu0 %v876
    %v2938 = vpop.f32.mrf.mxu0
    %v2939 = vadd.f32 %v2778, %v2938
    %v2940 = vpop.f32.mrf.mxu0
    %v2941 = vadd.f32 %v2780, %v2940
    %2942 = vmatprep.mubr.f32.mxu0 %v884
    %2943 = vmatmul.mubr.f32.gmra.mxu0 %v883
    %v2944 = vpop.f32.mrf.mxu0
    %v2945 = vadd.f32 %v2784, %v2944
    %v2946 = vpop.f32.mrf.mxu0
    %v2947 = vadd.f32 %v2786, %v2946
    %2948 = vmatprep.mubr.f32.mxu0 %v891
    %2949 = vmatmul.mubr.f32.gmra.mxu0 %v890
    %v2950 = vpop.f32.mrf.mxu0
    %v2951 = vadd.f32 %v2790, %v2950
    %v2952 = vpop.f32.mrf.mxu0
    %v2953 = vadd.f32 %v2792, %v2952
    %2954 = vmatprep.mubr.f32.mxu0 %v898
    %2955 = vmatmul.mubr.f32.gmra.mxu0 %v897
    %v2956 = vpop.f32.mrf.mxu0
    %v2957 = vadd.f32 %v2796, %v2956
    %v2958 = vpop.f32.mrf.mxu0
    %v2959 = vadd.f32 %v2798, %v2958
    %2960 = vmatprep.mubr.f32.mxu0 %v905
    %2961 = vmatmul.mubr.f32.gmra.mxu0 %v904
    %v2962 = vpop.f32.mrf.mxu0
    %v2963 = vadd.f32 %v2802, %v2962
    %v2964 = vpop.f32.mrf.mxu0
    %v2965 = vadd.f32 %v2804, %v2964
    %2966 = vmatprep.mubr.f32.mxu0 %v912
    %2967 = vmatmul.mubr.f32.gmra.mxu0 %v911
    %v2968 = vpop.f32.mrf.mxu0
    %v2969 = vadd.f32 %v2808, %v2968
    %v2970 = vpop.f32.mrf.mxu0
    %v2971 = vadd.f32 %v2810, %v2970
    %2972 = vmatprep.mubr.f32.mxu0 %v919
    %2973 = vmatmul.mubr.f32.gmra.mxu0 %v918
    %v2974 = vpop.f32.mrf.mxu0
    %v2975 = vadd.f32 %v2814, %v2974
    %v2976 = vpop.f32.mrf.mxu0
    %v2977 = vadd.f32 %v2816, %v2976
    %2978 = vmatprep.mubr.f32.mxu0 %v926
    %2979 = vmatmul.mubr.f32.gmra.mxu0 %v925
    %v2980 = vpop.f32.mrf.mxu0
    %v2981 = vadd.f32 %v2820, %v2980
    %v2982 = vpop.f32.mrf.mxu0
    %v2983 = vadd.f32 %v2822, %v2982
    %2984 = vmatprep.mubr.f32.mxu0 %v933
    %2985 = vmatmul.mubr.f32.gmra.mxu0 %v932
    %v2986 = vpop.f32.mrf.mxu0
    %v2987 = vadd.f32 %v2826, %v2986
    %v2988 = vpop.f32.mrf.mxu0
    %v2989 = vadd.f32 %v2828, %v2988
    %2990 = vmatprep.mubr.f32.mxu0 %v940
    %2991 = vmatmul.mubr.f32.gmra.mxu0 %v939
    %v2992 = vpop.f32.mrf.mxu0
    %v2993 = vadd.f32 %v2832, %v2992
    %v2994 = vpop.f32.mrf.mxu0
    %v2995 = vadd.f32 %v2834, %v2994
    %2996 = vmatprep.mubr.f32.mxu0 %v947
    %2997 = vmatmul.mubr.f32.gmra.mxu0 %v946
    %v2998 = vpop.f32.mrf.mxu0
    %v2999 = vadd.f32 %v2838, %v2998
    %v3000 = vpop.f32.mrf.mxu0
    %v3001 = vadd.f32 %v2840, %v3000
    %3002 = vmatprep.mubr.f32.mxu0 %v954
    %3003 = vmatmul.mubr.f32.gmra.mxu0 %v953
    %v3004 = vpop.f32.mrf.mxu0
    %v3005 = vadd.f32 %v2844, %v3004
    %v3006 = vpop.f32.mrf.mxu0
    %v3007 = vadd.f32 %v2846, %v3006
    %3008 = vmatprep.mubr.f32.mxu0 %v961
    %3009 = vmatmul.mubr.f32.gmra.mxu0 %v960
    %v3010 = vpop.f32.mrf.mxu0
    %v3011 = vadd.f32 %v2850, %v3010
    %v3012 = vpop.f32.mrf.mxu0
    %v3013 = vadd.f32 %v2852, %v3012
    %3014 = vmatprep.mubr.f32.mxu0 %v968
    %3015 = vmatmul.mubr.f32.gmra.mxu0 %v967
    %v3016 = vpop.f32.mrf.mxu0
    %v3017 = vadd.f32 %v2856, %v3016
    %v3018 = vpop.f32.mrf.mxu0
    %v3019 = vadd.f32 %v2858, %v3018
    %3020 = vmatprep.mubr.f32.mxu0 %v975
    %3021 = vmatmul.mubr.f32.gmra.mxu0 %v974
    %v3022 = vpop.f32.mrf.mxu0
    %v3023 = vadd.f32 %v2862, %v3022
    %v3024 = vpop.f32.mrf.mxu0
    %v3025 = vadd.f32 %v2864, %v3024
    %3026 = vdwg.mxu0
    %3027 = vmatprep.subr.mxu0 %v1871
    %3028 = vmatpush1.msra.mxu0 %v1870
    %3029 = vmatprep.subr.mxu0 %v1866
    %3030 = vmatpush1.msra.mxu0 %v1865
    %3031 = vmatprep.subr.mxu0 %v1861
    %3032 = vmatpush1.msra.mxu0 %v1860
    %3033 = vmatprep.subr.mxu0 %v1856
    %3034 = vmatpush1.msra.mxu0 %v1855
    %3035 = vmatprep.subr.mxu0 %v1851
    %3036 = vmatpush1.msra.mxu0 %v1850
    %3037 = vmatprep.subr.mxu0 %v1846
    %3038 = vmatpush1.msra.mxu0 %v1845
    %3039 = vmatprep.subr.mxu0 %v1841
    %3040 = vmatpush1.msra.mxu0 %v1840
    %3041 = vmatprep.subr.mxu0 %v1836
    %3042 = vmatpush1.msra.mxu0 %v1835
    %3043 = vmatprep.subr.mxu0 %v1831
    %3044 = vmatpush1.msra.mxu0 %v1830
    %3045 = vmatprep.subr.mxu0 %v1826
    %3046 = vmatpush1.msra.mxu0 %v1825
    %3047 = vmatprep.subr.mxu0 %v1821
    %3048 = vmatpush1.msra.mxu0 %v1820
    %3049 = vmatprep.subr.mxu0 %v1816
    %3050 = vmatpush1.msra.mxu0 %v1815
    %3051 = vmatprep.subr.mxu0 %v1811
    %3052 = vmatpush1.msra.mxu0 %v1810
    %3053 = vmatprep.subr.mxu0 %v1806
    %3054 = vmatpush1.msra.mxu0 %v1805
    %3055 = vmatprep.subr.mxu0 %v1801
    %3056 = vmatpush1.msra.mxu0 %v1800
    %3057 = vmatprep.subr.mxu0 %v1796
    %3058 = vmatpush1.msra.mxu0 %v1795
    %3059 = vmatprep.subr.mxu0 0.0
    %3060 = vmatpush2.msra.mxu0 0.0
    %3061 = vmatprep.subr.mxu0 0.0
    %3062 = vmatpush2.msra.mxu0 0.0
    %3063 = vmatprep.subr.mxu0 0.0
    %3064 = vmatpush2.msra.mxu0 0.0
    %3065 = vmatprep.subr.mxu0 0.0
    %3066 = vmatpush2.msra.mxu0 0.0
    %3067 = vmatprep.subr.mxu0 0.0
    %3068 = vmatpush2.msra.mxu0 0.0
    %3069 = vmatprep.subr.mxu0 0.0
    %3070 = vmatpush2.msra.mxu0 0.0
    %3071 = vmatprep.subr.mxu0 0.0
    %3072 = vmatpush2.msra.mxu0 0.0
    %3073 = vmatprep.subr.mxu0 0.0
    %3074 = vmatpush2.msra.mxu0 0.0
    %3075 = vmatprep.subr.mxu0 0.0
    %3076 = vmatpush2.msra.mxu0 0.0
    %3077 = vmatprep.subr.mxu0 0.0
    %3078 = vmatpush2.msra.mxu0 0.0
    %3079 = vmatprep.subr.mxu0 0.0
    %3080 = vmatpush2.msra.mxu0 0.0
    %3081 = vmatprep.subr.mxu0 0.0
    %3082 = vmatpush2.msra.mxu0 0.0
    %3083 = vmatprep.subr.mxu0 0.0
    %3084 = vmatpush2.msra.mxu0 0.0
    %3085 = vmatprep.subr.mxu0 0.0
    %3086 = vmatpush2.msra.mxu0 0.0
    %3087 = vmatprep.subr.mxu0 0.0
    %3088 = vmatpush2.msra.mxu0 0.0
    %3089 = vmatprep.subr.mxu0 0.0
    %3090 = vmatpush2.msra.mxu0 0.0
    %3091 = vmatprep.mubr.f32.mxu0 0.0
    %3092 = vmatmul.mubr.f32.gmra.mxu0 %v871
    %v3093 = vpop.f32.mrf.mxu0
    %v3094 = vadd.f32 %v2933, %v3093
    %v3095 = vpop.f32.mrf.mxu0
    %v3096 = vadd.f32 %v2935, %v3095
    %3097 = vmatprep.mubr.f32.mxu0 0.0
    %3098 = vmatmul.mubr.f32.gmra.mxu0 %v878
    %v3099 = vpop.f32.mrf.mxu0
    %v3100 = vadd.f32 %v2939, %v3099
    %v3101 = vpop.f32.mrf.mxu0
    %v3102 = vadd.f32 %v2941, %v3101
    %3103 = vmatprep.mubr.f32.mxu0 0.0
    %3104 = vmatmul.mubr.f32.gmra.mxu0 %v885
    %v3105 = vpop.f32.mrf.mxu0
    %v3106 = vadd.f32 %v2945, %v3105
    %v3107 = vpop.f32.mrf.mxu0
    %v3108 = vadd.f32 %v2947, %v3107
    %3109 = vmatprep.mubr.f32.mxu0 0.0
    %3110 = vmatmul.mubr.f32.gmra.mxu0 %v892
    %v3111 = vpop.f32.mrf.mxu0
    %v3112 = vadd.f32 %v2951, %v3111
    %v3113 = vpop.f32.mrf.mxu0
    %v3114 = vadd.f32 %v2953, %v3113
    %3115 = vmatprep.mubr.f32.mxu0 0.0
    %3116 = vmatmul.mubr.f32.gmra.mxu0 %v899
    %v3117 = vpop.f32.mrf.mxu0
    %v3118 = vadd.f32 %v2957, %v3117
    %v3119 = vpop.f32.mrf.mxu0
    %v3120 = vadd.f32 %v2959, %v3119
    %3121 = vmatprep.mubr.f32.mxu0 0.0
    %3122 = vmatmul.mubr.f32.gmra.mxu0 %v906
    %v3123 = vpop.f32.mrf.mxu0
    %v3124 = vadd.f32 %v2963, %v3123
    %v3125 = vpop.f32.mrf.mxu0
    %v3126 = vadd.f32 %v2965, %v3125
    %3127 = vmatprep.mubr.f32.mxu0 0.0
    %3128 = vmatmul.mubr.f32.gmra.mxu0 %v913
    %v3129 = vpop.f32.mrf.mxu0
    %v3130 = vadd.f32 %v2969, %v3129
    %v3131 = vpop.f32.mrf.mxu0
    %v3132 = vadd.f32 %v2971, %v3131
    %3133 = vmatprep.mubr.f32.mxu0 0.0
    %3134 = vmatmul.mubr.f32.gmra.mxu0 %v920
    %v3135 = vpop.f32.mrf.mxu0
    %v3136 = vadd.f32 %v2975, %v3135
    %v3137 = vpop.f32.mrf.mxu0
    %v3138 = vadd.f32 %v2977, %v3137
    %3139 = vmatprep.mubr.f32.mxu0 0.0
    %3140 = vmatmul.mubr.f32.gmra.mxu0 %v927
    %v3141 = vpop.f32.mrf.mxu0
    %v3142 = vadd.f32 %v2981, %v3141
    %v3143 = vpop.f32.mrf.mxu0
    %v3144 = vadd.f32 %v2983, %v3143
    %3145 = vmatprep.mubr.f32.mxu0 0.0
    %3146 = vmatmul.mubr.f32.gmra.mxu0 %v934
    %v3147 = vpop.f32.mrf.mxu0
    %v3148 = vadd.f32 %v2987, %v3147
    %v3149 = vpop.f32.mrf.mxu0
    %v3150 = vadd.f32 %v2989, %v3149
    %3151 = vmatprep.mubr.f32.mxu0 0.0
    %3152 = vmatmul.mubr.f32.gmra.mxu0 %v941
    %v3153 = vpop.f32.mrf.mxu0
    %v3154 = vadd.f32 %v2993, %v3153
    %v3155 = vpop.f32.mrf.mxu0
    %v3156 = vadd.f32 %v2995, %v3155
    %3157 = vmatprep.mubr.f32.mxu0 0.0
    %3158 = vmatmul.mubr.f32.gmra.mxu0 %v948
    %v3159 = vpop.f32.mrf.mxu0
    %v3160 = vadd.f32 %v2999, %v3159
    %v3161 = vpop.f32.mrf.mxu0
    %v3162 = vadd.f32 %v3001, %v3161
    %3163 = vmatprep.mubr.f32.mxu0 0.0
    %3164 = vmatmul.mubr.f32.gmra.mxu0 %v955
    %v3165 = vpop.f32.mrf.mxu0
    %v3166 = vadd.f32 %v3005, %v3165
    %v3167 = vpop.f32.mrf.mxu0
    %v3168 = vadd.f32 %v3007, %v3167
    %3169 = vmatprep.mubr.f32.mxu0 0.0
    %3170 = vmatmul.mubr.f32.gmra.mxu0 %v962
    %v3171 = vpop.f32.mrf.mxu0
    %v3172 = vadd.f32 %v3011, %v3171
    %v3173 = vpop.f32.mrf.mxu0
    %v3174 = vadd.f32 %v3013, %v3173
    %3175 = vmatprep.mubr.f32.mxu0 0.0
    %3176 = vmatmul.mubr.f32.gmra.mxu0 %v969
    %v3177 = vpop.f32.mrf.mxu0
    %v3178 = vadd.f32 %v3017, %v3177
    %v3179 = vpop.f32.mrf.mxu0
    %v3180 = vadd.f32 %v3019, %v3179
    %3181 = vmatprep.mubr.f32.mxu0 0.0
    %3182 = vmatmul.mubr.f32.gmra.mxu0 %v976
    %v3183 = vpop.f32.mrf.mxu0
    %v3184 = vadd.f32 %v3023, %v3183
    %v3185 = vpop.f32.mrf.mxu0
    %v3186 = vadd.f32 %v3025, %v3185
    %3187 = vdwg.mxu0
    %3188 = vmatprep.subr.mxu0 0.0
    %3189 = vmatpush1.msra.mxu0 %v1392
    %3190 = vmatprep.subr.mxu0 0.0
    %3191 = vmatpush1.msra.mxu0 %v1387
    %3192 = vmatprep.subr.mxu0 0.0
    %3193 = vmatpush1.msra.mxu0 %v1382
    %3194 = vmatprep.subr.mxu0 0.0
    %3195 = vmatpush1.msra.mxu0 %v1377
    %3196 = vmatprep.subr.mxu0 0.0
    %3197 = vmatpush1.msra.mxu0 %v1372
    %3198 = vmatprep.subr.mxu0 0.0
    %3199 = vmatpush1.msra.mxu0 %v1367
    %3200 = vmatprep.subr.mxu0 0.0
    %3201 = vmatpush1.msra.mxu0 %v1362
    %3202 = vmatprep.subr.mxu0 0.0
    %3203 = vmatpush1.msra.mxu0 %v1357
    %3204 = vmatprep.subr.mxu0 0.0
    %3205 = vmatpush1.msra.mxu0 %v1352
    %3206 = vmatprep.subr.mxu0 0.0
    %3207 = vmatpush1.msra.mxu0 %v1347
    %3208 = vmatprep.subr.mxu0 0.0
    %3209 = vmatpush1.msra.mxu0 %v1342
    %3210 = vmatprep.subr.mxu0 0.0
    %3211 = vmatpush1.msra.mxu0 %v1337
    %3212 = vmatprep.subr.mxu0 0.0
    %3213 = vmatpush1.msra.mxu0 %v1332
    %3214 = vmatprep.subr.mxu0 0.0
    %3215 = vmatpush1.msra.mxu0 %v1327
    %3216 = vmatprep.subr.mxu0 0.0
    %3217 = vmatpush1.msra.mxu0 %v1322
    %3218 = vmatprep.subr.mxu0 0.0
    %3219 = vmatpush1.msra.mxu0 %v1317
    %3220 = vmatprep.subr.mxu0 0.0
    %3221 = vmatpush2.msra.mxu0 %v1472
    %3222 = vmatprep.subr.mxu0 0.0
    %3223 = vmatpush2.msra.mxu0 %v1467
    %3224 = vmatprep.subr.mxu0 0.0
    %3225 = vmatpush2.msra.mxu0 %v1462
    %3226 = vmatprep.subr.mxu0 0.0
    %3227 = vmatpush2.msra.mxu0 %v1457
    %3228 = vmatprep.subr.mxu0 0.0
    %3229 = vmatpush2.msra.mxu0 %v1452
    %3230 = vmatprep.subr.mxu0 0.0
    %3231 = vmatpush2.msra.mxu0 %v1447
    %3232 = vmatprep.subr.mxu0 0.0
    %3233 = vmatpush2.msra.mxu0 %v1442
    %3234 = vmatprep.subr.mxu0 0.0
    %3235 = vmatpush2.msra.mxu0 %v1437
    %3236 = vmatprep.subr.mxu0 0.0
    %3237 = vmatpush2.msra.mxu0 %v1432
    %3238 = vmatprep.subr.mxu0 0.0
    %3239 = vmatpush2.msra.mxu0 %v1427
    %3240 = vmatprep.subr.mxu0 0.0
    %3241 = vmatpush2.msra.mxu0 %v1422
    %3242 = vmatprep.subr.mxu0 0.0
    %3243 = vmatpush2.msra.mxu0 %v1417
    %3244 = vmatprep.subr.mxu0 0.0
    %3245 = vmatpush2.msra.mxu0 %v1412
    %3246 = vmatprep.subr.mxu0 0.0
    %3247 = vmatpush2.msra.mxu0 %v1407
    %3248 = vmatprep.subr.mxu0 0.0
    %3249 = vmatpush2.msra.mxu0 %v1402
    %3250 = vmatprep.subr.mxu0 0.0
    %3251 = vmatpush2.msra.mxu0 %v1397
    %3252 = vmatprep.mubr.f32.mxu0 %v866
    %3253 = vmatmul.mubr.f32.gmra.mxu0 %v865
    %v3254 = vpop.f32.mrf.mxu0
    %v3255 = vadd.f32 %v1894, %v3254
    %v3256 = vpop.f32.mrf.mxu0
    %3257 = vmatprep.mubr.f32.mxu0 %v873
    %3258 = vmatmul.mubr.f32.gmra.mxu0 %v872
    %v3259 = vpop.f32.mrf.mxu0
    %v3260 = vadd.f32 %v1894, %v3259
    %v3261 = vpop.f32.mrf.mxu0
    %3262 = vmatprep.mubr.f32.mxu0 %v880
    %3263 = vmatmul.mubr.f32.gmra.mxu0 %v879
    %v3264 = vpop.f32.mrf.mxu0
    %v3265 = vadd.f32 %v1894, %v3264
    %v3266 = vpop.f32.mrf.mxu0
    %3267 = vmatprep.mubr.f32.mxu0 %v887
    %3268 = vmatmul.mubr.f32.gmra.mxu0 %v886
    %v3269 = vpop.f32.mrf.mxu0
    %v3270 = vadd.f32 %v1894, %v3269
    %v3271 = vpop.f32.mrf.mxu0
    %3272 = vmatprep.mubr.f32.mxu0 %v894
    %3273 = vmatmul.mubr.f32.gmra.mxu0 %v893
    %v3274 = vpop.f32.mrf.mxu0
    %v3275 = vadd.f32 %v1894, %v3274
    %v3276 = vpop.f32.mrf.mxu0
    %3277 = vmatprep.mubr.f32.mxu0 %v901
    %3278 = vmatmul.mubr.f32.gmra.mxu0 %v900
    %v3279 = vpop.f32.mrf.mxu0
    %v3280 = vadd.f32 %v1894, %v3279
    %v3281 = vpop.f32.mrf.mxu0
    %3282 = vmatprep.mubr.f32.mxu0 %v908
    %3283 = vmatmul.mubr.f32.gmra.mxu0 %v907
    %v3284 = vpop.f32.mrf.mxu0
    %v3285 = vadd.f32 %v1894, %v3284
    %v3286 = vpop.f32.mrf.mxu0
    %3287 = vmatprep.mubr.f32.mxu0 %v915
    %3288 = vmatmul.mubr.f32.gmra.mxu0 %v914
    %v3289 = vpop.f32.mrf.mxu0
    %v3290 = vadd.f32 %v1894, %v3289
    %v3291 = vpop.f32.mrf.mxu0
    %3292 = vmatprep.mubr.f32.mxu0 %v922
    %3293 = vmatmul.mubr.f32.gmra.mxu0 %v921
    %v3294 = vpop.f32.mrf.mxu0
    %v3295 = vadd.f32 %v1894, %v3294
    %v3296 = vpop.f32.mrf.mxu0
    %3297 = vmatprep.mubr.f32.mxu0 %v929
    %3298 = vmatmul.mubr.f32.gmra.mxu0 %v928
    %v3299 = vpop.f32.mrf.mxu0
    %v3300 = vadd.f32 %v1894, %v3299
    %v3301 = vpop.f32.mrf.mxu0
    %3302 = vmatprep.mubr.f32.mxu0 %v936
    %3303 = vmatmul.mubr.f32.gmra.mxu0 %v935
    %v3304 = vpop.f32.mrf.mxu0
    %v3305 = vadd.f32 %v1894, %v3304
    %v3306 = vpop.f32.mrf.mxu0
    %3307 = vmatprep.mubr.f32.mxu0 %v943
    %3308 = vmatmul.mubr.f32.gmra.mxu0 %v942
    %v3309 = vpop.f32.mrf.mxu0
    %v3310 = vadd.f32 %v1894, %v3309
    %v3311 = vpop.f32.mrf.mxu0
    %3312 = vmatprep.mubr.f32.mxu0 %v950
    %3313 = vmatmul.mubr.f32.gmra.mxu0 %v949
    %v3314 = vpop.f32.mrf.mxu0
    %v3315 = vadd.f32 %v1894, %v3314
    %v3316 = vpop.f32.mrf.mxu0
    %3317 = vmatprep.mubr.f32.mxu0 %v957
    %3318 = vmatmul.mubr.f32.gmra.mxu0 %v956
    %v3319 = vpop.f32.mrf.mxu0
    %v3320 = vadd.f32 %v1894, %v3319
    %v3321 = vpop.f32.mrf.mxu0
    %3322 = vmatprep.mubr.f32.mxu0 %v964
    %3323 = vmatmul.mubr.f32.gmra.mxu0 %v963
    %v3324 = vpop.f32.mrf.mxu0
    %v3325 = vadd.f32 %v1894, %v3324
    %v3326 = vpop.f32.mrf.mxu0
    %3327 = vmatprep.mubr.f32.mxu0 %v971
    %3328 = vmatmul.mubr.f32.gmra.mxu0 %v970
    %v3329 = vpop.f32.mrf.mxu0
    %v3330 = vadd.f32 %v1894, %v3329
    %v3331 = vpop.f32.mrf.mxu0
    %3332 = vdwg.mxu0
    %3333 = vmatprep.subr.mxu0 0.0
    %3334 = vmatpush1.msra.mxu0 %v1552
    %3335 = vmatprep.subr.mxu0 0.0
    %3336 = vmatpush1.msra.mxu0 %v1547
    %3337 = vmatprep.subr.mxu0 0.0
    %3338 = vmatpush1.msra.mxu0 %v1542
    %3339 = vmatprep.subr.mxu0 0.0
    %3340 = vmatpush1.msra.mxu0 %v1537
    %3341 = vmatprep.subr.mxu0 0.0
    %3342 = vmatpush1.msra.mxu0 %v1532
    %3343 = vmatprep.subr.mxu0 0.0
    %3344 = vmatpush1.msra.mxu0 %v1527
    %3345 = vmatprep.subr.mxu0 0.0
    %3346 = vmatpush1.msra.mxu0 %v1522
    %3347 = vmatprep.subr.mxu0 0.0
    %3348 = vmatpush1.msra.mxu0 %v1517
    %3349 = vmatprep.subr.mxu0 0.0
    %3350 = vmatpush1.msra.mxu0 %v1512
    %3351 = vmatprep.subr.mxu0 0.0
    %3352 = vmatpush1.msra.mxu0 %v1507
    %3353 = vmatprep.subr.mxu0 0.0
    %3354 = vmatpush1.msra.mxu0 %v1502
    %3355 = vmatprep.subr.mxu0 0.0
    %3356 = vmatpush1.msra.mxu0 %v1497
    %3357 = vmatprep.subr.mxu0 0.0
    %3358 = vmatpush1.msra.mxu0 %v1492
    %3359 = vmatprep.subr.mxu0 0.0
    %3360 = vmatpush1.msra.mxu0 %v1487
    %3361 = vmatprep.subr.mxu0 0.0
    %3362 = vmatpush1.msra.mxu0 %v1482
    %3363 = vmatprep.subr.mxu0 0.0
    %3364 = vmatpush1.msra.mxu0 %v1477
    %3365 = vmatprep.subr.mxu0 0.0
    %3366 = vmatpush2.msra.mxu0 %v1632
    %3367 = vmatprep.subr.mxu0 0.0
    %3368 = vmatpush2.msra.mxu0 %v1627
    %3369 = vmatprep.subr.mxu0 0.0
    %3370 = vmatpush2.msra.mxu0 %v1622
    %3371 = vmatprep.subr.mxu0 0.0
    %3372 = vmatpush2.msra.mxu0 %v1617
    %3373 = vmatprep.subr.mxu0 0.0
    %3374 = vmatpush2.msra.mxu0 %v1612
    %3375 = vmatprep.subr.mxu0 0.0
    %3376 = vmatpush2.msra.mxu0 %v1607
    %3377 = vmatprep.subr.mxu0 0.0
    %3378 = vmatpush2.msra.mxu0 %v1602
    %3379 = vmatprep.subr.mxu0 0.0
    %3380 = vmatpush2.msra.mxu0 %v1597
    %3381 = vmatprep.subr.mxu0 0.0
    %3382 = vmatpush2.msra.mxu0 %v1592
    %3383 = vmatprep.subr.mxu0 0.0
    %3384 = vmatpush2.msra.mxu0 %v1587
    %3385 = vmatprep.subr.mxu0 0.0
    %3386 = vmatpush2.msra.mxu0 %v1582
    %3387 = vmatprep.subr.mxu0 0.0
    %3388 = vmatpush2.msra.mxu0 %v1577
    %3389 = vmatprep.subr.mxu0 0.0
    %3390 = vmatpush2.msra.mxu0 %v1572
    %3391 = vmatprep.subr.mxu0 0.0
    %3392 = vmatpush2.msra.mxu0 %v1567
    %3393 = vmatprep.subr.mxu0 0.0
    %3394 = vmatpush2.msra.mxu0 %v1562
    %3395 = vmatprep.subr.mxu0 0.0
    %3396 = vmatpush2.msra.mxu0 %v1557
    %3397 = vmatprep.mubr.f32.mxu0 %v868
    %3398 = vmatmul.mubr.f32.gmra.mxu0 %v867
    %v3399 = vpop.f32.mrf.mxu0
    %v3400 = vadd.f32 %v3255, %v3399
    %v3401 = vpop.f32.mrf.mxu0
    %3402 = vmatprep.mubr.f32.mxu0 %v875
    %3403 = vmatmul.mubr.f32.gmra.mxu0 %v874
    %v3404 = vpop.f32.mrf.mxu0
    %v3405 = vadd.f32 %v3260, %v3404
    %v3406 = vpop.f32.mrf.mxu0
    %3407 = vmatprep.mubr.f32.mxu0 %v882
    %3408 = vmatmul.mubr.f32.gmra.mxu0 %v881
    %v3409 = vpop.f32.mrf.mxu0
    %v3410 = vadd.f32 %v3265, %v3409
    %v3411 = vpop.f32.mrf.mxu0
    %3412 = vmatprep.mubr.f32.mxu0 %v889
    %3413 = vmatmul.mubr.f32.gmra.mxu0 %v888
    %v3414 = vpop.f32.mrf.mxu0
    %v3415 = vadd.f32 %v3270, %v3414
    %v3416 = vpop.f32.mrf.mxu0
    %3417 = vmatprep.mubr.f32.mxu0 %v896
    %3418 = vmatmul.mubr.f32.gmra.mxu0 %v895
    %v3419 = vpop.f32.mrf.mxu0
    %v3420 = vadd.f32 %v3275, %v3419
    %v3421 = vpop.f32.mrf.mxu0
    %3422 = vmatprep.mubr.f32.mxu0 %v903
    %3423 = vmatmul.mubr.f32.gmra.mxu0 %v902
    %v3424 = vpop.f32.mrf.mxu0
    %v3425 = vadd.f32 %v3280, %v3424
    %v3426 = vpop.f32.mrf.mxu0
    %3427 = vmatprep.mubr.f32.mxu0 %v910
    %3428 = vmatmul.mubr.f32.gmra.mxu0 %v909
    %v3429 = vpop.f32.mrf.mxu0
    %v3430 = vadd.f32 %v3285, %v3429
    %v3431 = vpop.f32.mrf.mxu0
    %3432 = vmatprep.mubr.f32.mxu0 %v917
    %3433 = vmatmul.mubr.f32.gmra.mxu0 %v916
    %v3434 = vpop.f32.mrf.mxu0
    %v3435 = vadd.f32 %v3290, %v3434
    %v3436 = vpop.f32.mrf.mxu0
    %3437 = vmatprep.mubr.f32.mxu0 %v924
    %3438 = vmatmul.mubr.f32.gmra.mxu0 %v923
    %v3439 = vpop.f32.mrf.mxu0
    %v3440 = vadd.f32 %v3295, %v3439
    %v3441 = vpop.f32.mrf.mxu0
    %3442 = vmatprep.mubr.f32.mxu0 %v931
    %3443 = vmatmul.mubr.f32.gmra.mxu0 %v930
    %v3444 = vpop.f32.mrf.mxu0
    %v3445 = vadd.f32 %v3300, %v3444
    %v3446 = vpop.f32.mrf.mxu0
    %3447 = vmatprep.mubr.f32.mxu0 %v938
    %3448 = vmatmul.mubr.f32.gmra.mxu0 %v937
    %v3449 = vpop.f32.mrf.mxu0
    %v3450 = vadd.f32 %v3305, %v3449
    %v3451 = vpop.f32.mrf.mxu0
    %3452 = vmatprep.mubr.f32.mxu0 %v945
    %3453 = vmatmul.mubr.f32.gmra.mxu0 %v944
    %v3454 = vpop.f32.mrf.mxu0
    %v3455 = vadd.f32 %v3310, %v3454
    %v3456 = vpop.f32.mrf.mxu0
    %3457 = vmatprep.mubr.f32.mxu0 %v952
    %3458 = vmatmul.mubr.f32.gmra.mxu0 %v951
    %v3459 = vpop.f32.mrf.mxu0
    %v3460 = vadd.f32 %v3315, %v3459
    %v3461 = vpop.f32.mrf.mxu0
    %3462 = vmatprep.mubr.f32.mxu0 %v959
    %3463 = vmatmul.mubr.f32.gmra.mxu0 %v958
    %v3464 = vpop.f32.mrf.mxu0
    %v3465 = vadd.f32 %v3320, %v3464
    %v3466 = vpop.f32.mrf.mxu0
    %3467 = vmatprep.mubr.f32.mxu0 %v966
    %3468 = vmatmul.mubr.f32.gmra.mxu0 %v965
    %v3469 = vpop.f32.mrf.mxu0
    %v3470 = vadd.f32 %v3325, %v3469
    %v3471 = vpop.f32.mrf.mxu0
    %3472 = vmatprep.mubr.f32.mxu0 %v973
    %3473 = vmatmul.mubr.f32.gmra.mxu0 %v972
    %v3474 = vpop.f32.mrf.mxu0
    %v3475 = vadd.f32 %v3330, %v3474
    %v3476 = vpop.f32.mrf.mxu0
    %3477 = vdwg.mxu0
    %3478 = vmatprep.subr.mxu0 0.0
    %3479 = vmatpush1.msra.mxu0 %v1712
    %3480 = vmatprep.subr.mxu0 0.0
    %3481 = vmatpush1.msra.mxu0 %v1707
    %3482 = vmatprep.subr.mxu0 0.0
    %3483 = vmatpush1.msra.mxu0 %v1702
    %3484 = vmatprep.subr.mxu0 0.0
    %3485 = vmatpush1.msra.mxu0 %v1697
    %3486 = vmatprep.subr.mxu0 0.0
    %3487 = vmatpush1.msra.mxu0 %v1692
    %3488 = vmatprep.subr.mxu0 0.0
    %3489 = vmatpush1.msra.mxu0 %v1687
    %3490 = vmatprep.subr.mxu0 0.0
    %3491 = vmatpush1.msra.mxu0 %v1682
    %3492 = vmatprep.subr.mxu0 0.0
    %3493 = vmatpush1.msra.mxu0 %v1677
    %3494 = vmatprep.subr.mxu0 0.0
    %3495 = vmatpush1.msra.mxu0 %v1672
    %3496 = vmatprep.subr.mxu0 0.0
    %3497 = vmatpush1.msra.mxu0 %v1667
    %3498 = vmatprep.subr.mxu0 0.0
    %3499 = vmatpush1.msra.mxu0 %v1662
    %3500 = vmatprep.subr.mxu0 0.0
    %3501 = vmatpush1.msra.mxu0 %v1657
    %3502 = vmatprep.subr.mxu0 0.0
    %3503 = vmatpush1.msra.mxu0 %v1652
    %3504 = vmatprep.subr.mxu0 0.0
    %3505 = vmatpush1.msra.mxu0 %v1647
    %3506 = vmatprep.subr.mxu0 0.0
    %3507 = vmatpush1.msra.mxu0 %v1642
    %3508 = vmatprep.subr.mxu0 0.0
    %3509 = vmatpush1.msra.mxu0 %v1637
    %3510 = vmatprep.subr.mxu0 0.0
    %3511 = vmatpush2.msra.mxu0 %v1792
    %3512 = vmatprep.subr.mxu0 0.0
    %3513 = vmatpush2.msra.mxu0 %v1787
    %3514 = vmatprep.subr.mxu0 0.0
    %3515 = vmatpush2.msra.mxu0 %v1782
    %3516 = vmatprep.subr.mxu0 0.0
    %3517 = vmatpush2.msra.mxu0 %v1777
    %3518 = vmatprep.subr.mxu0 0.0
    %3519 = vmatpush2.msra.mxu0 %v1772
    %3520 = vmatprep.subr.mxu0 0.0
    %3521 = vmatpush2.msra.mxu0 %v1767
    %3522 = vmatprep.subr.mxu0 0.0
    %3523 = vmatpush2.msra.mxu0 %v1762
    %3524 = vmatprep.subr.mxu0 0.0
    %3525 = vmatpush2.msra.mxu0 %v1757
    %3526 = vmatprep.subr.mxu0 0.0
    %3527 = vmatpush2.msra.mxu0 %v1752
    %3528 = vmatprep.subr.mxu0 0.0
    %3529 = vmatpush2.msra.mxu0 %v1747
    %3530 = vmatprep.subr.mxu0 0.0
    %3531 = vmatpush2.msra.mxu0 %v1742
    %3532 = vmatprep.subr.mxu0 0.0
    %3533 = vmatpush2.msra.mxu0 %v1737
    %3534 = vmatprep.subr.mxu0 0.0
    %3535 = vmatpush2.msra.mxu0 %v1732
    %3536 = vmatprep.subr.mxu0 0.0
    %3537 = vmatpush2.msra.mxu0 %v1727
    %3538 = vmatprep.subr.mxu0 0.0
    %3539 = vmatpush2.msra.mxu0 %v1722
    %3540 = vmatprep.subr.mxu0 0.0
    %3541 = vmatpush2.msra.mxu0 %v1717
    %3542 = vmatprep.mubr.f32.mxu0 %v870
    %3543 = vmatmul.mubr.f32.gmra.mxu0 %v869
    %v3544 = vpop.f32.mrf.mxu0
    %v3545 = vadd.f32 %v3400, %v3544
    %v3546 = vpop.f32.mrf.mxu0
    %3547 = vmatprep.mubr.f32.mxu0 %v877
    %3548 = vmatmul.mubr.f32.gmra.mxu0 %v876
    %v3549 = vpop.f32.mrf.mxu0
    %v3550 = vadd.f32 %v3405, %v3549
    %v3551 = vpop.f32.mrf.mxu0
    %3552 = vmatprep.mubr.f32.mxu0 %v884
    %3553 = vmatmul.mubr.f32.gmra.mxu0 %v883
    %v3554 = vpop.f32.mrf.mxu0
    %v3555 = vadd.f32 %v3410, %v3554
    %v3556 = vpop.f32.mrf.mxu0
    %3557 = vmatprep.mubr.f32.mxu0 %v891
    %3558 = vmatmul.mubr.f32.gmra.mxu0 %v890
    %v3559 = vpop.f32.mrf.mxu0
    %v3560 = vadd.f32 %v3415, %v3559
    %v3561 = vpop.f32.mrf.mxu0
    %3562 = vmatprep.mubr.f32.mxu0 %v898
    %3563 = vmatmul.mubr.f32.gmra.mxu0 %v897
    %v3564 = vpop.f32.mrf.mxu0
    %v3565 = vadd.f32 %v3420, %v3564
    %v3566 = vpop.f32.mrf.mxu0
    %3567 = vmatprep.mubr.f32.mxu0 %v905
    %3568 = vmatmul.mubr.f32.gmra.mxu0 %v904
    %v3569 = vpop.f32.mrf.mxu0
    %v3570 = vadd.f32 %v3425, %v3569
    %v3571 = vpop.f32.mrf.mxu0
    %3572 = vmatprep.mubr.f32.mxu0 %v912
    %3573 = vmatmul.mubr.f32.gmra.mxu0 %v911
    %v3574 = vpop.f32.mrf.mxu0
    %v3575 = vadd.f32 %v3430, %v3574
    %v3576 = vpop.f32.mrf.mxu0
    %3577 = vmatprep.mubr.f32.mxu0 %v919
    %3578 = vmatmul.mubr.f32.gmra.mxu0 %v918
    %v3579 = vpop.f32.mrf.mxu0
    %v3580 = vadd.f32 %v3435, %v3579
    %v3581 = vpop.f32.mrf.mxu0
    %3582 = vmatprep.mubr.f32.mxu0 %v926
    %3583 = vmatmul.mubr.f32.gmra.mxu0 %v925
    %v3584 = vpop.f32.mrf.mxu0
    %v3585 = vadd.f32 %v3440, %v3584
    %v3586 = vpop.f32.mrf.mxu0
    %3587 = vmatprep.mubr.f32.mxu0 %v933
    %3588 = vmatmul.mubr.f32.gmra.mxu0 %v932
    %v3589 = vpop.f32.mrf.mxu0
    %v3590 = vadd.f32 %v3445, %v3589
    %v3591 = vpop.f32.mrf.mxu0
    %3592 = vmatprep.mubr.f32.mxu0 %v940
    %3593 = vmatmul.mubr.f32.gmra.mxu0 %v939
    %v3594 = vpop.f32.mrf.mxu0
    %v3595 = vadd.f32 %v3450, %v3594
    %v3596 = vpop.f32.mrf.mxu0
    %3597 = vmatprep.mubr.f32.mxu0 %v947
    %3598 = vmatmul.mubr.f32.gmra.mxu0 %v946
    %v3599 = vpop.f32.mrf.mxu0
    %v3600 = vadd.f32 %v3455, %v3599
    %v3601 = vpop.f32.mrf.mxu0
    %3602 = vmatprep.mubr.f32.mxu0 %v954
    %3603 = vmatmul.mubr.f32.gmra.mxu0 %v953
    %v3604 = vpop.f32.mrf.mxu0
    %v3605 = vadd.f32 %v3460, %v3604
    %v3606 = vpop.f32.mrf.mxu0
    %3607 = vmatprep.mubr.f32.mxu0 %v961
    %3608 = vmatmul.mubr.f32.gmra.mxu0 %v960
    %v3609 = vpop.f32.mrf.mxu0
    %v3610 = vadd.f32 %v3465, %v3609
    %v3611 = vpop.f32.mrf.mxu0
    %3612 = vmatprep.mubr.f32.mxu0 %v968
    %3613 = vmatmul.mubr.f32.gmra.mxu0 %v967
    %v3614 = vpop.f32.mrf.mxu0
    %v3615 = vadd.f32 %v3470, %v3614
    %v3616 = vpop.f32.mrf.mxu0
    %3617 = vmatprep.mubr.f32.mxu0 %v975
    %3618 = vmatmul.mubr.f32.gmra.mxu0 %v974
    %v3619 = vpop.f32.mrf.mxu0
    %v3620 = vadd.f32 %v3475, %v3619
    %v3621 = vpop.f32.mrf.mxu0
    %3622 = vdwg.mxu0
    %3623 = vmatprep.subr.mxu0 0.0
    %3624 = vmatpush1.msra.mxu0 %v1872
    %3625 = vmatprep.subr.mxu0 0.0
    %3626 = vmatpush1.msra.mxu0 %v1867
    %3627 = vmatprep.subr.mxu0 0.0
    %3628 = vmatpush1.msra.mxu0 %v1862
    %3629 = vmatprep.subr.mxu0 0.0
    %3630 = vmatpush1.msra.mxu0 %v1857
    %3631 = vmatprep.subr.mxu0 0.0
    %3632 = vmatpush1.msra.mxu0 %v1852
    %3633 = vmatprep.subr.mxu0 0.0
    %3634 = vmatpush1.msra.mxu0 %v1847
    %3635 = vmatprep.subr.mxu0 0.0
    %3636 = vmatpush1.msra.mxu0 %v1842
    %3637 = vmatprep.subr.mxu0 0.0
    %3638 = vmatpush1.msra.mxu0 %v1837
    %3639 = vmatprep.subr.mxu0 0.0
    %3640 = vmatpush1.msra.mxu0 %v1832
    %3641 = vmatprep.subr.mxu0 0.0
    %3642 = vmatpush1.msra.mxu0 %v1827
    %3643 = vmatprep.subr.mxu0 0.0
    %3644 = vmatpush1.msra.mxu0 %v1822
    %3645 = vmatprep.subr.mxu0 0.0
    %3646 = vmatpush1.msra.mxu0 %v1817
    %3647 = vmatprep.subr.mxu0 0.0
    %3648 = vmatpush1.msra.mxu0 %v1812
    %3649 = vmatprep.subr.mxu0 0.0
    %3650 = vmatpush1.msra.mxu0 %v1807
    %3651 = vmatprep.subr.mxu0 0.0
    %3652 = vmatpush1.msra.mxu0 %v1802
    %3653 = vmatprep.subr.mxu0 0.0
    %3654 = vmatpush1.msra.mxu0 %v1797
    %3655 = vmatprep.subr.mxu0 0.0
    %3656 = vmatpush2.msra.mxu0 0.0
    %3657 = vmatprep.subr.mxu0 0.0
    %3658 = vmatpush2.msra.mxu0 0.0
    %3659 = vmatprep.subr.mxu0 0.0
    %3660 = vmatpush2.msra.mxu0 0.0
    %3661 = vmatprep.subr.mxu0 0.0
    %3662 = vmatpush2.msra.mxu0 0.0
    %3663 = vmatprep.subr.mxu0 0.0
    %3664 = vmatpush2.msra.mxu0 0.0
    %3665 = vmatprep.subr.mxu0 0.0
    %3666 = vmatpush2.msra.mxu0 0.0
    %3667 = vmatprep.subr.mxu0 0.0
    %3668 = vmatpush2.msra.mxu0 0.0
    %3669 = vmatprep.subr.mxu0 0.0
    %3670 = vmatpush2.msra.mxu0 0.0
    %3671 = vmatprep.subr.mxu0 0.0
    %3672 = vmatpush2.msra.mxu0 0.0
    %3673 = vmatprep.subr.mxu0 0.0
    %3674 = vmatpush2.msra.mxu0 0.0
    %3675 = vmatprep.subr.mxu0 0.0
    %3676 = vmatpush2.msra.mxu0 0.0
    %3677 = vmatprep.subr.mxu0 0.0
    %3678 = vmatpush2.msra.mxu0 0.0
    %3679 = vmatprep.subr.mxu0 0.0
    %3680 = vmatpush2.msra.mxu0 0.0
    %3681 = vmatprep.subr.mxu0 0.0
    %3682 = vmatpush2.msra.mxu0 0.0
    %3683 = vmatprep.subr.mxu0 0.0
    %3684 = vmatpush2.msra.mxu0 0.0
    %3685 = vmatprep.subr.mxu0 0.0
    %3686 = vmatpush2.msra.mxu0 0.0
    %3687 = vmatprep.mubr.f32.mxu0 0.0
    %3688 = vmatmul.mubr.f32.gmra.mxu0 %v871
    %v3689 = vpop.f32.mrf.mxu0
    %v3690 = vadd.f32 %v3545, %v3689
    %v3691 = vpop.f32.mrf.mxu0
    %3692 = vmatprep.mubr.f32.mxu0 0.0
    %3693 = vmatmul.mubr.f32.gmra.mxu0 %v878
    %v3694 = vpop.f32.mrf.mxu0
    %v3695 = vadd.f32 %v3550, %v3694
    %v3696 = vpop.f32.mrf.mxu0
    %3697 = vmatprep.mubr.f32.mxu0 0.0
    %3698 = vmatmul.mubr.f32.gmra.mxu0 %v885
    %v3699 = vpop.f32.mrf.mxu0
    %v3700 = vadd.f32 %v3555, %v3699
    %v3701 = vpop.f32.mrf.mxu0
    %3702 = vmatprep.mubr.f32.mxu0 0.0
    %3703 = vmatmul.mubr.f32.gmra.mxu0 %v892
    %v3704 = vpop.f32.mrf.mxu0
    %v3705 = vadd.f32 %v3560, %v3704
    %v3706 = vpop.f32.mrf.mxu0
    %3707 = vmatprep.mubr.f32.mxu0 0.0
    %3708 = vmatmul.mubr.f32.gmra.mxu0 %v899
    %v3709 = vpop.f32.mrf.mxu0
    %v3710 = vadd.f32 %v3565, %v3709
    %v3711 = vpop.f32.mrf.mxu0
    %3712 = vmatprep.mubr.f32.mxu0 0.0
    %3713 = vmatmul.mubr.f32.gmra.mxu0 %v906
    %v3714 = vpop.f32.mrf.mxu0
    %v3715 = vadd.f32 %v3570, %v3714
    %v3716 = vpop.f32.mrf.mxu0
    %3717 = vmatprep.mubr.f32.mxu0 0.0
    %3718 = vmatmul.mubr.f32.gmra.mxu0 %v913
    %v3719 = vpop.f32.mrf.mxu0
    %v3720 = vadd.f32 %v3575, %v3719
    %v3721 = vpop.f32.mrf.mxu0
    %3722 = vmatprep.mubr.f32.mxu0 0.0
    %3723 = vmatmul.mubr.f32.gmra.mxu0 %v920
    %v3724 = vpop.f32.mrf.mxu0
    %v3725 = vadd.f32 %v3580, %v3724
    %v3726 = vpop.f32.mrf.mxu0
    %3727 = vmatprep.mubr.f32.mxu0 0.0
    %3728 = vmatmul.mubr.f32.gmra.mxu0 %v927
    %v3729 = vpop.f32.mrf.mxu0
    %v3730 = vadd.f32 %v3585, %v3729
    %v3731 = vpop.f32.mrf.mxu0
    %3732 = vmatprep.mubr.f32.mxu0 0.0
    %3733 = vmatmul.mubr.f32.gmra.mxu0 %v934
    %v3734 = vpop.f32.mrf.mxu0
    %v3735 = vadd.f32 %v3590, %v3734
    %v3736 = vpop.f32.mrf.mxu0
    %3737 = vmatprep.mubr.f32.mxu0 0.0
    %3738 = vmatmul.mubr.f32.gmra.mxu0 %v941
    %v3739 = vpop.f32.mrf.mxu0
    %v3740 = vadd.f32 %v3595, %v3739
    %v3741 = vpop.f32.mrf.mxu0
    %3742 = vmatprep.mubr.f32.mxu0 0.0
    %3743 = vmatmul.mubr.f32.gmra.mxu0 %v948
    %v3744 = vpop.f32.mrf.mxu0
    %v3745 = vadd.f32 %v3600, %v3744
    %v3746 = vpop.f32.mrf.mxu0
    %3747 = vmatprep.mubr.f32.mxu0 0.0
    %3748 = vmatmul.mubr.f32.gmra.mxu0 %v955
    %v3749 = vpop.f32.mrf.mxu0
    %v3750 = vadd.f32 %v3605, %v3749
    %v3751 = vpop.f32.mrf.mxu0
    %3752 = vmatprep.mubr.f32.mxu0 0.0
    %3753 = vmatmul.mubr.f32.gmra.mxu0 %v962
    %v3754 = vpop.f32.mrf.mxu0
    %v3755 = vadd.f32 %v3610, %v3754
    %v3756 = vpop.f32.mrf.mxu0
    %3757 = vmatprep.mubr.f32.mxu0 0.0
    %3758 = vmatmul.mubr.f32.gmra.mxu0 %v969
    %v3759 = vpop.f32.mrf.mxu0
    %v3760 = vadd.f32 %v3615, %v3759
    %v3761 = vpop.f32.mrf.mxu0
    %3762 = vmatprep.mubr.f32.mxu0 0.0
    %3763 = vmatmul.mubr.f32.gmra.mxu0 %v976
    %v3764 = vpop.f32.mrf.mxu0
    %v3765 = vadd.f32 %v3620, %v3764
    %v3766 = vpop.f32.mrf.mxu0
    %3767 = vdwg.mxu0
    %v3768 = vmax.f32 %v2450, 0.0
    %v3769 = vmax.f32 %v2452, 0.0
    %v3770 = vmax.f32 %v3094, 0.0
    %v3771 = vmax.f32 %v3096, 0.0
    %v3772 = vmax.f32 %v3690, 0.0
    %v3773 = vmax.f32 %v2456, 0.0
    %v3774 = vmax.f32 %v2458, 0.0
    %v3775 = vmax.f32 %v3100, 0.0
    %v3776 = vmax.f32 %v3102, 0.0
    %v3777 = vmax.f32 %v3695, 0.0
    %v3778 = vmax.f32 %v2462, 0.0
    %v3779 = vmax.f32 %v2464, 0.0
    %v3780 = vmax.f32 %v3106, 0.0
    %v3781 = vmax.f32 %v3108, 0.0
    %v3782 = vmax.f32 %v3700, 0.0
    %v3783 = vmax.f32 %v2468, 0.0
    %v3784 = vmax.f32 %v2470, 0.0
    %v3785 = vmax.f32 %v3112, 0.0
    %v3786 = vmax.f32 %v3114, 0.0
    %v3787 = vmax.f32 %v3705, 0.0
    %v3788 = vmax.f32 %v2474, 0.0
    %v3789 = vmax.f32 %v2476, 0.0
    %v3790 = vmax.f32 %v3118, 0.0
    %v3791 = vmax.f32 %v3120, 0.0
    %v3792 = vmax.f32 %v3710, 0.0
    %v3793 = vmax.f32 %v2480, 0.0
    %v3794 = vmax.f32 %v2482, 0.0
    %v3795 = vmax.f32 %v3124, 0.0
    %v3796 = vmax.f32 %v3126, 0.0
    %v3797 = vmax.f32 %v3715, 0.0
    %v3798 = vmax.f32 %v2486, 0.0
    %v3799 = vmax.f32 %v2488, 0.0
    %v3800 = vmax.f32 %v3130, 0.0
    %v3801 = vmax.f32 %v3132, 0.0
    %v3802 = vmax.f32 %v3720, 0.0
    %v3803 = vmax.f32 %v2492, 0.0
    %v3804 = vmax.f32 %v2494, 0.0
    %v3805 = vmax.f32 %v3136, 0.0
    %v3806 = vmax.f32 %v3138, 0.0
    %v3807 = vmax.f32 %v3725, 0.0
    %v3808 = vmax.f32 %v2498, 0.0
    %v3809 = vmax.f32 %v2500, 0.0
    %v3810 = vmax.f32 %v3142, 0.0
    %v3811 = vmax.f32 %v3144, 0.0
    %v3812 = vmax.f32 %v3730, 0.0
    %v3813 = vmax.f32 %v2504, 0.0
    %v3814 = vmax.f32 %v2506, 0.0
    %v3815 = vmax.f32 %v3148, 0.0
    %v3816 = vmax.f32 %v3150, 0.0
    %v3817 = vmax.f32 %v3735, 0.0
    %v3818 = vmax.f32 %v2510, 0.0
    %v3819 = vmax.f32 %v2512, 0.0
    %v3820 = vmax.f32 %v3154, 0.0
    %v3821 = vmax.f32 %v3156, 0.0
    %v3822 = vmax.f32 %v3740, 0.0
    %v3823 = vmax.f32 %v2516, 0.0
    %v3824 = vmax.f32 %v2518, 0.0
    %v3825 = vmax.f32 %v3160, 0.0
    %v3826 = vmax.f32 %v3162, 0.0
    %v3827 = vmax.f32 %v3745, 0.0
    %v3828 = vmax.f32 %v2522, 0.0
    %v3829 = vmax.f32 %v2524, 0.0
    %v3830 = vmax.f32 %v3166, 0.0
    %v3831 = vmax.f32 %v3168, 0.0
    %v3832 = vmax.f32 %v3750, 0.0
    %v3833 = vmax.f32 %v2528, 0.0
    %v3834 = vmax.f32 %v2530, 0.0
    %v3835 = vmax.f32 %v3172, 0.0
    %v3836 = vmax.f32 %v3174, 0.0
    %v3837 = vmax.f32 %v3755, 0.0
    %v3838 = vmax.f32 %v2534, 0.0
    %v3839 = vmax.f32 %v2536, 0.0
    %v3840 = vmax.f32 %v3178, 0.0
    %v3841 = vmax.f32 %v3180, 0.0
    %v3842 = vmax.f32 %v3760, 0.0
    %v3843 = vmax.f32 %v2540, 0.0
    %v3844 = vmax.f32 %v2542, 0.0
    %v3845 = vmax.f32 %v3184, 0.0
    %v3846 = vmax.f32 %v3186, 0.0
    %v3847 = vmax.f32 %v3765, 0.0
    %v3848 = vld [vmem:[#allocation9] sm:$0xf]
    %v3849 = vld [vmem:[#allocation9 + $0x4] sm:$0xf]
    %v3850 = vld [vmem:[#allocation9 + $0x8] sm:$0xf]
    %v3851 = vld [vmem:[#allocation9 + $0xc] sm:$0xf]
    %v3852 = vld [vmem:[#allocation9 + $0x10] sm:$0xf]
    %v3853 = vld [vmem:[#allocation9 + $0x14] sm:$0xf]
    %v3854 = vld [vmem:[#allocation9 + $0x18] sm:$0xf]
    %v3855 = vld [vmem:[#allocation9 + $0x1c] sm:$0xf]
    %v3856 = vld [vmem:[#allocation9 + $0x20] sm:$0xf]
    %v3857 = vld [vmem:[#allocation9 + $0x24] sm:$0xf]
    %v3858 = vld [vmem:[#allocation9 + $0x28] sm:$0xf]
    %v3859 = vld [vmem:[#allocation9 + $0x2c] sm:$0xf]
    %v3860 = vld [vmem:[#allocation9 + $0x30] sm:$0xf]
    %v3861 = vld [vmem:[#allocation9 + $0x34] sm:$0xf]
    %v3862 = vld [vmem:[#allocation9 + $0x38] sm:$0xf]
    %v3863 = vld [vmem:[#allocation9 + $0x3c] sm:$0xf]
    %v3864 = vld [vmem:[#allocation9 + $0x40] sm:$0xf]
    %v3865 = vld [vmem:[#allocation9 + $0x44] sm:$0xf]
    %v3866 = vld [vmem:[#allocation9 + $0x48] sm:$0xf]
    %v3867 = vld [vmem:[#allocation9 + $0x4c] sm:$0xf]
    %v3868 = vld [vmem:[#allocation9 + $0x50] sm:$0xf]
    %v3869 = vld [vmem:[#allocation9 + $0x54] sm:$0xf]
    %v3870 = vld [vmem:[#allocation9 + $0x58] sm:$0xf]
    %v3871 = vld [vmem:[#allocation9 + $0x5c] sm:$0xf]
    %v3872 = vld [vmem:[#allocation9 + $0x60] sm:$0xf]
    %v3873 = vld [vmem:[#allocation9 + $0x64] sm:$0xf]
    %v3874 = vld [vmem:[#allocation9 + $0x68] sm:$0xf]
    %v3875 = vld [vmem:[#allocation9 + $0x6c] sm:$0xf]
    %v3876 = vld [vmem:[#allocation9 + $0x70] sm:$0xf]
    %v3877 = vld [vmem:[#allocation9 + $0x74] sm:$0xf]
    %v3878 = vld [vmem:[#allocation9 + $0x78] sm:$0xf]
    %v3879 = vld [vmem:[#allocation9 + $0x7c] sm:$0xf]
    %v3880 = vld [vmem:[#allocation9 + $0x80] sm:$0xf]
    %v3881 = vld [vmem:[#allocation9 + $0x84] sm:$0xf]
    %v3882 = vld [vmem:[#allocation9 + $0x88] sm:$0xf]
    %v3883 = vld [vmem:[#allocation9 + $0x8c] sm:$0xf]
    %v3884 = vld [vmem:[#allocation9 + $0x90] sm:$0xf]
    %v3885 = vld [vmem:[#allocation9 + $0x94] sm:$0xf]
    %v3886 = vld [vmem:[#allocation9 + $0x98] sm:$0xf]
    %v3887 = vld [vmem:[#allocation9 + $0x9c] sm:$0xf]
    %v3888 = vld [vmem:[#allocation9 + $0xa0] sm:$0xf]
    %v3889 = vld [vmem:[#allocation9 + $0xa4] sm:$0xf]
    %v3890 = vld [vmem:[#allocation9 + $0xa8] sm:$0xf]
    %v3891 = vld [vmem:[#allocation9 + $0xac] sm:$0xf]
    %v3892 = vld [vmem:[#allocation9 + $0xb0] sm:$0xf]
    %v3893 = vld [vmem:[#allocation9 + $0xb4] sm:$0xf]
    %v3894 = vld [vmem:[#allocation9 + $0xb8] sm:$0xf]
    %v3895 = vld [vmem:[#allocation9 + $0xbc] sm:$0xf]
    %v3896 = vld [vmem:[#allocation9 + $0xc0] sm:$0xf]
    %v3897 = vld [vmem:[#allocation9 + $0xc4] sm:$0xf]
    %v3898 = vld [vmem:[#allocation9 + $0xc8] sm:$0xf]
    %v3899 = vld [vmem:[#allocation9 + $0xcc] sm:$0xf]
    %v3900 = vld [vmem:[#allocation9 + $0xd0] sm:$0xf]
    %v3901 = vld [vmem:[#allocation9 + $0xd4] sm:$0xf]
    %v3902 = vld [vmem:[#allocation9 + $0xd8] sm:$0xf]
    %v3903 = vld [vmem:[#allocation9 + $0xdc] sm:$0xf]
    %v3904 = vld [vmem:[#allocation9 + $0xe0] sm:$0xf]
    %v3905 = vld [vmem:[#allocation9 + $0xe4] sm:$0xf]
    %v3906 = vld [vmem:[#allocation9 + $0xe8] sm:$0xf]
    %v3907 = vld [vmem:[#allocation9 + $0xec] sm:$0xf]
    %v3908 = vld [vmem:[#allocation9 + $0xf0] sm:$0xf]
    %v3909 = vld [vmem:[#allocation9 + $0xf4] sm:$0xf]
    %v3910 = vld [vmem:[#allocation9 + $0xf8] sm:$0xf]
    %v3911 = vld [vmem:[#allocation9 + $0xfc] sm:$0xf]
    %v3912 = vld [vmem:[#allocation9 + $0x100] sm:$0xf]
    %v3913 = vld [vmem:[#allocation9 + $0x104] sm:$0xf]
    %v3914 = vld [vmem:[#allocation9 + $0x108] sm:$0xf]
    %v3915 = vld [vmem:[#allocation9 + $0x10c] sm:$0xf]
    %v3916 = vld [vmem:[#allocation9 + $0x110] sm:$0xf]
    %v3917 = vld [vmem:[#allocation9 + $0x114] sm:$0xf]
    %v3918 = vld [vmem:[#allocation9 + $0x118] sm:$0xf]
    %v3919 = vld [vmem:[#allocation9 + $0x11c] sm:$0xf]
    %v3920 = vld [vmem:[#allocation9 + $0x120] sm:$0xf]
    %v3921 = vld [vmem:[#allocation9 + $0x124] sm:$0xf]
    %v3922 = vld [vmem:[#allocation9 + $0x128] sm:$0xf]
    %v3923 = vld [vmem:[#allocation9 + $0x12c] sm:$0xf]
    %v3924 = vld [vmem:[#allocation9 + $0x130] sm:$0xf]
    %v3925 = vld [vmem:[#allocation9 + $0x134] sm:$0xf]
    %v3926 = vld [vmem:[#allocation9 + $0x138] sm:$0xf]
    %v3927 = vld [vmem:[#allocation9 + $0x13c] sm:$0xf]
    %v3928 = vunpack.c.l.bf16 %v3848
    %v3929 = vunpack.c.l.bf16 %v3849
    %v3930 = vunpack.c.l.bf16 %v3850
    %v3931 = vunpack.c.l.bf16 %v3851
    %v3932 = vunpack.c.l.bf16 %v3852
    %v3933 = vunpack.c.l.bf16 %v3853
    %v3934 = vunpack.c.l.bf16 %v3854
    %v3935 = vunpack.c.l.bf16 %v3855
    %v3936 = vunpack.c.l.bf16 %v3856
    %v3937 = vunpack.c.l.bf16 %v3857
    %v3938 = vunpack.c.l.bf16 %v3858
    %v3939 = vunpack.c.l.bf16 %v3859
    %v3940 = vunpack.c.l.bf16 %v3860
    %v3941 = vunpack.c.l.bf16 %v3861
    %v3942 = vunpack.c.l.bf16 %v3862
    %v3943 = vunpack.c.l.bf16 %v3863
    %v3944 = vunpack.c.l.bf16 %v3864
    %v3945 = vunpack.c.l.bf16 %v3865
    %v3946 = vunpack.c.l.bf16 %v3866
    %v3947 = vunpack.c.l.bf16 %v3867
    %v3948 = vunpack.c.l.bf16 %v3868
    %v3949 = vunpack.c.l.bf16 %v3869
    %v3950 = vunpack.c.l.bf16 %v3870
    %v3951 = vunpack.c.l.bf16 %v3871
    %v3952 = vunpack.c.l.bf16 %v3872
    %v3953 = vunpack.c.l.bf16 %v3873
    %v3954 = vunpack.c.l.bf16 %v3874
    %v3955 = vunpack.c.l.bf16 %v3875
    %v3956 = vunpack.c.l.bf16 %v3876
    %v3957 = vunpack.c.l.bf16 %v3877
    %v3958 = vunpack.c.l.bf16 %v3878
    %v3959 = vunpack.c.l.bf16 %v3879
    %v3960 = vunpack.c.l.bf16 %v3880
    %v3961 = vunpack.c.l.bf16 %v3881
    %v3962 = vunpack.c.l.bf16 %v3882
    %v3963 = vunpack.c.l.bf16 %v3883
    %v3964 = vunpack.c.l.bf16 %v3884
    %v3965 = vunpack.c.l.bf16 %v3885
    %v3966 = vunpack.c.l.bf16 %v3886
    %v3967 = vunpack.c.l.bf16 %v3887
    %v3968 = vunpack.c.l.bf16 %v3888
    %v3969 = vunpack.c.l.bf16 %v3889
    %v3970 = vunpack.c.l.bf16 %v3890
    %v3971 = vunpack.c.l.bf16 %v3891
    %v3972 = vunpack.c.l.bf16 %v3892
    %v3973 = vunpack.c.l.bf16 %v3893
    %v3974 = vunpack.c.l.bf16 %v3894
    %v3975 = vunpack.c.l.bf16 %v3895
    %v3976 = vunpack.c.l.bf16 %v3896
    %v3977 = vunpack.c.l.bf16 %v3897
    %v3978 = vunpack.c.l.bf16 %v3898
    %v3979 = vunpack.c.l.bf16 %v3899
    %v3980 = vunpack.c.l.bf16 %v3900
    %v3981 = vunpack.c.l.bf16 %v3901
    %v3982 = vunpack.c.l.bf16 %v3902
    %v3983 = vunpack.c.l.bf16 %v3903
    %v3984 = vunpack.c.l.bf16 %v3904
    %v3985 = vunpack.c.l.bf16 %v3905
    %v3986 = vunpack.c.l.bf16 %v3906
    %v3987 = vunpack.c.l.bf16 %v3907
    %v3988 = vunpack.c.l.bf16 %v3908
    %v3989 = vunpack.c.l.bf16 %v3909
    %v3990 = vunpack.c.l.bf16 %v3910
    %v3991 = vunpack.c.l.bf16 %v3911
    %v3992 = vunpack.c.l.bf16 %v3912
    %v3993 = vunpack.c.l.bf16 %v3913
    %v3994 = vunpack.c.l.bf16 %v3914
    %v3995 = vunpack.c.l.bf16 %v3915
    %v3996 = vunpack.c.l.bf16 %v3916
    %v3997 = vunpack.c.l.bf16 %v3917
    %v3998 = vunpack.c.l.bf16 %v3918
    %v3999 = vunpack.c.l.bf16 %v3919
    %v4000 = vunpack.c.l.bf16 %v3920
    %v4001 = vunpack.c.l.bf16 %v3921
    %v4002 = vunpack.c.l.bf16 %v3922
    %v4003 = vunpack.c.l.bf16 %v3923
    %v4004 = vunpack.c.l.bf16 %v3924
    %v4005 = vunpack.c.l.bf16 %v3925
    %v4006 = vunpack.c.l.bf16 %v3926
    %v4007 = vunpack.c.l.bf16 %v3927
    %v4008 = vld [vmem:[#allocation10] sm:$0x1]
    %v4010 = vlaneseq
    %v4011 = vshrl.u32 %v4010, 7
    %v4012 = vsub.s32 0, %v4011
    %v4013 = vrot.slane %v4008, %v4012
    %4015 = vmatprep.subr.mxu0 0.0
    %4016 = vmatpush1.msra.mxu0 %v3943
    %4017 = vmatprep.subr.mxu0 0.0
    %4018 = vmatpush1.msra.mxu0 %v3942
    %4019 = vmatprep.subr.mxu0 0.0
    %4020 = vmatpush1.msra.mxu0 %v3941
    %4021 = vmatprep.subr.mxu0 0.0
    %4022 = vmatpush1.msra.mxu0 %v3940
    %4023 = vmatprep.subr.mxu0 0.0
    %4024 = vmatpush1.msra.mxu0 %v3939
    %4025 = vmatprep.subr.mxu0 0.0
    %4026 = vmatpush1.msra.mxu0 %v3938
    %4027 = vmatprep.subr.mxu0 0.0
    %4028 = vmatpush1.msra.mxu0 %v3937
    %4029 = vmatprep.subr.mxu0 0.0
    %4030 = vmatpush1.msra.mxu0 %v3936
    %4031 = vmatprep.subr.mxu0 0.0
    %4032 = vmatpush1.msra.mxu0 %v3935
    %4033 = vmatprep.subr.mxu0 0.0
    %4034 = vmatpush1.msra.mxu0 %v3934
    %4035 = vmatprep.subr.mxu0 0.0
    %4036 = vmatpush1.msra.mxu0 %v3933
    %4037 = vmatprep.subr.mxu0 0.0
    %4038 = vmatpush1.msra.mxu0 %v3932
    %4039 = vmatprep.subr.mxu0 0.0
    %4040 = vmatpush1.msra.mxu0 %v3931
    %4041 = vmatprep.subr.mxu0 0.0
    %4042 = vmatpush1.msra.mxu0 %v3930
    %4043 = vmatprep.subr.mxu0 0.0
    %4044 = vmatpush1.msra.mxu0 %v3929
    %4045 = vmatprep.subr.mxu0 0.0
    %4046 = vmatpush1.msra.mxu0 %v3928
    %4047 = vmatprep.subr.mxu0 0.0
    %4048 = vmatpush2.msra.mxu0 %v3959
    %4049 = vmatprep.subr.mxu0 0.0
    %4050 = vmatpush2.msra.mxu0 %v3958
    %4051 = vmatprep.subr.mxu0 0.0
    %4052 = vmatpush2.msra.mxu0 %v3957
    %4053 = vmatprep.subr.mxu0 0.0
    %4054 = vmatpush2.msra.mxu0 %v3956
    %4055 = vmatprep.subr.mxu0 0.0
    %4056 = vmatpush2.msra.mxu0 %v3955
    %4057 = vmatprep.subr.mxu0 0.0
    %4058 = vmatpush2.msra.mxu0 %v3954
    %4059 = vmatprep.subr.mxu0 0.0
    %4060 = vmatpush2.msra.mxu0 %v3953
    %4061 = vmatprep.subr.mxu0 0.0
    %4062 = vmatpush2.msra.mxu0 %v3952
    %4063 = vmatprep.subr.mxu0 0.0
    %4064 = vmatpush2.msra.mxu0 %v3951
    %4065 = vmatprep.subr.mxu0 0.0
    %4066 = vmatpush2.msra.mxu0 %v3950
    %4067 = vmatprep.subr.mxu0 0.0
    %4068 = vmatpush2.msra.mxu0 %v3949
    %4069 = vmatprep.subr.mxu0 0.0
    %4070 = vmatpush2.msra.mxu0 %v3948
    %4071 = vmatprep.subr.mxu0 0.0
    %4072 = vmatpush2.msra.mxu0 %v3947
    %4073 = vmatprep.subr.mxu0 0.0
    %4074 = vmatpush2.msra.mxu0 %v3946
    %4075 = vmatprep.subr.mxu0 0.0
    %4076 = vmatpush2.msra.mxu0 %v3945
    %4077 = vmatprep.subr.mxu0 0.0
    %4078 = vmatpush2.msra.mxu0 %v3944
    %4079 = vmatprep.mubr.f32.mxu0 %v3769
    %4080 = vmatmul.mubr.f32.gmra.mxu0 %v3768
    %v4081 = vpop.f32.mrf.mxu0
    %v4082 = vadd.f32 %v4013, %v4081
    %v4083 = vpop.f32.mrf.mxu0
    %4084 = vmatprep.mubr.f32.mxu0 %v3774
    %4085 = vmatmul.mubr.f32.gmra.mxu0 %v3773
    %v4086 = vpop.f32.mrf.mxu0
    %v4087 = vadd.f32 %v4013, %v4086
    %v4088 = vpop.f32.mrf.mxu0
    %4089 = vmatprep.mubr.f32.mxu0 %v3779
    %4090 = vmatmul.mubr.f32.gmra.mxu0 %v3778
    %v4091 = vpop.f32.mrf.mxu0
    %v4092 = vadd.f32 %v4013, %v4091
    %v4093 = vpop.f32.mrf.mxu0
    %4094 = vmatprep.mubr.f32.mxu0 %v3784
    %4095 = vmatmul.mubr.f32.gmra.mxu0 %v3783
    %v4096 = vpop.f32.mrf.mxu0
    %v4097 = vadd.f32 %v4013, %v4096
    %v4098 = vpop.f32.mrf.mxu0
    %4099 = vmatprep.mubr.f32.mxu0 %v3789
    %4100 = vmatmul.mubr.f32.gmra.mxu0 %v3788
    %v4101 = vpop.f32.mrf.mxu0
    %v4102 = vadd.f32 %v4013, %v4101
    %v4103 = vpop.f32.mrf.mxu0
    %4104 = vmatprep.mubr.f32.mxu0 %v3794
    %4105 = vmatmul.mubr.f32.gmra.mxu0 %v3793
    %v4106 = vpop.f32.mrf.mxu0
    %v4107 = vadd.f32 %v4013, %v4106
    %v4108 = vpop.f32.mrf.mxu0
    %4109 = vmatprep.mubr.f32.mxu0 %v3799
    %4110 = vmatmul.mubr.f32.gmra.mxu0 %v3798
    %v4111 = vpop.f32.mrf.mxu0
    %v4112 = vadd.f32 %v4013, %v4111
    %v4113 = vpop.f32.mrf.mxu0
    %4114 = vmatprep.mubr.f32.mxu0 %v3804
    %4115 = vmatmul.mubr.f32.gmra.mxu0 %v3803
    %v4116 = vpop.f32.mrf.mxu0
    %v4117 = vadd.f32 %v4013, %v4116
    %v4118 = vpop.f32.mrf.mxu0
    %4119 = vmatprep.mubr.f32.mxu0 %v3809
    %4120 = vmatmul.mubr.f32.gmra.mxu0 %v3808
    %v4121 = vpop.f32.mrf.mxu0
    %v4122 = vadd.f32 %v4013, %v4121
    %v4123 = vpop.f32.mrf.mxu0
    %4124 = vmatprep.mubr.f32.mxu0 %v3814
    %4125 = vmatmul.mubr.f32.gmra.mxu0 %v3813
    %v4126 = vpop.f32.mrf.mxu0
    %v4127 = vadd.f32 %v4013, %v4126
    %v4128 = vpop.f32.mrf.mxu0
    %4129 = vmatprep.mubr.f32.mxu0 %v3819
    %4130 = vmatmul.mubr.f32.gmra.mxu0 %v3818
    %v4131 = vpop.f32.mrf.mxu0
    %v4132 = vadd.f32 %v4013, %v4131
    %v4133 = vpop.f32.mrf.mxu0
    %4134 = vmatprep.mubr.f32.mxu0 %v3824
    %4135 = vmatmul.mubr.f32.gmra.mxu0 %v3823
    %v4136 = vpop.f32.mrf.mxu0
    %v4137 = vadd.f32 %v4013, %v4136
    %v4138 = vpop.f32.mrf.mxu0
    %4139 = vmatprep.mubr.f32.mxu0 %v3829
    %4140 = vmatmul.mubr.f32.gmra.mxu0 %v3828
    %v4141 = vpop.f32.mrf.mxu0
    %v4142 = vadd.f32 %v4013, %v4141
    %v4143 = vpop.f32.mrf.mxu0
    %4144 = vmatprep.mubr.f32.mxu0 %v3834
    %4145 = vmatmul.mubr.f32.gmra.mxu0 %v3833
    %v4146 = vpop.f32.mrf.mxu0
    %v4147 = vadd.f32 %v4013, %v4146
    %v4148 = vpop.f32.mrf.mxu0
    %4149 = vmatprep.mubr.f32.mxu0 %v3839
    %4150 = vmatmul.mubr.f32.gmra.mxu0 %v3838
    %v4151 = vpop.f32.mrf.mxu0
    %v4152 = vadd.f32 %v4013, %v4151
    %v4153 = vpop.f32.mrf.mxu0
    %4154 = vmatprep.mubr.f32.mxu0 %v3844
    %4155 = vmatmul.mubr.f32.gmra.mxu0 %v3843
    %v4156 = vpop.f32.mrf.mxu0
    %v4157 = vadd.f32 %v4013, %v4156
    %v4158 = vpop.f32.mrf.mxu0
    %4159 = vdwg.mxu0
    %4160 = vmatprep.subr.mxu0 0.0
    %4161 = vmatpush1.msra.mxu0 %v3975
    %4162 = vmatprep.subr.mxu0 0.0
    %4163 = vmatpush1.msra.mxu0 %v3974
    %4164 = vmatprep.subr.mxu0 0.0
    %4165 = vmatpush1.msra.mxu0 %v3973
    %4166 = vmatprep.subr.mxu0 0.0
    %4167 = vmatpush1.msra.mxu0 %v3972
    %4168 = vmatprep.subr.mxu0 0.0
    %4169 = vmatpush1.msra.mxu0 %v3971
    %4170 = vmatprep.subr.mxu0 0.0
    %4171 = vmatpush1.msra.mxu0 %v3970
    %4172 = vmatprep.subr.mxu0 0.0
    %4173 = vmatpush1.msra.mxu0 %v3969
    %4174 = vmatprep.subr.mxu0 0.0
    %4175 = vmatpush1.msra.mxu0 %v3968
    %4176 = vmatprep.subr.mxu0 0.0
    %4177 = vmatpush1.msra.mxu0 %v3967
    %4178 = vmatprep.subr.mxu0 0.0
    %4179 = vmatpush1.msra.mxu0 %v3966
    %4180 = vmatprep.subr.mxu0 0.0
    %4181 = vmatpush1.msra.mxu0 %v3965
    %4182 = vmatprep.subr.mxu0 0.0
    %4183 = vmatpush1.msra.mxu0 %v3964
    %4184 = vmatprep.subr.mxu0 0.0
    %4185 = vmatpush1.msra.mxu0 %v3963
    %4186 = vmatprep.subr.mxu0 0.0
    %4187 = vmatpush1.msra.mxu0 %v3962
    %4188 = vmatprep.subr.mxu0 0.0
    %4189 = vmatpush1.msra.mxu0 %v3961
    %4190 = vmatprep.subr.mxu0 0.0
    %4191 = vmatpush1.msra.mxu0 %v3960
    %4192 = vmatprep.subr.mxu0 0.0
    %4193 = vmatpush2.msra.mxu0 %v3991
    %4194 = vmatprep.subr.mxu0 0.0
    %4195 = vmatpush2.msra.mxu0 %v3990
    %4196 = vmatprep.subr.mxu0 0.0
    %4197 = vmatpush2.msra.mxu0 %v3989
    %4198 = vmatprep.subr.mxu0 0.0
    %4199 = vmatpush2.msra.mxu0 %v3988
    %4200 = vmatprep.subr.mxu0 0.0
    %4201 = vmatpush2.msra.mxu0 %v3987
    %4202 = vmatprep.subr.mxu0 0.0
    %4203 = vmatpush2.msra.mxu0 %v3986
    %4204 = vmatprep.subr.mxu0 0.0
    %4205 = vmatpush2.msra.mxu0 %v3985
    %4206 = vmatprep.subr.mxu0 0.0
    %4207 = vmatpush2.msra.mxu0 %v3984
    %4208 = vmatprep.subr.mxu0 0.0
    %4209 = vmatpush2.msra.mxu0 %v3983
    %4210 = vmatprep.subr.mxu0 0.0
    %4211 = vmatpush2.msra.mxu0 %v3982
    %4212 = vmatprep.subr.mxu0 0.0
    %4213 = vmatpush2.msra.mxu0 %v3981
    %4214 = vmatprep.subr.mxu0 0.0
    %4215 = vmatpush2.msra.mxu0 %v3980
    %4216 = vmatprep.subr.mxu0 0.0
    %4217 = vmatpush2.msra.mxu0 %v3979
    %4218 = vmatprep.subr.mxu0 0.0
    %4219 = vmatpush2.msra.mxu0 %v3978
    %4220 = vmatprep.subr.mxu0 0.0
    %4221 = vmatpush2.msra.mxu0 %v3977
    %4222 = vmatprep.subr.mxu0 0.0
    %4223 = vmatpush2.msra.mxu0 %v3976
    %4224 = vmatprep.mubr.f32.mxu0 %v3771
    %4225 = vmatmul.mubr.f32.gmra.mxu0 %v3770
    %v4226 = vpop.f32.mrf.mxu0
    %v4227 = vadd.f32 %v4082, %v4226
    %v4228 = vpop.f32.mrf.mxu0
    %4229 = vmatprep.mubr.f32.mxu0 %v3776
    %4230 = vmatmul.mubr.f32.gmra.mxu0 %v3775
    %v4231 = vpop.f32.mrf.mxu0
    %v4232 = vadd.f32 %v4087, %v4231
    %v4233 = vpop.f32.mrf.mxu0
    %4234 = vmatprep.mubr.f32.mxu0 %v3781
    %4235 = vmatmul.mubr.f32.gmra.mxu0 %v3780
    %v4236 = vpop.f32.mrf.mxu0
    %v4237 = vadd.f32 %v4092, %v4236
    %v4238 = vpop.f32.mrf.mxu0
    %4239 = vmatprep.mubr.f32.mxu0 %v3786
    %4240 = vmatmul.mubr.f32.gmra.mxu0 %v3785
    %v4241 = vpop.f32.mrf.mxu0
    %v4242 = vadd.f32 %v4097, %v4241
    %v4243 = vpop.f32.mrf.mxu0
    %4244 = vmatprep.mubr.f32.mxu0 %v3791
    %4245 = vmatmul.mubr.f32.gmra.mxu0 %v3790
    %v4246 = vpop.f32.mrf.mxu0
    %v4247 = vadd.f32 %v4102, %v4246
    %v4248 = vpop.f32.mrf.mxu0
    %4249 = vmatprep.mubr.f32.mxu0 %v3796
    %4250 = vmatmul.mubr.f32.gmra.mxu0 %v3795
    %v4251 = vpop.f32.mrf.mxu0
    %v4252 = vadd.f32 %v4107, %v4251
    %v4253 = vpop.f32.mrf.mxu0
    %4254 = vmatprep.mubr.f32.mxu0 %v3801
    %4255 = vmatmul.mubr.f32.gmra.mxu0 %v3800
    %v4256 = vpop.f32.mrf.mxu0
    %v4257 = vadd.f32 %v4112, %v4256
    %v4258 = vpop.f32.mrf.mxu0
    %4259 = vmatprep.mubr.f32.mxu0 %v3806
    %4260 = vmatmul.mubr.f32.gmra.mxu0 %v3805
    %v4261 = vpop.f32.mrf.mxu0
    %v4262 = vadd.f32 %v4117, %v4261
    %v4263 = vpop.f32.mrf.mxu0
    %4264 = vmatprep.mubr.f32.mxu0 %v3811
    %4265 = vmatmul.mubr.f32.gmra.mxu0 %v3810
    %v4266 = vpop.f32.mrf.mxu0
    %v4267 = vadd.f32 %v4122, %v4266
    %v4268 = vpop.f32.mrf.mxu0
    %4269 = vmatprep.mubr.f32.mxu0 %v3816
    %4270 = vmatmul.mubr.f32.gmra.mxu0 %v3815
    %v4271 = vpop.f32.mrf.mxu0
    %v4272 = vadd.f32 %v4127, %v4271
    %v4273 = vpop.f32.mrf.mxu0
    %4274 = vmatprep.mubr.f32.mxu0 %v3821
    %4275 = vmatmul.mubr.f32.gmra.mxu0 %v3820
    %v4276 = vpop.f32.mrf.mxu0
    %v4277 = vadd.f32 %v4132, %v4276
    %v4278 = vpop.f32.mrf.mxu0
    %4279 = vmatprep.mubr.f32.mxu0 %v3826
    %4280 = vmatmul.mubr.f32.gmra.mxu0 %v3825
    %v4281 = vpop.f32.mrf.mxu0
    %v4282 = vadd.f32 %v4137, %v4281
    %v4283 = vpop.f32.mrf.mxu0
    %4284 = vmatprep.mubr.f32.mxu0 %v3831
    %4285 = vmatmul.mubr.f32.gmra.mxu0 %v3830
    %v4286 = vpop.f32.mrf.mxu0
    %v4287 = vadd.f32 %v4142, %v4286
    %v4288 = vpop.f32.mrf.mxu0
    %4289 = vmatprep.mubr.f32.mxu0 %v3836
    %4290 = vmatmul.mubr.f32.gmra.mxu0 %v3835
    %v4291 = vpop.f32.mrf.mxu0
    %v4292 = vadd.f32 %v4147, %v4291
    %v4293 = vpop.f32.mrf.mxu0
    %4294 = vmatprep.mubr.f32.mxu0 %v3841
    %4295 = vmatmul.mubr.f32.gmra.mxu0 %v3840
    %v4296 = vpop.f32.mrf.mxu0
    %v4297 = vadd.f32 %v4152, %v4296
    %v4298 = vpop.f32.mrf.mxu0
    %4299 = vmatprep.mubr.f32.mxu0 %v3846
    %4300 = vmatmul.mubr.f32.gmra.mxu0 %v3845
    %v4301 = vpop.f32.mrf.mxu0
    %v4302 = vadd.f32 %v4157, %v4301
    %v4303 = vpop.f32.mrf.mxu0
    %4304 = vdwg.mxu0
    %4305 = vmatprep.subr.mxu0 0.0
    %4306 = vmatpush1.msra.mxu0 %v4007
    %4307 = vmatprep.subr.mxu0 0.0
    %4308 = vmatpush1.msra.mxu0 %v4006
    %4309 = vmatprep.subr.mxu0 0.0
    %4310 = vmatpush1.msra.mxu0 %v4005
    %4311 = vmatprep.subr.mxu0 0.0
    %4312 = vmatpush1.msra.mxu0 %v4004
    %4313 = vmatprep.subr.mxu0 0.0
    %4314 = vmatpush1.msra.mxu0 %v4003
    %4315 = vmatprep.subr.mxu0 0.0
    %4316 = vmatpush1.msra.mxu0 %v4002
    %4317 = vmatprep.subr.mxu0 0.0
    %4318 = vmatpush1.msra.mxu0 %v4001
    %4319 = vmatprep.subr.mxu0 0.0
    %4320 = vmatpush1.msra.mxu0 %v4000
    %4321 = vmatprep.subr.mxu0 0.0
    %4322 = vmatpush1.msra.mxu0 %v3999
    %4323 = vmatprep.subr.mxu0 0.0
    %4324 = vmatpush1.msra.mxu0 %v3998
    %4325 = vmatprep.subr.mxu0 0.0
    %4326 = vmatpush1.msra.mxu0 %v3997
    %4327 = vmatprep.subr.mxu0 0.0
    %4328 = vmatpush1.msra.mxu0 %v3996
    %4329 = vmatprep.subr.mxu0 0.0
    %4330 = vmatpush1.msra.mxu0 %v3995
    %4331 = vmatprep.subr.mxu0 0.0
    %4332 = vmatpush1.msra.mxu0 %v3994
    %4333 = vmatprep.subr.mxu0 0.0
    %4334 = vmatpush1.msra.mxu0 %v3993
    %4335 = vmatprep.subr.mxu0 0.0
    %4336 = vmatpush1.msra.mxu0 %v3992
    %4337 = vmatprep.subr.mxu0 0.0
    %4338 = vmatpush2.msra.mxu0 0.0
    %4339 = vmatprep.subr.mxu0 0.0
    %4340 = vmatpush2.msra.mxu0 0.0
    %4341 = vmatprep.subr.mxu0 0.0
    %4342 = vmatpush2.msra.mxu0 0.0
    %4343 = vmatprep.subr.mxu0 0.0
    %4344 = vmatpush2.msra.mxu0 0.0
    %4345 = vmatprep.subr.mxu0 0.0
    %4346 = vmatpush2.msra.mxu0 0.0
    %4347 = vmatprep.subr.mxu0 0.0
    %4348 = vmatpush2.msra.mxu0 0.0
    %4349 = vmatprep.subr.mxu0 0.0
    %4350 = vmatpush2.msra.mxu0 0.0
    %4351 = vmatprep.subr.mxu0 0.0
    %4352 = vmatpush2.msra.mxu0 0.0
    %4353 = vmatprep.subr.mxu0 0.0
    %4354 = vmatpush2.msra.mxu0 0.0
    %4355 = vmatprep.subr.mxu0 0.0
    %4356 = vmatpush2.msra.mxu0 0.0
    %4357 = vmatprep.subr.mxu0 0.0
    %4358 = vmatpush2.msra.mxu0 0.0
    %4359 = vmatprep.subr.mxu0 0.0
    %4360 = vmatpush2.msra.mxu0 0.0
    %4361 = vmatprep.subr.mxu0 0.0
    %4362 = vmatpush2.msra.mxu0 0.0
    %4363 = vmatprep.subr.mxu0 0.0
    %4364 = vmatpush2.msra.mxu0 0.0
    %4365 = vmatprep.subr.mxu0 0.0
    %4366 = vmatpush2.msra.mxu0 0.0
    %4367 = vmatprep.subr.mxu0 0.0
    %4368 = vmatpush2.msra.mxu0 0.0
    %4369 = vmatprep.mubr.f32.mxu0 0.0
    %4370 = vmatmul.mubr.f32.gmra.mxu0 %v3772
    %v4371 = vpop.f32.mrf.mxu0
    %v4372 = vadd.f32 %v4227, %v4371
    %v4373 = vpop.f32.mrf.mxu0
    %4374 = vmatprep.mubr.f32.mxu0 0.0
    %4375 = vmatmul.mubr.f32.gmra.mxu0 %v3777
    %v4376 = vpop.f32.mrf.mxu0
    %v4377 = vadd.f32 %v4232, %v4376
    %v4378 = vpop.f32.mrf.mxu0
    %4379 = vmatprep.mubr.f32.mxu0 0.0
    %4380 = vmatmul.mubr.f32.gmra.mxu0 %v3782
    %v4381 = vpop.f32.mrf.mxu0
    %v4382 = vadd.f32 %v4237, %v4381
    %v4383 = vpop.f32.mrf.mxu0
    %4384 = vmatprep.mubr.f32.mxu0 0.0
    %4385 = vmatmul.mubr.f32.gmra.mxu0 %v3787
    %v4386 = vpop.f32.mrf.mxu0
    %v4387 = vadd.f32 %v4242, %v4386
    %v4388 = vpop.f32.mrf.mxu0
    %4389 = vmatprep.mubr.f32.mxu0 0.0
    %4390 = vmatmul.mubr.f32.gmra.mxu0 %v3792
    %v4391 = vpop.f32.mrf.mxu0
    %v4392 = vadd.f32 %v4247, %v4391
    %v4393 = vpop.f32.mrf.mxu0
    %4394 = vmatprep.mubr.f32.mxu0 0.0
    %4395 = vmatmul.mubr.f32.gmra.mxu0 %v3797
    %v4396 = vpop.f32.mrf.mxu0
    %v4397 = vadd.f32 %v4252, %v4396
    %v4398 = vpop.f32.mrf.mxu0
    %4399 = vmatprep.mubr.f32.mxu0 0.0
    %4400 = vmatmul.mubr.f32.gmra.mxu0 %v3802
    %v4401 = vpop.f32.mrf.mxu0
    %v4402 = vadd.f32 %v4257, %v4401
    %v4403 = vpop.f32.mrf.mxu0
    %4404 = vmatprep.mubr.f32.mxu0 0.0
    %4405 = vmatmul.mubr.f32.gmra.mxu0 %v3807
    %v4406 = vpop.f32.mrf.mxu0
    %v4407 = vadd.f32 %v4262, %v4406
    %v4408 = vpop.f32.mrf.mxu0
    %4409 = vmatprep.mubr.f32.mxu0 0.0
    %4410 = vmatmul.mubr.f32.gmra.mxu0 %v3812
    %v4411 = vpop.f32.mrf.mxu0
    %v4412 = vadd.f32 %v4267, %v4411
    %v4413 = vpop.f32.mrf.mxu0
    %4414 = vmatprep.mubr.f32.mxu0 0.0
    %4415 = vmatmul.mubr.f32.gmra.mxu0 %v3817
    %v4416 = vpop.f32.mrf.mxu0
    %v4417 = vadd.f32 %v4272, %v4416
    %v4418 = vpop.f32.mrf.mxu0
    %4419 = vmatprep.mubr.f32.mxu0 0.0
    %4420 = vmatmul.mubr.f32.gmra.mxu0 %v3822
    %v4421 = vpop.f32.mrf.mxu0
    %v4422 = vadd.f32 %v4277, %v4421
    %v4423 = vpop.f32.mrf.mxu0
    %4424 = vmatprep.mubr.f32.mxu0 0.0
    %4425 = vmatmul.mubr.f32.gmra.mxu0 %v3827
    %v4426 = vpop.f32.mrf.mxu0
    %v4427 = vadd.f32 %v4282, %v4426
    %v4428 = vpop.f32.mrf.mxu0
    %4429 = vmatprep.mubr.f32.mxu0 0.0
    %4430 = vmatmul.mubr.f32.gmra.mxu0 %v3832
    %v4431 = vpop.f32.mrf.mxu0
    %v4432 = vadd.f32 %v4287, %v4431
    %v4433 = vpop.f32.mrf.mxu0
    %4434 = vmatprep.mubr.f32.mxu0 0.0
    %4435 = vmatmul.mubr.f32.gmra.mxu0 %v3837
    %v4436 = vpop.f32.mrf.mxu0
    %v4437 = vadd.f32 %v4292, %v4436
    %v4438 = vpop.f32.mrf.mxu0
    %4439 = vmatprep.mubr.f32.mxu0 0.0
    %4440 = vmatmul.mubr.f32.gmra.mxu0 %v3842
    %v4441 = vpop.f32.mrf.mxu0
    %v4442 = vadd.f32 %v4297, %v4441
    %v4443 = vpop.f32.mrf.mxu0
    %4444 = vmatprep.mubr.f32.mxu0 0.0
    %4445 = vmatmul.mubr.f32.gmra.mxu0 %v3847
    %v4446 = vpop.f32.mrf.mxu0
    %v4447 = vadd.f32 %v4302, %v4446
    %v4448 = vpop.f32.mrf.mxu0
    %4449 = vdwg.mxu0
    %v4450 = vtanh.pop %v4372
    %v4451 = vtanh.pop %v4377
    %v4452 = vtanh.pop %v4382
    %v4453 = vtanh.pop %v4387
    %v4454 = vtanh.pop %v4392
    %v4455 = vtanh.pop %v4397
    %v4456 = vtanh.pop %v4402
    %v4457 = vtanh.pop %v4407
    %v4458 = vtanh.pop %v4412
    %v4459 = vtanh.pop %v4417
    %v4460 = vtanh.pop %v4422
    %v4461 = vtanh.pop %v4427
    %v4462 = vtanh.pop %v4432
    %v4463 = vtanh.pop %v4437
    %v4464 = vtanh.pop %v4442
    %v4465 = vtanh.pop %v4447
    %4466 = vst [vmem:[%s7] sm:$0xff] %v4450
    %4467 = vst [vmem:[%s7 + $0x8] sm:$0xff] %v4451
    %4468 = vst [vmem:[%s7 + $0x10] sm:$0xff] %v4452
    %4469 = vst [vmem:[%s7 + $0x18] sm:$0xff] %v4453
    %4470 = vst [vmem:[%s7 + $0x20] sm:$0xff] %v4454
    %4471 = vst [vmem:[%s7 + $0x28] sm:$0xff] %v4455
    %4472 = vst [vmem:[%s7 + $0x30] sm:$0xff] %v4456
    %4473 = vst [vmem:[%s7 + $0x38] sm:$0xff] %v4457
    %4474 = vst [vmem:[%s7 + $0x40] sm:$0xff] %v4458
    %4475 = vst [vmem:[%s7 + $0x48] sm:$0xff] %v4459
    %4476 = vst [vmem:[%s7 + $0x50] sm:$0xff] %v4460
    %4477 = vst [vmem:[%s7 + $0x58] sm:$0xff] %v4461
    %4478 = vst [vmem:[%s7 + $0x60] sm:$0xff] %v4462
    %4479 = vst [vmem:[%s7 + $0x68] sm:$0xff] %v4463
    %4480 = vst [vmem:[%s7 + $0x70] sm:$0xff] %v4464
    %4481 = vst [vmem:[%s7 + $0x78] sm:$0xff] %v4465
    // Predicated region
    $region54: #{actor_forward.1} parent=1 // pred_check
      _
    $region55: #{actor_forward.1} parent=1 // pred_check_branch
      %4483 = sbr.rel (0) target = $region57
    $region56: #{actor_forward.1} parent=1 // pred_region
      _
    $region57: #{actor_forward.1} parent=1 // pred_fallthru
      _
    // Predicated region
    $region58: #{actor_forward.1} parent=1 // pred_check
      _
    $region59: #{actor_forward.1} parent=1 // pred_check_branch
      %4485 = sbr.rel (0) target = $region61
    $region60: #{actor_forward.1} parent=1 // pred_region
      _
    $region61: #{actor_forward.1} parent=1 // pred_fallthru
      _
    %4486 = vsyncpa [#allocation3], 1
    %4487 = vsyncpa [#allocation5], 1
    %4488 = vsyncpa [#allocation8], 1
    %4489 = vsyncpa [#allocation11], 1

</llo_original>
